<compile_context>
chip_gen: v7x
topology: tpu7x:2x2x1
jax: 0.10.0
libtpu: 0.0.40
codegen_flags: <defaults>
</compile_context>

<pallas_src>
import jax
import jax.numpy as jnp
from jax import lax
from jax.experimental import pallas as pl
from jax.experimental.pallas import tpu as pltpu

R_DOF = 9.0      # Encoder(r=9)
BN_EPS = 1e-5    # PyTorch BatchNorm default eps


def _round_up(x, m):
    return ((x + m - 1) // m) * m


# ----------------------------------------------------------------------------
# Kernel A: tiled bf16 matmul + per-column partial BN statistics (pass 1)
# ----------------------------------------------------------------------------
def _matmul_stats_kernel(x_ref, w_ref, y_ref, s_ref, acc_ref):
    k = pl.program_id(1)

    @pl.when(k == 0)
    def _():
        acc_ref[...] = jnp.zeros_like(acc_ref)

    acc_ref[...] += jnp.dot(x_ref[...], w_ref[...],
                            preferred_element_type=jnp.float32)

    @pl.when(k == pl.num_programs(1) - 1)
    def _():
        y = acc_ref[...]
        y_ref[...] = y
        # partial per-column moments for this M tile (rows 2..7 unused)
        s_ref[0:1, :] = jnp.sum(y, axis=0, keepdims=True)
        s_ref[1:2, :] = jnp.sum(y * y, axis=0, keepdims=True)


# ----------------------------------------------------------------------------
# Kernel B: tiled elementwise BatchNorm (precomputed scale/shift) + ReLU
# ----------------------------------------------------------------------------
def _bn_relu_kernel(y_ref, scale_ref, shift_ref, o_ref):
    o_ref[...] = jnp.maximum(
        y_ref[...] * scale_ref[...] + shift_ref[...], 0.0).astype(o_ref.dtype)


def matmul_bn_relu(x, w, gamma, beta, *, tm=256, tk_max=512):
    """(x @ w) -> train-mode BatchNorm (batch stats over rows) -> ReLU -> bf16.

    x: (M, K), w: (K, N) with N a multiple of 128. Returns (M, N) bf16.
    """
    x = x.astype(jnp.bfloat16)
    w = w.astype(jnp.bfloat16)
    M, K = x.shape
    Kw, N = w.shape
    assert K == Kw and N % 128 == 0

    tk = K if K <= tk_max else tk_max
    Kp = _round_up(K, tk)
    tm_eff = min(tm, _round_up(M, 8))
    Mp = _round_up(M, tm_eff)

    if (Mp, Kp) != (M, K):
        x = jnp.pad(x, ((0, Mp - M), (0, Kp - K)))
    if Kp != K:
        w = jnp.pad(w, ((0, Kp - K), (0, 0)))

    nmt, nkt = Mp // tm_eff, Kp // tk

    y, stats = pl.pallas_call(
        _matmul_stats_kernel,
        out_shape=(jax.ShapeDtypeStruct((Mp, N), jnp.float32),
                   jax.ShapeDtypeStruct((nmt * 8, N), jnp.float32)),
        grid=(nmt, nkt),
        in_specs=[
            pl.BlockSpec((tm_eff, tk), lambda i, k: (i, k)),
            pl.BlockSpec((tk, N), lambda i, k: (k, 0)),
        ],
        out_specs=(
            pl.BlockSpec((tm_eff, N), lambda i, k: (i, 0)),
            pl.BlockSpec((8, N), lambda i, k: (i, 0)),
        ),
        scratch_shapes=[pltpu.VMEM((tm_eff, N), jnp.float32)],
        compiler_params=pltpu.CompilerParams(
            dimension_semantics=("parallel", "arbitrary")),
    )(x, w)

    # Finish BN stats in f32 (zero-padded rows contribute 0 to both moments).
    stats = stats.reshape(nmt, 8, N)
    mean = jnp.sum(stats[:, 0, :], axis=0) / M
    var = jnp.maximum(jnp.sum(stats[:, 1, :], axis=0) / M - mean * mean, 0.0)
    scale = gamma * lax.rsqrt(var + BN_EPS)
    shift = beta - mean * scale

    out = pl.pallas_call(
        _bn_relu_kernel,
        out_shape=jax.ShapeDtypeStruct((Mp, N), jnp.bfloat16),
        grid=(nmt,),
        in_specs=[
            pl.BlockSpec((tm_eff, N), lambda i: (i, 0)),
            pl.BlockSpec((1, N), lambda i: (0, 0)),
            pl.BlockSpec((1, N), lambda i: (0, 0)),
        ],
        out_specs=pl.BlockSpec((tm_eff, N), lambda i: (i, 0)),
        compiler_params=pltpu.CompilerParams(
            dimension_semantics=("parallel",)),
    )(y, scale.reshape(1, N).astype(jnp.float32),
      shift.reshape(1, N).astype(jnp.float32))
    return out[:M]


# ----------------------------------------------------------------------------
# Kernel C: fused Linear(iels,1024) + BN1d + ReLU + packed heads + student-T
# ----------------------------------------------------------------------------
def _fc_heads_kernel(x_ref, wfc_ref, g_ref, b_ref, wh_ref, bh_ref,
                     stdz_ref, e_ref, z_ref, mu_ref, lp_ref, acc_ref):
    k = pl.program_id(0)

    @pl.when(k == 0)
    def _():
        acc_ref[...] = jnp.zeros_like(acc_ref)

    acc_ref[...] += jnp.dot(x_ref[...], wfc_ref[...],
                            preferred_element_type=jnp.float32)

    @pl.when(k == pl.num_programs(0) - 1)
    def _():
        y = acc_ref[...]                                    # (B, 1024) f32
        mean = jnp.mean(y, axis=0, keepdims=True)
        var = jnp.mean(jnp.square(y - mean), axis=0, keepdims=True)
        h = (y - mean) * lax.rsqrt(var + BN_EPS) * g_ref[...] + b_ref[...]
        h = jnp.maximum(h, 0.0).astype(jnp.bfloat16)

        # one lane-dense matmul for [mu | log_sigma | log_v(replicated)]
        heads = jnp.dot(h, wh_ref[...],
                        preferred_element_type=jnp.float32) + bh_ref[...]
        cp = wh_ref.shape[1] // 3
        mu = heads[:, 0:cp]
        log_sigma = heads[:, cp:2 * cp]
        log_v = heads[:, 2 * cp:3 * cp]       # _v head replicated across lanes

        v = jnp.exp(log_v) + R_DOF
        sigma = jnp.exp(log_sigma * 0.5)
        e = e_ref[...]                                      # uniform(-1, 1)
        z1 = (v / 2.0 - 1.0 / 3.0) * (1.0 + e / jnp.sqrt(9.0 * v / 2.0 - 3.0)) ** 3
        z2 = jnp.sqrt(v / (2.0 * z1))

        z_ref[...] = mu + sigma * z2 * stdz_ref[...]
        mu_ref[...] = mu
        lp_ref[...] = log_sigma - jnp.log(z1)


def fc_bn_relu_heads(flat, wfc, gamma, beta, wheads, bheads, std_z, e,
                     *, tk_max=512):
    flat = flat.astype(jnp.bfloat16)
    wfc = wfc.astype(jnp.bfloat16)
    B, K = flat.shape
    Kw, H = wfc.shape
    assert K == Kw
    Wh = wheads.shape[1]
    Cp = Wh // 3

    tk = K if K <= tk_max else tk_max
    Kp = _round_up(K, tk)
    if Kp != K:
        flat = jnp.pad(flat, ((0, 0), (0, Kp - K)))
        wfc = jnp.pad(wfc, ((0, Kp - K), (0, 0)))
    nkt = Kp // tk

    out_shape = tuple(jax.ShapeDtypeStruct((B, Cp), jnp.float32)
                      for _ in range(3))
    z, mu, logp = pl.pallas_call(
        _fc_heads_kernel,
        out_shape=out_shape,
        grid=(nkt,),
        in_specs=[
            pl.BlockSpec((B, tk), lambda k: (0, k)),
            pl.BlockSpec((tk, H), lambda k: (k, 0)),
            pl.BlockSpec((1, H), lambda k: (0, 0)),
            pl.BlockSpec((1, H), lambda k: (0, 0)),
            pl.BlockSpec((H, Wh), lambda k: (0, 0)),
            pl.BlockSpec((1, Wh), lambda k: (0, 0)),
            pl.BlockSpec((B, Cp), lambda k: (0, 0)),
            pl.BlockSpec((B, Cp), lambda k: (0, 0)),
        ],
        out_specs=tuple(pl.BlockSpec((B, Cp), lambda k: (0, 0))
                        for _ in range(3)),
        scratch_shapes=[pltpu.VMEM((B, H), jnp.float32)],
        compiler_params=pltpu.CompilerParams(
            dimension_semantics=("arbitrary",)),
    )(flat, wfc, gamma.reshape(1, H), beta.reshape(1, H),
      wheads, bheads.reshape(1, Wh), std_z, e)
    return z, mu, logp


# ----------------------------------------------------------------------------
# Glue: im2col, parameter init (torch layout) and one-time packing
# ----------------------------------------------------------------------------
def im2col(x_nhwc, kh, kw, stride, pad):
    n, h, w, c = x_nhwc.shape
    xp = jnp.pad(x_nhwc, ((0, 0), (pad, pad), (pad, pad), (0, 0)))
    oh = (h + 2 * pad - kh) // stride + 1
    ow = (w + 2 * pad - kw) // stride + 1
    cols = []
    for i in range(kh):
        for j in range(kw):
            cols.append(xp[:, i:i + stride * oh:stride, j:j + stride * ow:stride, :])
    patches = jnp.stack(cols, axis=3)                 # (N, OH, OW, KH*KW, C)
    return patches.reshape(n * oh * ow, kh * kw * c), oh, ow


def conv_w_to_mat(w_oihw):
    # (Cout, Cin, KH, KW) -> (KH*KW*Cin, Cout), matching im2col column order
    co, ci, kh, kw = w_oihw.shape
    return jnp.transpose(w_oihw, (2, 3, 1, 0)).reshape(kh * kw * ci, co)


def init_params(key, input_channels, output_channels, iels):
    ks = jax.random.split(key, 9)

    def nrm(k, shape, std=0.02, mean=0.0):
        return mean + std * jax.random.normal(k, shape, jnp.float32)

    # NOTE: conv/FC biases are omitted: they sit immediately before
    # train-mode BatchNorm, whose mean subtraction cancels them exactly.
    return dict(
        conv1_w=nrm(ks[0], (64, input_channels, 4, 4)),
        bn1_g=nrm(ks[1], (64,), mean=1.0), bn1_b=jnp.zeros((64,), jnp.float32),
        conv2_w=nrm(ks[2], (128, 64, 4, 4)),
        bn2_g=nrm(ks[3], (128,), mean=1.0), bn2_b=jnp.zeros((128,), jnp.float32),
        fc_w=nrm(ks[4], (1024, iels)),
        bn3_g=nrm(ks[5], (1024,), mean=1.0), bn3_b=jnp.zeros((1024,), jnp.float32),
        mu_w=nrm(ks[6], (output_channels, 1024)),
        mu_b=jnp.zeros((output_channels,), jnp.float32),
        con_w=nrm(ks[7], (output_channels, 1024)),
        con_b=jnp.zeros((output_channels,), jnp.float32),
        v_w=jax.random.uniform(ks[8], (1, 1024), jnp.float32, 0.01, 0.03),
        v_b=jnp.zeros((1,), jnp.float32),
    )


def prepare_params(p, output_channels):
    """One-time packing: pre-transposed, bf16-cast, lane-padded weights."""
    c = output_channels
    cp = _round_up(c, 128)

    # conv1: pad Cout 64 -> 128 for lane-dense stores (trimmed downstream)
    w1 = conv_w_to_mat(p["conv1_w"])
    n1 = w1.shape[1]
    n1p = _round_up(n1, 128)
    w1 = jnp.pad(w1, ((0, 0), (0, n1p - n1)))
    g1 = jnp.pad(p["bn1_g"], (0, n1p - n1), constant_values=1.0)
    b1 = jnp.pad(p["bn1_b"], (0, n1p - n1))

    # heads packed into one lane-dense matrix: [mu | con | v(replicated)]
    wheads = jnp.concatenate([
        jnp.pad(p["mu_w"].T, ((0, 0), (0, cp - c))),
        jnp.pad(p["con_w"].T, ((0, 0), (0, cp - c))),
        jnp.tile(p["v_w"].T, (1, cp)),
    ], axis=1)                                             # (1024, 3*cp)
    bheads = jnp.concatenate([
        jnp.pad(p["mu_b"], (0, cp - c)),
        jnp.pad(p["con_b"], (0, cp - c)),
        jnp.tile(p["v_b"], cp),
    ])

    return dict(
        w1=w1.astype(jnp.bfloat16), g1=g1, b1=b1,
        w2=conv_w_to_mat(p["conv2_w"]).astype(jnp.bfloat16),
        g2=p["bn2_g"], b2=p["bn2_b"],
        wfc=p["fc_w"].T.astype(jnp.bfloat16),              # (iels, 1024)
        g3=p["bn3_g"], b3=p["bn3_b"],
        wheads=wheads.astype(jnp.bfloat16), bheads=bheads,
    )


def encoder_forward(params, x_nchw, noise_key, output_channels=64):
    n = x_nchw.shape[0]
    cp = params["wheads"].shape[1] // 3
    c1 = params["w2"].shape[0] // 16          # conv1 true output channels

    x_nhwc = jnp.transpose(x_nchw, (0, 2, 3, 1)).astype(jnp.bfloat16)

    # conv1 (k=4, s=2, p=1) + BN2d + ReLU   (Cout lane-padded to 128)
    cols1, oh1, ow1 = im2col(x_nhwc, 4, 4, 2, 1)
    h1 = matmul_bn_relu(cols1, params["w1"], params["g1"], params["b1"])
    h1 = h1.reshape(n, oh1, ow1, -1)[..., :c1]             # trim lane padding

    # conv2 (k=4, s=2, p=1) + BN2d + ReLU
    cols2, oh2, ow2 = im2col(h1, 4, 4, 2, 1)
    h2 = matmul_bn_relu(cols2, params["w2"], params["g2"], params["b2"])
    h2_nchw = jnp.transpose(h2.reshape(n, oh2, ow2, -1), (0, 3, 1, 2))

    # Reshape(lshape): flatten order matches torch's x.view(N, C*H*W)
    flat = h2_nchw.reshape(n, -1)

    # fused Linear+BN1d+ReLU + heads + student-T reparameterisation
    # TODO(synk): noise drawn with jax.random, not the PyTorch host-numpy RNG.
    k1, k2 = jax.random.split(noise_key)
    std_z = jax.random.normal(k1, (n, cp), jnp.float32)
    e = jax.random.uniform(k2, (n, cp), jnp.float32, -1.0, 1.0)

    z, mu, logp = fc_bn_relu_heads(flat, params["wfc"], params["g3"],
                                   params["b3"], params["wheads"],
                                   params["bheads"], std_z, e)
    c = output_channels
    return z[:, :c], mu[:, :c], logp[:, :c]


if __name__ == "__main__":
    key = jax.random.PRNGKey(0)
    kx, kp, kn = jax.random.split(key, 3)

    # small shapes: batch=2, 1 input channel, 16x16 spatial
    # -> after two stride-2 convs: cshape = (128, 4, 4), iels = 2048
    N, CIN, H, W = 2, 1, 16, 16
    OUT_CH = 64
    IELS = 128 * (H // 4) * (W // 4)

    x = jax.random.normal(kx, (N, CIN, H, W), jnp.float32)
    raw_params = init_params(kp, CIN, OUT_CH, IELS)
    params = prepare_params(raw_params, OUT_CH)

    fwd = jax.jit(encoder_forward, static_argnames=("output_channels",))
    z, mu, logp = fwd(params, x, kn, output_channels=OUT_CH)
    jax.block_until_ready((z, mu, logp))

    assert z.shape == (N, OUT_CH) and mu.shape == (N, OUT_CH) and logp.shape == (N, OUT_CH)
    assert bool(jnp.all(jnp.isfinite(z))) and bool(jnp.all(jnp.isfinite(logp)))
    print("KERNEL_OK")
</pallas_src>

<mosaic_0001>
module attributes {stable_mosaic.version = 11 : i64} {
  func.func @_bn_relu_kernel(%arg0: i32, %arg1: memref<128x128xf32, #tpu.memory_space<vmem>>, %arg2: memref<1x128xf32, #tpu.memory_space<vmem>>, %arg3: memref<1x128xf32, #tpu.memory_space<vmem>>, %arg4: memref<128x128xbf16, #tpu.memory_space<vmem>>) attributes {dimension_semantics = [#tpu.dimension_semantics<parallel>], iteration_bounds = array<i64: 1>, scalar_prefetch = 0 : i64, scratch_operands = 0 : i64, tpu.core_type = #tpu.core_type<tc>, window_params = [{transform_indices = @transform_0, window_bounds = array<i64: 128, 128>}, {pipeline_mode = #tpu.pipeline_mode<synchronous>, transform_indices = @transform_1, window_bounds = array<i64: 1, 128>}, {pipeline_mode = #tpu.pipeline_mode<synchronous>, transform_indices = @transform_2, window_bounds = array<i64: 1, 128>}, {transform_indices = @transform_3, window_bounds = array<i64: 128, 128>}]} {
    %c0 = arith.constant 0 : index
    %c0_0 = arith.constant 0 : index
    %0 = vector.load %arg1[%c0, %c0_0] : memref<128x128xf32, #tpu.memory_space<vmem>>, vector<128x128xf32>
    %c0_1 = arith.constant 0 : index
    %c0_2 = arith.constant 0 : index
    %1 = vector.load %arg2[%c0_1, %c0_2] : memref<1x128xf32, #tpu.memory_space<vmem>>, vector<1x128xf32>
    %2 = vector.broadcast %1 : vector<1x128xf32> to vector<128x128xf32>
    %3 = arith.mulf %0, %2 : vector<128x128xf32>
    %c0_3 = arith.constant 0 : index
    %c0_4 = arith.constant 0 : index
    %4 = vector.load %arg3[%c0_3, %c0_4] : memref<1x128xf32, #tpu.memory_space<vmem>>, vector<1x128xf32>
    %5 = vector.broadcast %4 : vector<1x128xf32> to vector<128x128xf32>
    %6 = arith.addf %3, %5 : vector<128x128xf32>
    %cst = arith.constant 0.000000e+00 : f32
    %7 = vector.broadcast %cst : f32 to vector<128x128xf32>
    %8 = arith.maximumf %6, %7 : vector<128x128xf32>
    %9 = arith.truncf %8 : vector<128x128xf32> to vector<128x128xbf16>
    %c0_5 = arith.constant 0 : index
    %c0_6 = arith.constant 0 : index
    %10 = vector.load %arg4[%c0_5, %c0_6] : memref<128x128xbf16, #tpu.memory_space<vmem>>, vector<128x128xbf16>
    tpu.vector_store %arg4[%c0_5, %c0_6], %9 {strides = array<i32>} : memref<128x128xbf16, #tpu.memory_space<vmem>>, vector<128x128xbf16>,
    return
  }
  func.func @transform_0(%arg0: i32) -> (i32, i32) {
    %c0_i32 = arith.constant 0 : i32
    %c0_i32_0 = arith.constant 0 : i32
    return %arg0, %c0_i32 : i32, i32
  }
  func.func @transform_1(%arg0: i32) -> (i32, i32) {
    %c0_i32 = arith.constant 0 : i32
    %c0_i32_0 = arith.constant 0 : i32
    %c0_i32_1 = arith.constant 0 : i32
    return %c0_i32, %c0_i32_0 : i32, i32
  }
  func.func @transform_2(%arg0: i32) -> (i32, i32) {
    %c0_i32 = arith.constant 0 : i32
    %c0_i32_0 = arith.constant 0 : i32
    %c0_i32_1 = arith.constant 0 : i32
    return %c0_i32, %c0_i32_0 : i32, i32
  }
  func.func @transform_3(%arg0: i32) -> (i32, i32) {
    %c0_i32 = arith.constant 0 : i32
    %c0_i32_0 = arith.constant 0 : i32
    return %arg0, %c0_i32 : i32, i32
  }
}

module attributes {stable_mosaic.version = 11 : i64} {
  func.func @_matmul_stats_kernel(%arg0: i32, %arg1: i32, %arg2: memref<128x16xbf16, #tpu.memory_space<vmem>>, %arg3: memref<16x128xbf16, #tpu.memory_space<vmem>>, %arg4: memref<128x128xf32, #tpu.memory_space<vmem>>, %arg5: memref<8x128xf32, #tpu.memory_space<vmem>>, %arg6: memref<128x128xf32, #tpu.memory_space<vmem>>) attributes {dimension_semantics = [#tpu.dimension_semantics<parallel>, #tpu.dimension_semantics<arbitrary>], iteration_bounds = array<i64: 1, 1>, scalar_prefetch = 0 : i64, scratch_operands = 1 : i64, tpu.core_type = #tpu.core_type<tc>, window_params = [{transform_indices = @transform_0, window_bounds = array<i64: 128, 16>}, {transform_indices = @transform_1, window_bounds = array<i64: 16, 128>}, {transform_indices = @transform_2, window_bounds = array<i64: 128, 128>}, {transform_indices = @transform_3, window_bounds = array<i64: 8, 128>}]} {
    %c0_i32 = arith.constant 0 : i32
    %0 = arith.cmpi eq, %arg1, %c0_i32 : i32
    %1 = arith.extui %0 : i1 to i32
    %c0_i32_0 = arith.constant 0 : i32
    %2 = arith.cmpi ne, %1, %c0_i32_0 : i32
    scf.if %2 {
      %cst_10 = arith.constant 0.000000e+00 : f32
      %12 = vector.broadcast %cst_10 : f32 to vector<128x128xf32>
      %c0_11 = arith.constant 0 : index
      %c0_12 = arith.constant 0 : index
      %13 = vector.load %arg6[%c0_11, %c0_12] : memref<128x128xf32, #tpu.memory_space<vmem>>, vector<128x128xf32>
      tpu.vector_store %arg6[%c0_11, %c0_12], %12 {strides = array<i32>} : memref<128x128xf32, #tpu.memory_space<vmem>>, vector<128x128xf32>,
    } else {
    }
    %c0 = arith.constant 0 : index
    %c0_1 = arith.constant 0 : index
    %3 = vector.load %arg6[%c0, %c0_1] : memref<128x128xf32, #tpu.memory_space<vmem>>, vector<128x128xf32>
    %c0_2 = arith.constant 0 : index
    %c0_3 = arith.constant 0 : index
    %4 = vector.load %arg2[%c0_2, %c0_3] : memref<128x16xbf16, #tpu.memory_space<vmem>>, vector<128x16xbf16>
    %c0_4 = arith.constant 0 : index
    %c0_5 = arith.constant 0 : index
    %5 = vector.load %arg3[%c0_4, %c0_5] : memref<16x128xbf16, #tpu.memory_space<vmem>>, vector<16x128xbf16>
    %cst = arith.constant dense<0.000000e+00> : vector<128x128xf32>
    %6 = tpu.matmul %4, %5, %cst {dimension_numbers = #tpu.dot_dimension_numbers<[1], [0], [0], [1], [0, 0, 1, 1], [], []>} : vector<128x16xbf16>, vector<16x128xbf16>, vector<128x128xf32> -> vector<128x128xf32>
    %7 = arith.addf %3, %6 : vector<128x128xf32>
    %c0_6 = arith.constant 0 : index
    %c0_7 = arith.constant 0 : index
    %8 = vector.load %arg6[%c0_6, %c0_7] : memref<128x128xf32, #tpu.memory_space<vmem>>, vector<128x128xf32>
    tpu.vector_store %arg6[%c0_6, %c0_7], %7 {strides = array<i32>} : memref<128x128xf32, #tpu.memory_space<vmem>>, vector<128x128xf32>,
    %c0_i32_8 = arith.constant 0 : i32
    %9 = arith.cmpi eq, %arg1, %c0_i32_8 : i32
    %10 = arith.extui %9 : i1 to i32
    %c0_i32_9 = arith.constant 0 : i32
    %11 = arith.cmpi ne, %10, %c0_i32_9 : i32
    scf.if %11 {
      %c0_10 = arith.constant 0 : index
      %c0_11 = arith.constant 0 : index
      %12 = vector.load %arg6[%c0_10, %c0_11] : memref<128x128xf32, #tpu.memory_space<vmem>>, vector<128x128xf32>
      %c0_12 = arith.constant 0 : index
      %c0_13 = arith.constant 0 : index
      %13 = vector.load %arg4[%c0_12, %c0_13] : memref<128x128xf32, #tpu.memory_space<vmem>>, vector<128x128xf32>
      tpu.vector_store %arg4[%c0_12, %c0_13], %12 {strides = array<i32>} : memref<128x128xf32, #tpu.memory_space<vmem>>, vector<128x128xf32>,
      %cst_14 = arith.constant dense<0.000000e+00> : vector<128xf32>
      %14 = vector.multi_reduction <add>, %12, %cst_14 [0] : vector<128x128xf32> to vector<128xf32>
      %15 = vector.shape_cast %14 : vector<128xf32> to vector<1x128xf32>
      %c0_15 = arith.constant 0 : index
      %c0_16 = arith.constant 0 : index
      %16 = vector.load %arg5[%c0_15, %c0_16] : memref<8x128xf32, #tpu.memory_space<vmem>>, vector<1x128xf32>
      tpu.vector_store %arg5[%c0_15, %c0_16], %15 {strides = array<i32>} : memref<8x128xf32, #tpu.memory_space<vmem>>, vector<1x128xf32>,
      %17 = arith.mulf %12, %12 : vector<128x128xf32>
      %cst_17 = arith.constant dense<0.000000e+00> : vector<128xf32>
      %18 = vector.multi_reduction <add>, %17, %cst_17 [0] : vector<128x128xf32> to vector<128xf32>
      %19 = vector.shape_cast %18 : vector<128xf32> to vector<1x128xf32>
      %c1 = arith.constant 1 : index
      %c0_18 = arith.constant 0 : index
      %20 = vector.load %arg5[%c1, %c0_18] : memref<8x128xf32, #tpu.memory_space<vmem>>, vector<1x128xf32>
      tpu.vector_store %arg5[%c1, %c0_18], %19 {strides = array<i32>} : memref<8x128xf32, #tpu.memory_space<vmem>>, vector<1x128xf32>,
    } else {
    }
    return
  }
  func.func @transform_0(%arg0: i32, %arg1: i32) -> (i32, i32) {
    %c0_i32 = arith.constant 0 : i32
    return %arg0, %arg1 : i32, i32
  }
  func.func @transform_1(%arg0: i32, %arg1: i32) -> (i32, i32) {
    %c0_i32 = arith.constant 0 : i32
    %c0_i32_0 = arith.constant 0 : i32
    return %arg1, %c0_i32 : i32, i32
  }
  func.func @transform_2(%arg0: i32, %arg1: i32) -> (i32, i32) {
    %c0_i32 = arith.constant 0 : i32
    %c0_i32_0 = arith.constant 0 : i32
    return %arg0, %c0_i32 : i32, i32
  }
  func.func @transform_3(%arg0: i32, %arg1: i32) -> (i32, i32) {
    %c0_i32 = arith.constant 0 : i32
    %c0_i32_0 = arith.constant 0 : i32
    return %arg0, %c0_i32 : i32, i32
  }
}

module attributes {stable_mosaic.version = 11 : i64} {
  func.func @_bn_relu_kernel(%arg0: i32, %arg1: memref<32x128xf32, #tpu.memory_space<vmem>>, %arg2: memref<1x128xf32, #tpu.memory_space<vmem>>, %arg3: memref<1x128xf32, #tpu.memory_space<vmem>>, %arg4: memref<32x128xbf16, #tpu.memory_space<vmem>>) attributes {dimension_semantics = [#tpu.dimension_semantics<parallel>], iteration_bounds = array<i64: 1>, scalar_prefetch = 0 : i64, scratch_operands = 0 : i64, tpu.core_type = #tpu.core_type<tc>, window_params = [{transform_indices = @transform_0, window_bounds = array<i64: 32, 128>}, {pipeline_mode = #tpu.pipeline_mode<synchronous>, transform_indices = @transform_1, window_bounds = array<i64: 1, 128>}, {pipeline_mode = #tpu.pipeline_mode<synchronous>, transform_indices = @transform_2, window_bounds = array<i64: 1, 128>}, {transform_indices = @transform_3, window_bounds = array<i64: 32, 128>}]} {
    %c0 = arith.constant 0 : index
    %c0_0 = arith.constant 0 : index
    %0 = vector.load %arg1[%c0, %c0_0] : memref<32x128xf32, #tpu.memory_space<vmem>>, vector<32x128xf32>
    %c0_1 = arith.constant 0 : index
    %c0_2 = arith.constant 0 : index
    %1 = vector.load %arg2[%c0_1, %c0_2] : memref<1x128xf32, #tpu.memory_space<vmem>>, vector<1x128xf32>
    %2 = vector.broadcast %1 : vector<1x128xf32> to vector<32x128xf32>
    %3 = arith.mulf %0, %2 : vector<32x128xf32>
    %c0_3 = arith.constant 0 : index
    %c0_4 = arith.constant 0 : index
    %4 = vector.load %arg3[%c0_3, %c0_4] : memref<1x128xf32, #tpu.memory_space<vmem>>, vector<1x128xf32>
    %5 = vector.broadcast %4 : vector<1x128xf32> to vector<32x128xf32>
    %6 = arith.addf %3, %5 : vector<32x128xf32>
    %cst = arith.constant 0.000000e+00 : f32
    %7 = vector.broadcast %cst : f32 to vector<32x128xf32>
    %8 = arith.maximumf %6, %7 : vector<32x128xf32>
    %9 = arith.truncf %8 : vector<32x128xf32> to vector<32x128xbf16>
    %c0_5 = arith.constant 0 : index
    %c0_6 = arith.constant 0 : index
    %10 = vector.load %arg4[%c0_5, %c0_6] : memref<32x128xbf16, #tpu.memory_space<vmem>>, vector<32x128xbf16>
    tpu.vector_store %arg4[%c0_5, %c0_6], %9 {strides = array<i32>} : memref<32x128xbf16, #tpu.memory_space<vmem>>, vector<32x128xbf16>,
    return
  }
  func.func @transform_0(%arg0: i32) -> (i32, i32) {
    %c0_i32 = arith.constant 0 : i32
    %c0_i32_0 = arith.constant 0 : i32
    return %arg0, %c0_i32 : i32, i32
  }
  func.func @transform_1(%arg0: i32) -> (i32, i32) {
    %c0_i32 = arith.constant 0 : i32
    %c0_i32_0 = arith.constant 0 : i32
    %c0_i32_1 = arith.constant 0 : i32
    return %c0_i32, %c0_i32_0 : i32, i32
  }
  func.func @transform_2(%arg0: i32) -> (i32, i32) {
    %c0_i32 = arith.constant 0 : i32
    %c0_i32_0 = arith.constant 0 : i32
    %c0_i32_1 = arith.constant 0 : i32
    return %c0_i32, %c0_i32_0 : i32, i32
  }
  func.func @transform_3(%arg0: i32) -> (i32, i32) {
    %c0_i32 = arith.constant 0 : i32
    %c0_i32_0 = arith.constant 0 : i32
    return %arg0, %c0_i32 : i32, i32
  }
}

module attributes {stable_mosaic.version = 11 : i64} {
  func.func @_matmul_stats_kernel(%arg0: i32, %arg1: i32, %arg2: memref<32x512xbf16, #tpu.memory_space<vmem>>, %arg3: memref<512x128xbf16, #tpu.memory_space<vmem>>, %arg4: memref<32x128xf32, #tpu.memory_space<vmem>>, %arg5: memref<8x128xf32, #tpu.memory_space<vmem>>, %arg6: memref<32x128xf32, #tpu.memory_space<vmem>>) attributes {dimension_semantics = [#tpu.dimension_semantics<parallel>, #tpu.dimension_semantics<arbitrary>], iteration_bounds = array<i64: 1, 2>, scalar_prefetch = 0 : i64, scratch_operands = 1 : i64, tpu.core_type = #tpu.core_type<tc>, window_params = [{transform_indices = @transform_0, window_bounds = array<i64: 32, 512>}, {transform_indices = @transform_1, window_bounds = array<i64: 512, 128>}, {transform_indices = @transform_2, window_bounds = array<i64: 32, 128>}, {transform_indices = @transform_3, window_bounds = array<i64: 8, 128>}]} {
    %c0_i32 = arith.constant 0 : i32
    %0 = arith.cmpi eq, %arg1, %c0_i32 : i32
    %1 = arith.extui %0 : i1 to i32
    %c0_i32_0 = arith.constant 0 : i32
    %2 = arith.cmpi ne, %1, %c0_i32_0 : i32
    scf.if %2 {
      %cst_9 = arith.constant 0.000000e+00 : f32
      %12 = vector.broadcast %cst_9 : f32 to vector<32x128xf32>
      %c0_10 = arith.constant 0 : index
      %c0_11 = arith.constant 0 : index
      %13 = vector.load %arg6[%c0_10, %c0_11] : memref<32x128xf32, #tpu.memory_space<vmem>>, vector<32x128xf32>
      tpu.vector_store %arg6[%c0_10, %c0_11], %12 {strides = array<i32>} : memref<32x128xf32, #tpu.memory_space<vmem>>, vector<32x128xf32>,
    } else {
    }
    %c0 = arith.constant 0 : index
    %c0_1 = arith.constant 0 : index
    %3 = vector.load %arg6[%c0, %c0_1] : memref<32x128xf32, #tpu.memory_space<vmem>>, vector<32x128xf32>
    %c0_2 = arith.constant 0 : index
    %c0_3 = arith.constant 0 : index
    %4 = vector.load %arg2[%c0_2, %c0_3] : memref<32x512xbf16, #tpu.memory_space<vmem>>, vector<32x512xbf16>
    %c0_4 = arith.constant 0 : index
    %c0_5 = arith.constant 0 : index
    %5 = vector.load %arg3[%c0_4, %c0_5] : memref<512x128xbf16, #tpu.memory_space<vmem>>, vector<512x128xbf16>
    %cst = arith.constant dense<0.000000e+00> : vector<32x128xf32>
    %6 = tpu.matmul %4, %5, %cst {dimension_numbers = #tpu.dot_dimension_numbers<[1], [0], [0], [1], [0, 0, 1, 1], [], []>} : vector<32x512xbf16>, vector<512x128xbf16>, vector<32x128xf32> -> vector<32x128xf32>
    %7 = arith.addf %3, %6 : vector<32x128xf32>
    %c0_6 = arith.constant 0 : index
    %c0_7 = arith.constant 0 : index
    %8 = vector.load %arg6[%c0_6, %c0_7] : memref<32x128xf32, #tpu.memory_space<vmem>>, vector<32x128xf32>
    tpu.vector_store %arg6[%c0_6, %c0_7], %7 {strides = array<i32>} : memref<32x128xf32, #tpu.memory_space<vmem>>, vector<32x128xf32>,
    %c1_i32 = arith.constant 1 : i32
    %9 = arith.cmpi eq, %arg1, %c1_i32 : i32
    %10 = arith.extui %9 : i1 to i32
    %c0_i32_8 = arith.constant 0 : i32
    %11 = arith.cmpi ne, %10, %c0_i32_8 : i32
    scf.if %11 {
      %c0_9 = arith.constant 0 : index
      %c0_10 = arith.constant 0 : index
      %12 = vector.load %arg6[%c0_9, %c0_10] : memref<32x128xf32, #tpu.memory_space<vmem>>, vector<32x128xf32>
      %c0_11 = arith.constant 0 : index
      %c0_12 = arith.constant 0 : index
      %13 = vector.load %arg4[%c0_11, %c0_12] : memref<32x128xf32, #tpu.memory_space<vmem>>, vector<32x128xf32>
      tpu.vector_store %arg4[%c0_11, %c0_12], %12 {strides = array<i32>} : memref<32x128xf32, #tpu.memory_space<vmem>>, vector<32x128xf32>,
      %cst_13 = arith.constant dense<0.000000e+00> : vector<128xf32>
      %14 = vector.multi_reduction <add>, %12, %cst_13 [0] : vector<32x128xf32> to vector<128xf32>
      %15 = vector.shape_cast %14 : vector<128xf32> to vector<1x128xf32>
      %c0_14 = arith.constant 0 : index
      %c0_15 = arith.constant 0 : index
      %16 = vector.load %arg5[%c0_14, %c0_15] : memref<8x128xf32, #tpu.memory_space<vmem>>, vector<1x128xf32>
      tpu.vector_store %arg5[%c0_14, %c0_15], %15 {strides = array<i32>} : memref<8x128xf32, #tpu.memory_space<vmem>>, vector<1x128xf32>,
      %17 = arith.mulf %12, %12 : vector<32x128xf32>
      %cst_16 = arith.constant dense<0.000000e+00> : vector<128xf32>
      %18 = vector.multi_reduction <add>, %17, %cst_16 [0] : vector<32x128xf32> to vector<128xf32>
      %19 = vector.shape_cast %18 : vector<128xf32> to vector<1x128xf32>
      %c1 = arith.constant 1 : index
      %c0_17 = arith.constant 0 : index
      %20 = vector.load %arg5[%c1, %c0_17] : memref<8x128xf32, #tpu.memory_space<vmem>>, vector<1x128xf32>
      tpu.vector_store %arg5[%c1, %c0_17], %19 {strides = array<i32>} : memref<8x128xf32, #tpu.memory_space<vmem>>, vector<1x128xf32>,
    } else {
    }
    return
  }
  func.func @transform_0(%arg0: i32, %arg1: i32) -> (i32, i32) {
    %c0_i32 = arith.constant 0 : i32
    return %arg0, %arg1 : i32, i32
  }
  func.func @transform_1(%arg0: i32, %arg1: i32) -> (i32, i32) {
    %c0_i32 = arith.constant 0 : i32
    %c0_i32_0 = arith.constant 0 : i32
    return %arg1, %c0_i32 : i32, i32
  }
  func.func @transform_2(%arg0: i32, %arg1: i32) -> (i32, i32) {
    %c0_i32 = arith.constant 0 : i32
    %c0_i32_0 = arith.constant 0 : i32
    return %arg0, %c0_i32 : i32, i32
  }
  func.func @transform_3(%arg0: i32, %arg1: i32) -> (i32, i32) {
    %c0_i32 = arith.constant 0 : i32
    %c0_i32_0 = arith.constant 0 : i32
    return %arg0, %c0_i32 : i32, i32
  }
}

module attributes {stable_mosaic.version = 11 : i64} {
  func.func @_fc_heads_kernel(%arg0: i32, %arg1: memref<2x512xbf16, #tpu.memory_space<vmem>>, %arg2: memref<512x1024xbf16, #tpu.memory_space<vmem>>, %arg3: memref<1x1024xf32, #tpu.memory_space<vmem>>, %arg4: memref<1x1024xf32, #tpu.memory_space<vmem>>, %arg5: memref<1024x384xbf16, #tpu.memory_space<vmem>>, %arg6: memref<1x384xf32, #tpu.memory_space<vmem>>, %arg7: memref<2x128xf32, #tpu.memory_space<vmem>>, %arg8: memref<2x128xf32, #tpu.memory_space<vmem>>, %arg9: memref<2x128xf32, #tpu.memory_space<vmem>>, %arg10: memref<2x128xf32, #tpu.memory_space<vmem>>, %arg11: memref<2x128xf32, #tpu.memory_space<vmem>>, %arg12: memref<2x1024xf32, #tpu.memory_space<vmem>>) attributes {dimension_semantics = [#tpu.dimension_semantics<arbitrary>], iteration_bounds = array<i64: 4>, scalar_prefetch = 0 : i64, scratch_operands = 1 : i64, tpu.core_type = #tpu.core_type<tc>, window_params = [{transform_indices = @transform_0, window_bounds = array<i64: 2, 512>}, {transform_indices = @transform_1, window_bounds = array<i64: 512, 1024>}, {pipeline_mode = #tpu.pipeline_mode<synchronous>, transform_indices = @transform_2, window_bounds = array<i64: 1, 1024>}, {pipeline_mode = #tpu.pipeline_mode<synchronous>, transform_indices = @transform_3, window_bounds = array<i64: 1, 1024>}, {pipeline_mode = #tpu.pipeline_mode<synchronous>, transform_indices = @transform_4, window_bounds = array<i64: 1024, 384>}, {pipeline_mode = #tpu.pipeline_mode<synchronous>, transform_indices = @transform_5, window_bounds = array<i64: 1, 384>}, {pipeline_mode = #tpu.pipeline_mode<synchronous>, transform_indices = @transform_6, window_bounds = array<i64: 2, 128>}, {pipeline_mode = #tpu.pipeline_mode<synchronous>, transform_indices = @transform_7, window_bounds = array<i64: 2, 128>}, {pipeline_mode = #tpu.pipeline_mode<synchronous>, transform_indices = @transform_8, window_bounds = array<i64: 2, 128>}, {pipeline_mode = #tpu.pipeline_mode<synchronous>, transform_indices = @transform_9, window_bounds = array<i64: 2, 128>}, {pipeline_mode = #tpu.pipeline_mode<synchronous>, transform_indices = @transform_10, window_bounds = array<i64: 2, 128>}]} {
    %c0_i32 = arith.constant 0 : i32
    %0 = arith.cmpi eq, %arg0, %c0_i32 : i32
    %1 = arith.extui %0 : i1 to i32
    %c0_i32_0 = arith.constant 0 : i32
    %2 = arith.cmpi ne, %1, %c0_i32_0 : i32
    scf.if %2 {
      %cst_9 = arith.constant 0.000000e+00 : f32
      %12 = vector.broadcast %cst_9 : f32 to vector<2x1024xf32>
      %c0_10 = arith.constant 0 : index
      %c0_11 = arith.constant 0 : index
      %13 = vector.load %arg12[%c0_10, %c0_11] : memref<2x1024xf32, #tpu.memory_space<vmem>>, vector<2x1024xf32>
      tpu.vector_store %arg12[%c0_10, %c0_11], %12 {strides = array<i32>} : memref<2x1024xf32, #tpu.memory_space<vmem>>, vector<2x1024xf32>,
    } else {
    }
    %c0 = arith.constant 0 : index
    %c0_1 = arith.constant 0 : index
    %3 = vector.load %arg12[%c0, %c0_1] : memref<2x1024xf32, #tpu.memory_space<vmem>>, vector<2x1024xf32>
    %c0_2 = arith.constant 0 : index
    %c0_3 = arith.constant 0 : index
    %4 = vector.load %arg1[%c0_2, %c0_3] : memref<2x512xbf16, #tpu.memory_space<vmem>>, vector<2x512xbf16>
    %c0_4 = arith.constant 0 : index
    %c0_5 = arith.constant 0 : index
    %5 = vector.load %arg2[%c0_4, %c0_5] : memref<512x1024xbf16, #tpu.memory_space<vmem>>, vector<512x1024xbf16>
    %cst = arith.constant dense<0.000000e+00> : vector<2x1024xf32>
    %6 = tpu.matmul %4, %5, %cst {dimension_numbers = #tpu.dot_dimension_numbers<[1], [0], [0], [1], [0, 0, 1, 1], [], []>} : vector<2x512xbf16>, vector<512x1024xbf16>, vector<2x1024xf32> -> vector<2x1024xf32>
    %7 = arith.addf %3, %6 : vector<2x1024xf32>
    %c0_6 = arith.constant 0 : index
    %c0_7 = arith.constant 0 : index
    %8 = vector.load %arg12[%c0_6, %c0_7] : memref<2x1024xf32, #tpu.memory_space<vmem>>, vector<2x1024xf32>
    tpu.vector_store %arg12[%c0_6, %c0_7], %7 {strides = array<i32>} : memref<2x1024xf32, #tpu.memory_space<vmem>>, vector<2x1024xf32>,
    %c3_i32 = arith.constant 3 : i32
    %9 = arith.cmpi eq, %arg0, %c3_i32 : i32
    %10 = arith.extui %9 : i1 to i32
    %c0_i32_8 = arith.constant 0 : i32
    %11 = arith.cmpi ne, %10, %c0_i32_8 : i32
    scf.if %11 {
      %c0_9 = arith.constant 0 : index
      %c0_10 = arith.constant 0 : index
      %12 = vector.load %arg12[%c0_9, %c0_10] : memref<2x1024xf32, #tpu.memory_space<vmem>>, vector<2x1024xf32>
      %cst_11 = arith.constant dense<0.000000e+00> : vector<1024xf32>
      %13 = vector.multi_reduction <add>, %12, %cst_11 [0] : vector<2x1024xf32> to vector<1024xf32>
      %14 = vector.shape_cast %13 : vector<1024xf32> to vector<1x1024xf32>
      %cst_12 = arith.constant 2.000000e+00 : f32
      %15 = vector.broadcast %cst_12 : f32 to vector<1x1024xf32>
      %16 = arith.divf %14, %15 : vector<1x1024xf32>
      %17 = vector.broadcast %16 : vector<1x1024xf32> to vector<2x1024xf32>
      %18 = arith.subf %12, %17 : vector<2x1024xf32>
      %19 = arith.mulf %18, %18 : vector<2x1024xf32>
      %cst_13 = arith.constant dense<0.000000e+00> : vector<1024xf32>
      %20 = vector.multi_reduction <add>, %19, %cst_13 [0] : vector<2x1024xf32> to vector<1024xf32>
      %21 = vector.shape_cast %20 : vector<1024xf32> to vector<1x1024xf32>
      %cst_14 = arith.constant 2.000000e+00 : f32
      %22 = vector.broadcast %cst_14 : f32 to vector<1x1024xf32>
      %23 = arith.divf %21, %22 : vector<1x1024xf32>
      %24 = vector.broadcast %16 : vector<1x1024xf32> to vector<2x1024xf32>
      %25 = arith.subf %12, %24 : vector<2x1024xf32>
      %cst_15 = arith.constant 9.99999974E-6 : f32
      %26 = vector.broadcast %cst_15 : f32 to vector<1x1024xf32>
      %27 = arith.addf %23, %26 : vector<1x1024xf32>
      %28 = math.rsqrt %27 : vector<1x1024xf32>
      %29 = vector.broadcast %28 : vector<1x1024xf32> to vector<2x1024xf32>
      %30 = arith.mulf %25, %29 : vector<2x1024xf32>
      %c0_16 = arith.constant 0 : index
      %c0_17 = arith.constant 0 : index
      %31 = vector.load %arg3[%c0_16, %c0_17] : memref<1x1024xf32, #tpu.memory_space<vmem>>, vector<1x1024xf32>
      %32 = vector.broadcast %31 : vector<1x1024xf32> to vector<2x1024xf32>
      %33 = arith.mulf %30, %32 : vector<2x1024xf32>
      %c0_18 = arith.constant 0 : index
      %c0_19 = arith.constant 0 : index
      %34 = vector.load %arg4[%c0_18, %c0_19] : memref<1x1024xf32, #tpu.memory_space<vmem>>, vector<1x1024xf32>
      %35 = vector.broadcast %34 : vector<1x1024xf32> to vector<2x1024xf32>
      %36 = arith.addf %33, %35 : vector<2x1024xf32>
      %cst_20 = arith.constant 0.000000e+00 : f32
      %37 = vector.broadcast %cst_20 : f32 to vector<2x1024xf32>
      %38 = arith.maximumf %36, %37 : vector<2x1024xf32>
      %39 = arith.truncf %38 : vector<2x1024xf32> to vector<2x1024xbf16>
      %c0_21 = arith.constant 0 : index
      %c0_22 = arith.constant 0 : index
      %40 = vector.load %arg5[%c0_21, %c0_22] : memref<1024x384xbf16, #tpu.memory_space<vmem>>, vector<1024x384xbf16>
      %cst_23 = arith.constant dense<0.000000e+00> : vector<2x384xf32>
      %41 = tpu.matmul %39, %40, %cst_23 {dimension_numbers = #tpu.dot_dimension_numbers<[1], [0], [0], [1], [0, 0, 1, 1], [], []>} : vector<2x1024xbf16>, vector<1024x384xbf16>, vector<2x384xf32> -> vector<2x384xf32>
      %c0_24 = arith.constant 0 : index
      %c0_25 = arith.constant 0 : index
      %42 = vector.load %arg6[%c0_24, %c0_25] : memref<1x384xf32, #tpu.memory_space<vmem>>, vector<1x384xf32>
      %43 = vector.broadcast %42 : vector<1x384xf32> to vector<2x384xf32>
      %44 = arith.addf %41, %43 : vector<2x384xf32>
      %45 = vector.extract_strided_slice %44 {offsets = [0, 0], sizes = [2, 128], strides = [1, 1]} : vector<2x384xf32> to vector<2x128xf32>
      %46 = vector.extract_strided_slice %44 {offsets = [0, 128], sizes = [2, 128], strides = [1, 1]} : vector<2x384xf32> to vector<2x128xf32>
      %47 = vector.extract_strided_slice %44 {offsets = [0, 256], sizes = [2, 128], strides = [1, 1]} : vector<2x384xf32> to vector<2x128xf32>
      %48 = math.exp %47 : vector<2x128xf32>
      %cst_26 = arith.constant 9.000000e+00 : f32
      %49 = vector.broadcast %cst_26 : f32 to vector<2x128xf32>
      %50 = arith.addf %48, %49 : vector<2x128xf32>
      %cst_27 = arith.constant 5.000000e-01 : f32
      %51 = vector.broadcast %cst_27 : f32 to vector<2x128xf32>
      %52 = arith.mulf %46, %51 : vector<2x128xf32>
      %53 = math.exp %52 : vector<2x128xf32>
      %c0_28 = arith.constant 0 : index
      %c0_29 = arith.constant 0 : index
      %54 = vector.load %arg8[%c0_28, %c0_29] : memref<2x128xf32, #tpu.memory_space<vmem>>, vector<2x128xf32>
      %cst_30 = arith.constant 2.000000e+00 : f32
      %55 = vector.broadcast %cst_30 : f32 to vector<2x128xf32>
      %56 = arith.divf %50, %55 : vector<2x128xf32>
      %cst_31 = arith.constant 0.333333343 : f32
      %57 = vector.broadcast %cst_31 : f32 to vector<2x128xf32>
      %58 = arith.subf %56, %57 : vector<2x128xf32>
      %cst_32 = arith.constant 9.000000e+00 : f32
      %59 = vector.broadcast %cst_32 : f32 to vector<2x128xf32>
      %60 = arith.mulf %59, %50 : vector<2x128xf32>
      %cst_33 = arith.constant 2.000000e+00 : f32
      %61 = vector.broadcast %cst_33 : f32 to vector<2x128xf32>
      %62 = arith.divf %60, %61 : vector<2x128xf32>
      %cst_34 = arith.constant 3.000000e+00 : f32
      %63 = vector.broadcast %cst_34 : f32 to vector<2x128xf32>
      %64 = arith.subf %62, %63 : vector<2x128xf32>
      %65 = math.sqrt %64 : vector<2x128xf32>
      %66 = arith.divf %54, %65 : vector<2x128xf32>
      %cst_35 = arith.constant 1.000000e+00 : f32
      %67 = vector.broadcast %cst_35 : f32 to vector<2x128xf32>
      %68 = arith.addf %67, %66 : vector<2x128xf32>
      %69 = arith.mulf %68, %68 : vector<2x128xf32>
      %70 = arith.mulf %68, %69 : vector<2x128xf32>
      %71 = arith.mulf %58, %70 : vector<2x128xf32>
      %cst_36 = arith.constant 2.000000e+00 : f32
      %72 = vector.broadcast %cst_36 : f32 to vector<2x128xf32>
      %73 = arith.mulf %72, %71 : vector<2x128xf32>
      %74 = arith.divf %50, %73 : vector<2x128xf32>
      %75 = math.sqrt %74 : vector<2x128xf32>
      %76 = arith.mulf %53, %75 : vector<2x128xf32>
      %c0_37 = arith.constant 0 : index
      %c0_38 = arith.constant 0 : index
      %77 = vector.load %arg7[%c0_37, %c0_38] : memref<2x128xf32, #tpu.memory_space<vmem>>, vector<2x128xf32>
      %78 = arith.mulf %76, %77 : vector<2x128xf32>
      %79 = arith.addf %45, %78 : vector<2x128xf32>
      %c0_39 = arith.constant 0 : index
      %c0_40 = arith.constant 0 : index
      %80 = vector.load %arg9[%c0_39, %c0_40] : memref<2x128xf32, #tpu.memory_space<vmem>>, vector<2x128xf32>
      tpu.vector_store %arg9[%c0_39, %c0_40], %79 {strides = array<i32>} : memref<2x128xf32, #tpu.memory_space<vmem>>, vector<2x128xf32>,
      %c0_41 = arith.constant 0 : index
      %c0_42 = arith.constant 0 : index
      %81 = vector.load %arg10[%c0_41, %c0_42] : memref<2x128xf32, #tpu.memory_space<vmem>>, vector<2x128xf32>
      tpu.vector_store %arg10[%c0_41, %c0_42], %45 {strides = array<i32>} : memref<2x128xf32, #tpu.memory_space<vmem>>, vector<2x128xf32>,
      %82 = math.log %71 : vector<2x128xf32>
      %83 = arith.subf %46, %82 : vector<2x128xf32>
      %c0_43 = arith.constant 0 : index
      %c0_44 = arith.constant 0 : index
      %84 = vector.load %arg11[%c0_43, %c0_44] : memref<2x128xf32, #tpu.memory_space<vmem>>, vector<2x128xf32>
      tpu.vector_store %arg11[%c0_43, %c0_44], %83 {strides = array<i32>} : memref<2x128xf32, #tpu.memory_space<vmem>>, vector<2x128xf32>,
    } else {
    }
    return
  }
  func.func @transform_0(%arg0: i32) -> (i32, i32) {
    %c0_i32 = arith.constant 0 : i32
    %c0_i32_0 = arith.constant 0 : i32
    return %c0_i32, %arg0 : i32, i32
  }
  func.func @transform_1(%arg0: i32) -> (i32, i32) {
    %c0_i32 = arith.constant 0 : i32
    %c0_i32_0 = arith.constant 0 : i32
    return %arg0, %c0_i32 : i32, i32
  }
  func.func @transform_2(%arg0: i32) -> (i32, i32) {
    %c0_i32 = arith.constant 0 : i32
    %c0_i32_0 = arith.constant 0 : i32
    %c0_i32_1 = arith.constant 0 : i32
    return %c0_i32, %c0_i32_0 : i32, i32
  }
  func.func @transform_3(%arg0: i32) -> (i32, i32) {
    %c0_i32 = arith.constant 0 : i32
    %c0_i32_0 = arith.constant 0 : i32
    %c0_i32_1 = arith.constant 0 : i32
    return %c0_i32, %c0_i32_0 : i32, i32
  }
  func.func @transform_4(%arg0: i32) -> (i32, i32) {
    %c0_i32 = arith.constant 0 : i32
    %c0_i32_0 = arith.constant 0 : i32
    %c0_i32_1 = arith.constant 0 : i32
    return %c0_i32, %c0_i32_0 : i32, i32
  }
  func.func @transform_5(%arg0: i32) -> (i32, i32) {
    %c0_i32 = arith.constant 0 : i32
    %c0_i32_0 = arith.constant 0 : i32
    %c0_i32_1 = arith.constant 0 : i32
    return %c0_i32, %c0_i32_0 : i32, i32
  }
  func.func @transform_6(%arg0: i32) -> (i32, i32) {
    %c0_i32 = arith.constant 0 : i32
    %c0_i32_0 = arith.constant 0 : i32
    %c0_i32_1 = arith.constant 0 : i32
    return %c0_i32, %c0_i32_0 : i32, i32
  }
  func.func @transform_7(%arg0: i32) -> (i32, i32) {
    %c0_i32 = arith.constant 0 : i32
    %c0_i32_0 = arith.constant 0 : i32
    %c0_i32_1 = arith.constant 0 : i32
    return %c0_i32, %c0_i32_0 : i32, i32
  }
  func.func @transform_8(%arg0: i32) -> (i32, i32) {
    %c0_i32 = arith.constant 0 : i32
    %c0_i32_0 = arith.constant 0 : i32
    %c0_i32_1 = arith.constant 0 : i32
    return %c0_i32, %c0_i32_0 : i32, i32
  }
  func.func @transform_9(%arg0: i32) -> (i32, i32) {
    %c0_i32 = arith.constant 0 : i32
    %c0_i32_0 = arith.constant 0 : i32
    %c0_i32_1 = arith.constant 0 : i32
    return %c0_i32, %c0_i32_0 : i32, i32
  }
  func.func @transform_10(%arg0: i32) -> (i32, i32) {
    %c0_i32 = arith.constant 0 : i32
    %c0_i32_0 = arith.constant 0 : i32
    %c0_i32_1 = arith.constant 0 : i32
    return %c0_i32, %c0_i32_0 : i32, i32
  }
}

</mosaic_0001>

<llo_original>
// kernel: encoder_forward.8
$region0: #{encoder_forward.8}
  #allocation0 [shape = 'u32[]', space=smem, size = 0x4, offset = 0x4, fixed_abs, tag = 'smem constant byte address 0x4 - core index']
  #allocation1 [shape = 'u32[144,128]{1,0:T(1,128)}', space=vmem, size = 0x12000, scoped, tag = 'internal scratch']
  %s0 = inlined_call_operand.vmem [shape: f32[128,128], index: 0, kind: input, shape index: {}]
  %s1 = inlined_call_operand.vmem [shape: f32[1,128], index: 1, kind: input, shape index: {}]
  %s2 = inlined_call_operand.vmem [shape: f32[1,128], index: 2, kind: input, shape index: {}]
  %s3 = inlined_call_operand.vmem [shape: bf16[128,128], index: 3, kind: output, shape index: {}]
  %s4 = sld [smem:[#allocation0]]
  $region22: #{encoder_forward.8} parent=0
    _
  %s6 = ssub.s32 1, %s4
  %s7 = scalar_select 0, %s6, %s4
  // Predicated region
  $region2: #{encoder_forward.8} parent=0 // pred_check
    _
  $region3: #{encoder_forward.8} parent=0 // pred_check_branch
    %9 = sbr.rel (0) target = $region5
  $region4: #{encoder_forward.8} parent=0 // pred_region
    _
  $region5: #{encoder_forward.8} parent=0 // pred_fallthru
    _
  // Predicated region
  $region6: #{encoder_forward.8} parent=0 // pred_check
    _
  $region7: #{encoder_forward.8} parent=0 // pred_check_branch
    %11 = sbr.rel (0) target = $region9
  $region8: #{encoder_forward.8} parent=0 // pred_region
    _
  $region9: #{encoder_forward.8} parent=0 // pred_fallthru
    _
  // Predicated region
  $region10: #{encoder_forward.8} parent=0 // pred_check
    _
  $region11: #{encoder_forward.8} parent=0 // pred_check_branch
    %13 = sbr.rel (0) target = $region13
  $region12: #{encoder_forward.8} parent=0 // pred_region
    _
  $region13: #{encoder_forward.8} parent=0 // pred_fallthru
    _
  %v14 = vld [vmem:[%s0] sm:$0xff]
  %v15 = vld [vmem:[%s0 + $0x8] sm:$0xff]
  %v16 = vld [vmem:[%s0 + $0x10] sm:$0xff]
  %v17 = vld [vmem:[%s0 + $0x18] sm:$0xff]
  %v18 = vld [vmem:[%s0 + $0x20] sm:$0xff]
  %v19 = vld [vmem:[%s0 + $0x28] sm:$0xff]
  %v20 = vld [vmem:[%s0 + $0x30] sm:$0xff]
  %v21 = vld [vmem:[%s0 + $0x38] sm:$0xff]
  %v22 = vld [vmem:[%s0 + $0x40] sm:$0xff]
  %v23 = vld [vmem:[%s0 + $0x48] sm:$0xff]
  %v24 = vld [vmem:[%s0 + $0x50] sm:$0xff]
  %v25 = vld [vmem:[%s0 + $0x58] sm:$0xff]
  %v26 = vld [vmem:[%s0 + $0x60] sm:$0xff]
  %v27 = vld [vmem:[%s0 + $0x68] sm:$0xff]
  %v28 = vld [vmem:[%s0 + $0x70] sm:$0xff]
  %v29 = vld [vmem:[%s0 + $0x78] sm:$0xff]
  %v30 = vld [vmem:[%s1] sm:$0x1]
  %v32 = vlaneseq
  %v33 = vshrl.u32 %v32, 7
  %v34 = vsub.s32 0, %v33
  %v35 = vrot.slane %v30, %v34
  %v37 = vmul.f32 %v14, %v35
  %v38 = vmul.f32 %v15, %v35
  %v39 = vmul.f32 %v16, %v35
  %v40 = vmul.f32 %v17, %v35
  %v41 = vmul.f32 %v18, %v35
  %v42 = vmul.f32 %v19, %v35
  %v43 = vmul.f32 %v20, %v35
  %v44 = vmul.f32 %v21, %v35
  %v45 = vmul.f32 %v22, %v35
  %v46 = vmul.f32 %v23, %v35
  %v47 = vmul.f32 %v24, %v35
  %v48 = vmul.f32 %v25, %v35
  %v49 = vmul.f32 %v26, %v35
  %v50 = vmul.f32 %v27, %v35
  %v51 = vmul.f32 %v28, %v35
  %v52 = vmul.f32 %v29, %v35
  %v53 = vld [vmem:[%s2] sm:$0x1]
  %v55 = vlaneseq
  %v56 = vshrl.u32 %v55, 7
  %v57 = vsub.s32 0, %v56
  %v58 = vrot.slane %v53, %v57
  %v60 = vadd.f32 %v37, %v58
  %v61 = vadd.f32 %v38, %v58
  %v62 = vadd.f32 %v39, %v58
  %v63 = vadd.f32 %v40, %v58
  %v64 = vadd.f32 %v41, %v58
  %v65 = vadd.f32 %v42, %v58
  %v66 = vadd.f32 %v43, %v58
  %v67 = vadd.f32 %v44, %v58
  %v68 = vadd.f32 %v45, %v58
  %v69 = vadd.f32 %v46, %v58
  %v70 = vadd.f32 %v47, %v58
  %v71 = vadd.f32 %v48, %v58
  %v72 = vadd.f32 %v49, %v58
  %v73 = vadd.f32 %v50, %v58
  %v74 = vadd.f32 %v51, %v58
  %v75 = vadd.f32 %v52, %v58
  %v76 = vmax.f32 %v60, 0.0
  %v77 = vmax.f32 %v61, 0.0
  %v78 = vmax.f32 %v62, 0.0
  %v79 = vmax.f32 %v63, 0.0
  %v80 = vmax.f32 %v64, 0.0
  %v81 = vmax.f32 %v65, 0.0
  %v82 = vmax.f32 %v66, 0.0
  %v83 = vmax.f32 %v67, 0.0
  %v84 = vmax.f32 %v68, 0.0
  %v85 = vmax.f32 %v69, 0.0
  %v86 = vmax.f32 %v70, 0.0
  %v87 = vmax.f32 %v71, 0.0
  %v88 = vmax.f32 %v72, 0.0
  %v89 = vmax.f32 %v73, 0.0
  %v90 = vmax.f32 %v74, 0.0
  %v91 = vmax.f32 %v75, 0.0
  %v92 = vpack.c.bf16 %v77, %v76
  %v93 = vpack.c.bf16 %v79, %v78
  %v94 = vpack.c.bf16 %v81, %v80
  %v95 = vpack.c.bf16 %v83, %v82
  %v96 = vpack.c.bf16 %v85, %v84
  %v97 = vpack.c.bf16 %v87, %v86
  %v98 = vpack.c.bf16 %v89, %v88
  %v99 = vpack.c.bf16 %v91, %v90
  %v108 = vunpack.c.l.b16 %v92
  %v109 = vunpack.c.h.b16 %v92
  %v110 = vunpack.c.l.b16 %v93
  %v111 = vunpack.c.h.b16 %v93
  %v112 = vunpack.c.l.b16 %v94
  %v113 = vunpack.c.h.b16 %v94
  %v114 = vunpack.c.l.b16 %v95
  %v115 = vunpack.c.h.b16 %v95
  %v116 = vunpack.c.l.b16 %v96
  %v117 = vunpack.c.h.b16 %v96
  %v118 = vunpack.c.l.b16 %v97
  %v119 = vunpack.c.h.b16 %v97
  %v120 = vunpack.c.l.b16 %v98
  %v121 = vunpack.c.h.b16 %v98
  %v122 = vunpack.c.l.b16 %v99
  %v123 = vunpack.c.h.b16 %v99
  %v124 = vpack.c.b16 %v108, %v108
  %v125 = vpack.c.b16 %v109, %v109
  %v126 = vpack.c.b16 %v110, %v110
  %v127 = vpack.c.b16 %v111, %v111
  %v128 = vpack.c.b16 %v112, %v112
  %v129 = vpack.c.b16 %v113, %v113
  %v130 = vpack.c.b16 %v114, %v114
  %v131 = vpack.c.b16 %v115, %v115
  %v132 = vpack.c.b16 %v116, %v116
  %v133 = vpack.c.b16 %v117, %v117
  %v134 = vpack.c.b16 %v118, %v118
  %v135 = vpack.c.b16 %v119, %v119
  %v136 = vpack.c.b16 %v120, %v120
  %v137 = vpack.c.b16 %v121, %v121
  %v138 = vpack.c.b16 %v122, %v122
  %v139 = vpack.c.b16 %v123, %v123
  %156 = vst [vmem:[%s3] sm:$0xf] %v124
  %157 = vst [vmem:[%s3 + $0x4] sm:$0xf] %v125
  %158 = vst [vmem:[%s3 + $0x8] sm:$0xf] %v126
  %159 = vst [vmem:[%s3 + $0xc] sm:$0xf] %v127
  %160 = vst [vmem:[%s3 + $0x10] sm:$0xf] %v128
  %161 = vst [vmem:[%s3 + $0x14] sm:$0xf] %v129
  %162 = vst [vmem:[%s3 + $0x18] sm:$0xf] %v130
  %163 = vst [vmem:[%s3 + $0x1c] sm:$0xf] %v131
  %164 = vst [vmem:[%s3 + $0x20] sm:$0xf] %v132
  %165 = vst [vmem:[%s3 + $0x24] sm:$0xf] %v133
  %166 = vst [vmem:[%s3 + $0x28] sm:$0xf] %v134
  %167 = vst [vmem:[%s3 + $0x2c] sm:$0xf] %v135
  %168 = vst [vmem:[%s3 + $0x30] sm:$0xf] %v136
  %169 = vst [vmem:[%s3 + $0x34] sm:$0xf] %v137
  %170 = vst [vmem:[%s3 + $0x38] sm:$0xf] %v138
  %171 = vst [vmem:[%s3 + $0x3c] sm:$0xf] %v139
  // Predicated region
  $region14: #{encoder_forward.8} parent=0 // pred_check
    _
  $region15: #{encoder_forward.8} parent=0 // pred_check_branch
    %173 = sbr.rel (0) target = $region17
  $region16: #{encoder_forward.8} parent=0 // pred_region
    _
  $region17: #{encoder_forward.8} parent=0 // pred_fallthru
    _
  // Predicated region
  $region18: #{encoder_forward.8} parent=0 // pred_check
    _
  $region19: #{encoder_forward.8} parent=0 // pred_check_branch
    %175 = sbr.rel (0) target = $region21
  $region20: #{encoder_forward.8} parent=0 // pred_region
    _
  $region21: #{encoder_forward.8} parent=0 // pred_fallthru
    _

// kernel: encoder_forward.7
$region0: #{encoder_forward.7}
  #allocation0 [shape = 'u32[]', space=smem, size = 0x4, offset = 0x4, fixed_abs, tag = 'smem constant byte address 0x4 - core index']
  #allocation1 [shape = 'u32[144,128]{1,0:T(1,128)}', space=vmem, size = 0x12000, scoped, tag = 'internal scratch']
  #allocation2 [shape = 'f32[128,128]{1,0:T(8,128)}', space=vmem, size = 0x10000, scoped, tag = 'scratch operand']
  %s0 = inlined_call_operand.vmem [shape: bf16[128,16], index: 0, kind: input, shape index: {}]
  %s1 = inlined_call_operand.hbm [shape: bf16[16,128], index: 1, kind: input, shape index: {}]
  %s2 = inlined_call_operand.vmem [shape: f32[128,128], index: 2, kind: output, shape index: {0}]
  %s3 = inlined_call_operand.vmem [shape: f32[8,128], index: 3, kind: output, shape index: {1}]
  %4 = xla_tuple %s2, %s3
  %s5 = sld [smem:[#allocation0]]
  $region38: #{encoder_forward.7} parent=0
    _
  %s7 = ssub.s32 1, %s5
  %s8 = scalar_select 0, %s7, %s5
  $region1: #{encoder_forward.7} parent=0
    #allocation3 [shape = 'u8[4096]{0}', space=vmem, size = 0x1000, scoped, tag = 'input window, operand 1, single buffered']
    #allocation4 [shape = 's32[1]{0}', space=sflag, size = 0x4, scoped, tag = 'scoped memory for encoder_forward.7']
    %9 = vsyncpa [#allocation4], 0
    // Predicated region
    $region2: #{encoder_forward.7} parent=1 // pred_check
      _
    $region3: #{encoder_forward.7} parent=1 // pred_check_branch
      %11 = sbr.rel (0) target = $region5
    $region4: #{encoder_forward.7} parent=1 // pred_region
      _
    $region5: #{encoder_forward.7} parent=1 // pred_fallthru
      _
    // Predicated region
    $region6: #{encoder_forward.7} parent=1 // pred_check
      _
    $region7: #{encoder_forward.7} parent=1 // pred_check_branch
      %13 = sbr.rel (0) target = $region9
    $region8: #{encoder_forward.7} parent=1 // pred_region
      %s15 = ssub.s32 128, 128
      %16 = vsyncadd [#allocation4], %s15
      %s17 = sshll.u32 [#allocation3], 4
      %s18 = int_to_ptr.vmem [resolvable:$true] %s17
      %23 = dma.hbm_to_vmem [thread:$0]  %s1, 128, %s18, [#allocation4], 64, 64, 4
    $region9: #{encoder_forward.7} parent=1 // pred_fallthru
      _
    // Predicated region
    $region10: #{encoder_forward.7} parent=1 // pred_check
      _
    $region11: #{encoder_forward.7} parent=1 // pred_check_branch
      %25 = sbr.rel (0) target = $region13
    $region12: #{encoder_forward.7} parent=1 // pred_region
      %26 = dma.done [#allocation4], 128
    $region13: #{encoder_forward.7} parent=1 // pred_fallthru
      _
    %p28 = scmp.eq.s32.totalorder 0, 0
    // Predicated region
    $region14: #{encoder_forward.7} parent=1 // pred_check
      %p29 = pneg %p28
    $region15: #{encoder_forward.7} parent=1 // pred_check_branch
      %31 = sbr.rel (%p29) target = $region17
    $region16: #{encoder_forward.7} parent=1 // pred_region
      %32 = vst [vmem:[#allocation2] sm:$0xff] 0.0
      %33 = vst [vmem:[#allocation2 + $0x8] sm:$0xff] 0.0
      %34 = vst [vmem:[#allocation2 + $0x10] sm:$0xff] 0.0
      %35 = vst [vmem:[#allocation2 + $0x18] sm:$0xff] 0.0
      %36 = vst [vmem:[#allocation2 + $0x20] sm:$0xff] 0.0
      %37 = vst [vmem:[#allocation2 + $0x28] sm:$0xff] 0.0
      %38 = vst [vmem:[#allocation2 + $0x30] sm:$0xff] 0.0
      %39 = vst [vmem:[#allocation2 + $0x38] sm:$0xff] 0.0
      %40 = vst [vmem:[#allocation2 + $0x40] sm:$0xff] 0.0
      %41 = vst [vmem:[#allocation2 + $0x48] sm:$0xff] 0.0
      %42 = vst [vmem:[#allocation2 + $0x50] sm:$0xff] 0.0
      %43 = vst [vmem:[#allocation2 + $0x58] sm:$0xff] 0.0
      %44 = vst [vmem:[#allocation2 + $0x60] sm:$0xff] 0.0
      %45 = vst [vmem:[#allocation2 + $0x68] sm:$0xff] 0.0
      %46 = vst [vmem:[#allocation2 + $0x70] sm:$0xff] 0.0
      %47 = vst [vmem:[#allocation2 + $0x78] sm:$0xff] 0.0
    $region17: #{encoder_forward.7} parent=1 // pred_fallthru
      _
    %v48 = vld [vmem:[#allocation2] sm:$0xff]
    %v49 = vld [vmem:[#allocation2 + $0x8] sm:$0xff]
    %v50 = vld [vmem:[#allocation2 + $0x10] sm:$0xff]
    %v51 = vld [vmem:[#allocation2 + $0x18] sm:$0xff]
    %v52 = vld [vmem:[#allocation2 + $0x20] sm:$0xff]
    %v53 = vld [vmem:[#allocation2 + $0x28] sm:$0xff]
    %v54 = vld [vmem:[#allocation2 + $0x30] sm:$0xff]
    %v55 = vld [vmem:[#allocation2 + $0x38] sm:$0xff]
    %v56 = vld [vmem:[#allocation2 + $0x40] sm:$0xff]
    %v57 = vld [vmem:[#allocation2 + $0x48] sm:$0xff]
    %v58 = vld [vmem:[#allocation2 + $0x50] sm:$0xff]
    %v59 = vld [vmem:[#allocation2 + $0x58] sm:$0xff]
    %v60 = vld [vmem:[#allocation2 + $0x60] sm:$0xff]
    %v61 = vld [vmem:[#allocation2 + $0x68] sm:$0xff]
    %v62 = vld [vmem:[#allocation2 + $0x70] sm:$0xff]
    %v63 = vld [vmem:[#allocation2 + $0x78] sm:$0xff]
    %v64 = vld [vmem:[%s0] sm:$0xf]
    %v65 = vld [vmem:[%s0 + $0x4] sm:$0xf]
    %v66 = vld [vmem:[%s0 + $0x8] sm:$0xf]
    %v67 = vld [vmem:[%s0 + $0xc] sm:$0xf]
    %v68 = vld [vmem:[%s0 + $0x10] sm:$0xf]
    %v69 = vld [vmem:[%s0 + $0x14] sm:$0xf]
    %v70 = vld [vmem:[%s0 + $0x18] sm:$0xf]
    %v71 = vld [vmem:[%s0 + $0x1c] sm:$0xf]
    %v72 = vld [vmem:[%s0 + $0x20] sm:$0xf]
    %v73 = vld [vmem:[%s0 + $0x24] sm:$0xf]
    %v74 = vld [vmem:[%s0 + $0x28] sm:$0xf]
    %v75 = vld [vmem:[%s0 + $0x2c] sm:$0xf]
    %v76 = vld [vmem:[%s0 + $0x30] sm:$0xf]
    %v77 = vld [vmem:[%s0 + $0x34] sm:$0xf]
    %v78 = vld [vmem:[%s0 + $0x38] sm:$0xf]
    %v79 = vld [vmem:[%s0 + $0x3c] sm:$0xf]
    %v80 = vld [vmem:[#allocation3] sm:$0xf]
    %v81 = vld [vmem:[#allocation3 + $0x4] sm:$0xf]
    %v98 = vunpack.c.l.b16 %v64
    %v99 = vunpack.c.l.b16 %v65
    %v100 = vunpack.c.l.b16 %v66
    %v101 = vunpack.c.l.b16 %v67
    %v102 = vunpack.c.l.b16 %v68
    %v103 = vunpack.c.l.b16 %v69
    %v104 = vunpack.c.l.b16 %v70
    %v105 = vunpack.c.l.b16 %v71
    %v106 = vunpack.c.l.b16 %v72
    %v107 = vunpack.c.l.b16 %v73
    %v108 = vunpack.c.l.b16 %v74
    %v109 = vunpack.c.l.b16 %v75
    %v110 = vunpack.c.l.b16 %v76
    %v111 = vunpack.c.l.b16 %v77
    %v112 = vunpack.c.l.b16 %v78
    %v113 = vunpack.c.l.b16 %v79
    %v114 = vpack.c.b16 %v99, %v98
    %v115 = vpack.c.b16 %v101, %v100
    %v116 = vpack.c.b16 %v103, %v102
    %v117 = vpack.c.b16 %v105, %v104
    %v118 = vpack.c.b16 %v107, %v106
    %v119 = vpack.c.b16 %v109, %v108
    %v120 = vpack.c.b16 %v111, %v110
    %v121 = vpack.c.b16 %v113, %v112
    %v124 = vunpack.c.l.b16 %v80
    %v125 = vunpack.c.l.b16 %v81
    %v126 = vpack.c.b16 %v125, %v124
    %vm128 = vcmask 130048
    %v130 = vsel %vm128, %v114, 0
    %v133 = vsel %vm128, %v115, 0
    %v136 = vsel %vm128, %v116, 0
    %v139 = vsel %vm128, %v117, 0
    %v142 = vsel %vm128, %v118, 0
    %v145 = vsel %vm128, %v119, 0
    %v148 = vsel %vm128, %v120, 0
    %v151 = vsel %vm128, %v121, 0
    %153 = vmatprep.subr.bf16.mxu0 0
    %154 = vmatpush1.bf16.msra.mxu0 %v126
    %155 = vmatprep.subr.bf16.mxu0 0
    %156 = vmatpush1.bf16.msra.mxu0 0
    %157 = vmatprep.subr.bf16.mxu0 0
    %158 = vmatpush1.bf16.msra.mxu0 0
    %159 = vmatprep.subr.bf16.mxu0 0
    %160 = vmatpush1.bf16.msra.mxu0 0
    %161 = vmatprep.subr.bf16.mxu0 0
    %162 = vmatpush1.bf16.msra.mxu0 0
    %163 = vmatprep.subr.bf16.mxu0 0
    %164 = vmatpush1.bf16.msra.mxu0 0
    %165 = vmatprep.subr.bf16.mxu0 0
    %166 = vmatpush1.bf16.msra.mxu0 0
    %167 = vmatprep.subr.bf16.mxu0 0
    %168 = vmatpush1.bf16.msra.mxu0 0
    %169 = vmatprep.subr.bf16.mxu0 0
    %170 = vmatpush1.bf16.msra.mxu0 0
    %171 = vmatprep.subr.bf16.mxu0 0
    %172 = vmatpush1.bf16.msra.mxu0 0
    %173 = vmatprep.subr.bf16.mxu0 0
    %174 = vmatpush1.bf16.msra.mxu0 0
    %175 = vmatprep.subr.bf16.mxu0 0
    %176 = vmatpush1.bf16.msra.mxu0 0
    %177 = vmatprep.subr.bf16.mxu0 0
    %178 = vmatpush1.bf16.msra.mxu0 0
    %179 = vmatprep.subr.bf16.mxu0 0
    %180 = vmatpush1.bf16.msra.mxu0 0
    %181 = vmatprep.subr.bf16.mxu0 0
    %182 = vmatpush1.bf16.msra.mxu0 0
    %183 = vmatprep.subr.bf16.mxu0 0
    %184 = vmatpush1.bf16.msra.mxu0 0
    %185 = vmatprep.mubr.bf16.mxu0 0
    %186 = vmatmul.mubr.bf16.gmra.mrb[0].mxu0 %v130
    %v187 = vpop.f32.mrb[0].mxu0
    %v188 = vadd.f32 0.0, %v187
    %v189 = vpop.f32.mrb[0].mxu0
    %v190 = vpop.f32.mrb[0].mxu0
    %v191 = vadd.f32 0.0, %v190
    %v192 = vpop.f32.mrb[0].mxu0
    %193 = vmatprep.mubr.bf16.mxu0 0
    %194 = vmatmul.mubr.bf16.gmra.mrb[0].mxu0 %v133
    %v195 = vpop.f32.mrb[0].mxu0
    %v196 = vadd.f32 0.0, %v195
    %v197 = vpop.f32.mrb[0].mxu0
    %v198 = vpop.f32.mrb[0].mxu0
    %v199 = vadd.f32 0.0, %v198
    %v200 = vpop.f32.mrb[0].mxu0
    %201 = vmatprep.mubr.bf16.mxu0 0
    %202 = vmatmul.mubr.bf16.gmra.mrb[0].mxu0 %v136
    %v203 = vpop.f32.mrb[0].mxu0
    %v204 = vadd.f32 0.0, %v203
    %v205 = vpop.f32.mrb[0].mxu0
    %v206 = vpop.f32.mrb[0].mxu0
    %v207 = vadd.f32 0.0, %v206
    %v208 = vpop.f32.mrb[0].mxu0
    %209 = vmatprep.mubr.bf16.mxu0 0
    %210 = vmatmul.mubr.bf16.gmra.mrb[0].mxu0 %v139
    %v211 = vpop.f32.mrb[0].mxu0
    %v212 = vadd.f32 0.0, %v211
    %v213 = vpop.f32.mrb[0].mxu0
    %v214 = vpop.f32.mrb[0].mxu0
    %v215 = vadd.f32 0.0, %v214
    %v216 = vpop.f32.mrb[0].mxu0
    %217 = vmatprep.mubr.bf16.mxu0 0
    %218 = vmatmul.mubr.bf16.gmra.mrb[0].mxu0 %v142
    %v219 = vpop.f32.mrb[0].mxu0
    %v220 = vadd.f32 0.0, %v219
    %v221 = vpop.f32.mrb[0].mxu0
    %v222 = vpop.f32.mrb[0].mxu0
    %v223 = vadd.f32 0.0, %v222
    %v224 = vpop.f32.mrb[0].mxu0
    %225 = vmatprep.mubr.bf16.mxu0 0
    %226 = vmatmul.mubr.bf16.gmra.mrb[0].mxu0 %v145
    %v227 = vpop.f32.mrb[0].mxu0
    %v228 = vadd.f32 0.0, %v227
    %v229 = vpop.f32.mrb[0].mxu0
    %v230 = vpop.f32.mrb[0].mxu0
    %v231 = vadd.f32 0.0, %v230
    %v232 = vpop.f32.mrb[0].mxu0
    %233 = vmatprep.mubr.bf16.mxu0 0
    %234 = vmatmul.mubr.bf16.gmra.mrb[0].mxu0 %v148
    %v235 = vpop.f32.mrb[0].mxu0
    %v236 = vadd.f32 0.0, %v235
    %v237 = vpop.f32.mrb[0].mxu0
    %v238 = vpop.f32.mrb[0].mxu0
    %v239 = vadd.f32 0.0, %v238
    %v240 = vpop.f32.mrb[0].mxu0
    %241 = vmatprep.mubr.bf16.mxu0 0
    %242 = vmatmul.mubr.bf16.gmra.mrb[0].mxu0 %v151
    %v243 = vpop.f32.mrb[0].mxu0
    %v244 = vadd.f32 0.0, %v243
    %v245 = vpop.f32.mrb[0].mxu0
    %v246 = vpop.f32.mrb[0].mxu0
    %v247 = vadd.f32 0.0, %v246
    %v248 = vpop.f32.mrb[0].mxu0
    %249 = vdwg.mxu0
    %v250 = vadd.f32 %v48, %v188
    %v251 = vadd.f32 %v49, %v191
    %v252 = vadd.f32 %v50, %v196
    %v253 = vadd.f32 %v51, %v199
    %v254 = vadd.f32 %v52, %v204
    %v255 = vadd.f32 %v53, %v207
    %v256 = vadd.f32 %v54, %v212
    %v257 = vadd.f32 %v55, %v215
    %v258 = vadd.f32 %v56, %v220
    %v259 = vadd.f32 %v57, %v223
    %v260 = vadd.f32 %v58, %v228
    %v261 = vadd.f32 %v59, %v231
    %v262 = vadd.f32 %v60, %v236
    %v263 = vadd.f32 %v61, %v239
    %v264 = vadd.f32 %v62, %v244
    %v265 = vadd.f32 %v63, %v247
    %266 = vst [vmem:[#allocation2] sm:$0xff] %v250
    %267 = vst [vmem:[#allocation2 + $0x8] sm:$0xff] %v251
    %268 = vst [vmem:[#allocation2 + $0x10] sm:$0xff] %v252
    %269 = vst [vmem:[#allocation2 + $0x18] sm:$0xff] %v253
    %270 = vst [vmem:[#allocation2 + $0x20] sm:$0xff] %v254
    %271 = vst [vmem:[#allocation2 + $0x28] sm:$0xff] %v255
    %272 = vst [vmem:[#allocation2 + $0x30] sm:$0xff] %v256
    %273 = vst [vmem:[#allocation2 + $0x38] sm:$0xff] %v257
    %274 = vst [vmem:[#allocation2 + $0x40] sm:$0xff] %v258
    %275 = vst [vmem:[#allocation2 + $0x48] sm:$0xff] %v259
    %276 = vst [vmem:[#allocation2 + $0x50] sm:$0xff] %v260
    %277 = vst [vmem:[#allocation2 + $0x58] sm:$0xff] %v261
    %278 = vst [vmem:[#allocation2 + $0x60] sm:$0xff] %v262
    %279 = vst [vmem:[#allocation2 + $0x68] sm:$0xff] %v263
    %280 = vst [vmem:[#allocation2 + $0x70] sm:$0xff] %v264
    %281 = vst [vmem:[#allocation2 + $0x78] sm:$0xff] %v265
    // Predicated region
    $region18: #{encoder_forward.7} parent=1 // pred_check
      %p282 = pneg %p28
    $region19: #{encoder_forward.7} parent=1 // pred_check_branch
      %284 = sbr.rel (%p282) target = $region21
    $region20: #{encoder_forward.7} parent=1 // pred_region
      %v285 = vld [vmem:[#allocation2] sm:$0xff]
      %v286 = vld [vmem:[#allocation2 + $0x8] sm:$0xff]
      %v287 = vld [vmem:[#allocation2 + $0x10] sm:$0xff]
      %v288 = vld [vmem:[#allocation2 + $0x18] sm:$0xff]
      %v289 = vld [vmem:[#allocation2 + $0x20] sm:$0xff]
      %v290 = vld [vmem:[#allocation2 + $0x28] sm:$0xff]
      %v291 = vld [vmem:[#allocation2 + $0x30] sm:$0xff]
      %v292 = vld [vmem:[#allocation2 + $0x38] sm:$0xff]
      %v293 = vld [vmem:[#allocation2 + $0x40] sm:$0xff]
      %v294 = vld [vmem:[#allocation2 + $0x48] sm:$0xff]
      %v295 = vld [vmem:[#allocation2 + $0x50] sm:$0xff]
      %v296 = vld [vmem:[#allocation2 + $0x58] sm:$0xff]
      %v297 = vld [vmem:[#allocation2 + $0x60] sm:$0xff]
      %v298 = vld [vmem:[#allocation2 + $0x68] sm:$0xff]
      %v299 = vld [vmem:[#allocation2 + $0x70] sm:$0xff]
      %v300 = vld [vmem:[#allocation2 + $0x78] sm:$0xff]
      %301 = vst [vmem:[%s2] sm:$0xff] %v285
      %302 = vst [vmem:[%s2 + $0x8] sm:$0xff] %v286
      %303 = vst [vmem:[%s2 + $0x10] sm:$0xff] %v287
      %304 = vst [vmem:[%s2 + $0x18] sm:$0xff] %v288
      %305 = vst [vmem:[%s2 + $0x20] sm:$0xff] %v289
      %306 = vst [vmem:[%s2 + $0x28] sm:$0xff] %v290
      %307 = vst [vmem:[%s2 + $0x30] sm:$0xff] %v291
      %308 = vst [vmem:[%s2 + $0x38] sm:$0xff] %v292
      %309 = vst [vmem:[%s2 + $0x40] sm:$0xff] %v293
      %310 = vst [vmem:[%s2 + $0x48] sm:$0xff] %v294
      %311 = vst [vmem:[%s2 + $0x50] sm:$0xff] %v295
      %312 = vst [vmem:[%s2 + $0x58] sm:$0xff] %v296
      %313 = vst [vmem:[%s2 + $0x60] sm:$0xff] %v297
      %314 = vst [vmem:[%s2 + $0x68] sm:$0xff] %v298
      %315 = vst [vmem:[%s2 + $0x70] sm:$0xff] %v299
      %316 = vst [vmem:[%s2 + $0x78] sm:$0xff] %v300
      %v317 = vadd.f32 %v285, %v286
      %v318 = vadd.f32 %v317, %v287
      %v319 = vadd.f32 %v318, %v288
      %v320 = vadd.f32 %v319, %v289
      %v321 = vadd.f32 %v320, %v290
      %v322 = vadd.f32 %v321, %v291
      %v323 = vadd.f32 %v322, %v292
      %v324 = vadd.f32 %v323, %v293
      %v325 = vadd.f32 %v324, %v294
      %v326 = vadd.f32 %v325, %v295
      %v327 = vadd.f32 %v326, %v296
      %v328 = vadd.f32 %v327, %v297
      %v329 = vadd.f32 %v328, %v298
      %v330 = vadd.f32 %v329, %v299
      %v331 = vadd.f32 %v330, %v300
      %v332 = vrot.slane %v331, 4
      %v333 = vadd.f32 %v331, %v332
      %v334 = vrot.slane %v333, 2
      %v335 = vadd.f32 %v333, %v334
      %v336 = vrot.slane %v335, 1
      %v337 = vadd.f32 %v335, %v336
      %338 = vst [vmem:[%s3] sm:$0x1] %v337
      %v339 = vmul.f32 %v285, %v285
      %v340 = vmul.f32 %v286, %v286
      %v341 = vmul.f32 %v287, %v287
      %v342 = vmul.f32 %v288, %v288
      %v343 = vmul.f32 %v289, %v289
      %v344 = vmul.f32 %v290, %v290
      %v345 = vmul.f32 %v291, %v291
      %v346 = vmul.f32 %v292, %v292
      %v347 = vmul.f32 %v293, %v293
      %v348 = vmul.f32 %v294, %v294
      %v349 = vmul.f32 %v295, %v295
      %v350 = vmul.f32 %v296, %v296
      %v351 = vmul.f32 %v297, %v297
      %v352 = vmul.f32 %v298, %v298
      %v353 = vmul.f32 %v299, %v299
      %v354 = vmul.f32 %v300, %v300
      %v355 = vadd.f32 %v339, %v340
      %v356 = vadd.f32 %v355, %v341
      %v357 = vadd.f32 %v356, %v342
      %v358 = vadd.f32 %v357, %v343
      %v359 = vadd.f32 %v358, %v344
      %v360 = vadd.f32 %v359, %v345
      %v361 = vadd.f32 %v360, %v346
      %v362 = vadd.f32 %v361, %v347
      %v363 = vadd.f32 %v362, %v348
      %v364 = vadd.f32 %v363, %v349
      %v365 = vadd.f32 %v364, %v350
      %v366 = vadd.f32 %v365, %v351
      %v367 = vadd.f32 %v366, %v352
      %v368 = vadd.f32 %v367, %v353
      %v369 = vadd.f32 %v368, %v354
      %v370 = vrot.slane %v369, 4
      %v371 = vadd.f32 %v369, %v370
      %v372 = vrot.slane %v371, 2
      %v373 = vadd.f32 %v371, %v372
      %v374 = vrot.slane %v373, 1
      %v375 = vadd.f32 %v373, %v374
      %376 = vst [vmem:[%s3 + $0x1] sm:$0x1] %v375
    $region21: #{encoder_forward.7} parent=1 // pred_fallthru
      _
    // Predicated region
    $region22: #{encoder_forward.7} parent=1 // pred_check
      _
    $region23: #{encoder_forward.7} parent=1 // pred_check_branch
      %378 = sbr.rel (0) target = $region25
    $region24: #{encoder_forward.7} parent=1 // pred_region
      _
    $region25: #{encoder_forward.7} parent=1 // pred_fallthru
      _
    // Predicated region
    $region26: #{encoder_forward.7} parent=1 // pred_check
      _
    $region27: #{encoder_forward.7} parent=1 // pred_check_branch
      %380 = sbr.rel (0) target = $region29
    $region28: #{encoder_forward.7} parent=1 // pred_region
      _
    $region29: #{encoder_forward.7} parent=1 // pred_fallthru
      _
    // Predicated region
    $region30: #{encoder_forward.7} parent=1 // pred_check
      _
    $region31: #{encoder_forward.7} parent=1 // pred_check_branch
      %382 = sbr.rel (0) target = $region33
    $region32: #{encoder_forward.7} parent=1 // pred_region
      _
    $region33: #{encoder_forward.7} parent=1 // pred_fallthru
      _
    // Predicated region
    $region34: #{encoder_forward.7} parent=1 // pred_check
      _
    $region35: #{encoder_forward.7} parent=1 // pred_check_branch
      %384 = sbr.rel (0) target = $region37
    $region36: #{encoder_forward.7} parent=1 // pred_region
      _
    $region37: #{encoder_forward.7} parent=1 // pred_fallthru
      _
    %385 = vsyncpa [#allocation4], 1

// kernel: encoder_forward.10
$region0: #{encoder_forward.10}
  #allocation0 [shape = 'u32[]', space=smem, size = 0x4, offset = 0x4, fixed_abs, tag = 'smem constant byte address 0x4 - core index']
  #allocation1 [shape = 'u32[144,128]{1,0:T(1,128)}', space=vmem, size = 0x12000, scoped, tag = 'internal scratch']
  %s0 = inlined_call_operand.vmem [shape: f32[32,128], index: 0, kind: input, shape index: {}]
  %s1 = inlined_call_operand.vmem [shape: f32[1,128], index: 1, kind: input, shape index: {}]
  %s2 = inlined_call_operand.vmem [shape: f32[1,128], index: 2, kind: input, shape index: {}]
  %s3 = inlined_call_operand.vmem [shape: bf16[32,128], index: 3, kind: output, shape index: {}]
  %s4 = sld [smem:[#allocation0]]
  $region22: #{encoder_forward.10} parent=0
    _
  %s6 = ssub.s32 1, %s4
  %s7 = scalar_select 0, %s6, %s4
  // Predicated region
  $region2: #{encoder_forward.10} parent=0 // pred_check
    _
  $region3: #{encoder_forward.10} parent=0 // pred_check_branch
    %9 = sbr.rel (0) target = $region5
  $region4: #{encoder_forward.10} parent=0 // pred_region
    _
  $region5: #{encoder_forward.10} parent=0 // pred_fallthru
    _
  // Predicated region
  $region6: #{encoder_forward.10} parent=0 // pred_check
    _
  $region7: #{encoder_forward.10} parent=0 // pred_check_branch
    %11 = sbr.rel (0) target = $region9
  $region8: #{encoder_forward.10} parent=0 // pred_region
    _
  $region9: #{encoder_forward.10} parent=0 // pred_fallthru
    _
  // Predicated region
  $region10: #{encoder_forward.10} parent=0 // pred_check
    _
  $region11: #{encoder_forward.10} parent=0 // pred_check_branch
    %13 = sbr.rel (0) target = $region13
  $region12: #{encoder_forward.10} parent=0 // pred_region
    _
  $region13: #{encoder_forward.10} parent=0 // pred_fallthru
    _
  %v14 = vld [vmem:[%s0] sm:$0xff]
  %v15 = vld [vmem:[%s0 + $0x8] sm:$0xff]
  %v16 = vld [vmem:[%s0 + $0x10] sm:$0xff]
  %v17 = vld [vmem:[%s0 + $0x18] sm:$0xff]
  %v18 = vld [vmem:[%s1] sm:$0x1]
  %v20 = vlaneseq
  %v21 = vshrl.u32 %v20, 7
  %v22 = vsub.s32 0, %v21
  %v23 = vrot.slane %v18, %v22
  %v25 = vmul.f32 %v14, %v23
  %v26 = vmul.f32 %v15, %v23
  %v27 = vmul.f32 %v16, %v23
  %v28 = vmul.f32 %v17, %v23
  %v29 = vld [vmem:[%s2] sm:$0x1]
  %v31 = vlaneseq
  %v32 = vshrl.u32 %v31, 7
  %v33 = vsub.s32 0, %v32
  %v34 = vrot.slane %v29, %v33
  %v36 = vadd.f32 %v25, %v34
  %v37 = vadd.f32 %v26, %v34
  %v38 = vadd.f32 %v27, %v34
  %v39 = vadd.f32 %v28, %v34
  %v40 = vmax.f32 %v36, 0.0
  %v41 = vmax.f32 %v37, 0.0
  %v42 = vmax.f32 %v38, 0.0
  %v43 = vmax.f32 %v39, 0.0
  %v44 = vpack.c.bf16 %v41, %v40
  %v45 = vpack.c.bf16 %v43, %v42
  %v48 = vunpack.c.l.b16 %v44
  %v49 = vunpack.c.h.b16 %v44
  %v50 = vunpack.c.l.b16 %v45
  %v51 = vunpack.c.h.b16 %v45
  %v52 = vpack.c.b16 %v48, %v48
  %v53 = vpack.c.b16 %v49, %v49
  %v54 = vpack.c.b16 %v50, %v50
  %v55 = vpack.c.b16 %v51, %v51
  %60 = vst [vmem:[%s3] sm:$0xf] %v52
  %61 = vst [vmem:[%s3 + $0x4] sm:$0xf] %v53
  %62 = vst [vmem:[%s3 + $0x8] sm:$0xf] %v54
  %63 = vst [vmem:[%s3 + $0xc] sm:$0xf] %v55
  // Predicated region
  $region14: #{encoder_forward.10} parent=0 // pred_check
    _
  $region15: #{encoder_forward.10} parent=0 // pred_check_branch
    %65 = sbr.rel (0) target = $region17
  $region16: #{encoder_forward.10} parent=0 // pred_region
    _
  $region17: #{encoder_forward.10} parent=0 // pred_fallthru
    _
  // Predicated region
  $region18: #{encoder_forward.10} parent=0 // pred_check
    _
  $region19: #{encoder_forward.10} parent=0 // pred_check_branch
    %67 = sbr.rel (0) target = $region21
  $region20: #{encoder_forward.10} parent=0 // pred_region
    _
  $region21: #{encoder_forward.10} parent=0 // pred_fallthru
    _

// kernel: encoder_forward.9
$region0: #{encoder_forward.9}
  #allocation0 [shape = 'u32[]', space=smem, size = 0x4, offset = 0x4, fixed_abs, tag = 'smem constant byte address 0x4 - core index']
  #allocation1 [shape = 'u32[144,128]{1,0:T(1,128)}', space=vmem, size = 0x12000, scoped, tag = 'internal scratch']
  #allocation2 [shape = 'f32[32,128]{1,0:T(8,128)}', space=vmem, size = 0x4000, scoped, tag = 'scratch operand']
  %s0 = inlined_call_operand.vmem [shape: bf16[32,1024], index: 0, kind: input, shape index: {}]
  %s1 = inlined_call_operand.hbm [shape: bf16[1024,128], index: 1, kind: input, shape index: {}]
  %s2 = inlined_call_operand.vmem [shape: f32[32,128], index: 2, kind: output, shape index: {0}]
  %s3 = inlined_call_operand.vmem [shape: f32[8,128], index: 3, kind: output, shape index: {1}]
  %4 = xla_tuple %s2, %s3
  %s5 = sld [smem:[#allocation0]]
  $region84: #{encoder_forward.9} parent=0
    _
  %s7 = ssub.s32 1, %s5
  %s8 = scalar_select 0, %s7, %s5
  $region1: #{encoder_forward.9} parent=0
    #allocation3 [shape = 'u8[65536]{0}', space=vmem, size = 0x10000, scoped, tag = 'input window, operand 0']
    #allocation4 [shape = 'u8[262144]{0}', space=vmem, size = 0x40000, scoped, tag = 'input window, operand 1']
    #allocation5 [shape = 's32[2]{0}', space=sflag, size = 0x8, scoped, tag = 'scoped memory for encoder_forward.9']
    %9 = vsyncpa [#allocation5], 0
    %s10 = scalar_lea.sflag [#allocation5], 1
    %11 = vsyncpa %s10, 0
    loop: start=0, step=1, limit=4
    $region2: #{encoder_forward.9} parent=1 // loop_pre_header
      _
    $region3: #{encoder_forward.9} parent=1 // loop_header
      %s13 = sphi 0, %s17
      %p14 = scmp.ge.s32.totalorder %s13, 4
      %s20 = sphi 0, %s32
      %s21 = sphi 0, %s28
      %s22 = sphi 0, %s20
      %s23 = sphi 0, %s21
      %s24 = sphi 0, %s22
      %s25 = sphi 0, %s23
      %s37 = sphi 0, %s39
      %s40 = sphi 0, %s37
      %s41 = sphi 0, %s40
      %s57 = sphi 0, %s41
      %s63 = sphi 0, %s65
      %s66 = sphi 0, %s63
      %s67 = sphi 0, %s66
      %s83 = sphi 0, %s67
      %s89 = sphi 0, %s91
      %s92 = sphi 0, %s89
      %s93 = sphi 0, %s92
      %s109 = sphi 0, %s93
      %s115 = sphi 0, %s117
      %s118 = sphi 0, %s115
      %s119 = sphi 0, %s118
      %s135 = sphi 0, %s119
    $region4: #{encoder_forward.9} parent=1 // loop_header_branch
      %16 = sbr.rel (%p14) target = $region8
    $region5: #{encoder_forward.9} parent=1 // loop_body
      %s18 = ssub.s32 %s13, 1
      %s19 = ssub.s32 %s13, 2
      %s26 = sadd.s32 1, %s21
      %p27 = scmp.ge.s32.totalorder %s26, 2
      %s28 = scalar_select %p27, 0, %s26
      %s29 = sadd.s32 1, %s20
      %s30 = scalar_select %p27, %s29, %s20
      %p31 = scmp.ge.s32.totalorder %s30, 1
      %s32 = scalar_select %p31, 0, %s30
      %s33 = ssub.s32 %s20, %s32
      %s34 = ssub.s32 %s21, %s28
      %s35 = sor.u32 %s33, %s34
      %p36 = scmp.eq.s32.totalorder %s35, 0
      %s38 = sadd.s32 %s37, 1
      %s39 = scalar_select %p36, %s37, %s38
      %p42 = pneg %p36
      %p43 = scmp.eq.s32.totalorder %s13, 1
      %p44 = por %p42, %p43
      %p45 = scmp.ne.s32.totalorder %s37, %s40
      %p46 = scmp.eq.s32.totalorder %s13, 0
      %p47 = por %p45, %p46
      %p48 = scmp.ne.s32.totalorder %s37, %s40
      %p49 = scmp.eq.s32.totalorder %s18, 1
      %p50 = por %p48, %p49
      %p51 = scmp.ne.s32.totalorder %s40, %s41
      %p52 = scmp.eq.s32.totalorder %s18, 0
      %p53 = por %p51, %p52
      %p54 = scmp.ne.s32.totalorder %s40, %s41
      %p55 = scmp.eq.s32.totalorder %s19, 1
      %p56 = por %p54, %p55
      %p58 = scmp.ne.s32.totalorder %s41, %s57
      %p59 = scmp.eq.s32.totalorder %s19, 0
      %p60 = por %p58, %p59
      %s61 = ssub.s32 %s21, %s28
      %p62 = scmp.eq.s32.totalorder %s61, 0
      %s64 = sadd.s32 %s63, 1
      %s65 = scalar_select %p62, %s63, %s64
      %p68 = pneg %p62
      %p69 = scmp.eq.s32.totalorder %s13, 1
      %p70 = por %p68, %p69
      %p71 = scmp.ne.s32.totalorder %s63, %s66
      %p72 = scmp.eq.s32.totalorder %s13, 0
      %p73 = por %p71, %p72
      %p74 = scmp.ne.s32.totalorder %s63, %s66
      %p75 = scmp.eq.s32.totalorder %s18, 1
      %p76 = por %p74, %p75
      %p77 = scmp.ne.s32.totalorder %s66, %s67
      %p78 = scmp.eq.s32.totalorder %s18, 0
      %p79 = por %p77, %p78
      %p80 = scmp.ne.s32.totalorder %s66, %s67
      %p81 = scmp.eq.s32.totalorder %s19, 1
      %p82 = por %p80, %p81
      %p84 = scmp.ne.s32.totalorder %s67, %s83
      %p85 = scmp.eq.s32.totalorder %s19, 0
      %p86 = por %p84, %p85
      %s87 = ssub.s32 %s20, %s32
      %p88 = scmp.eq.s32.totalorder %s87, 0
      %s90 = sadd.s32 %s89, 1
      %s91 = scalar_select %p88, %s89, %s90
      %p94 = pneg %p88
      %p95 = scmp.eq.s32.totalorder %s13, 1
      %p96 = por %p94, %p95
      %p97 = scmp.ne.s32.totalorder %s89, %s92
      %p98 = scmp.eq.s32.totalorder %s13, 0
      %p99 = por %p97, %p98
      %p100 = scmp.ne.s32.totalorder %s89, %s92
      %p101 = scmp.eq.s32.totalorder %s18, 1
      %p102 = por %p100, %p101
      %p103 = scmp.ne.s32.totalorder %s92, %s93
      %p104 = scmp.eq.s32.totalorder %s18, 0
      %p105 = por %p103, %p104
      %p106 = scmp.ne.s32.totalorder %s92, %s93
      %p107 = scmp.eq.s32.totalorder %s19, 1
      %p108 = por %p106, %p107
      %p110 = scmp.ne.s32.totalorder %s93, %s109
      %p111 = scmp.eq.s32.totalorder %s19, 0
      %p112 = por %p110, %p111
      %s113 = ssub.s32 %s20, %s32
      %p114 = scmp.eq.s32.totalorder %s113, 0
      %s116 = sadd.s32 %s115, 1
      %s117 = scalar_select %p114, %s115, %s116
      %p120 = pneg %p114
      %p121 = scmp.eq.s32.totalorder %s13, 1
      %p122 = por %p120, %p121
      %p123 = scmp.ne.s32.totalorder %s115, %s118
      %p124 = scmp.eq.s32.totalorder %s13, 0
      %p125 = por %p123, %p124
      %p126 = scmp.ne.s32.totalorder %s115, %s118
      %p127 = scmp.eq.s32.totalorder %s18, 1
      %p128 = por %p126, %p127
      %p129 = scmp.ne.s32.totalorder %s118, %s119
      %p130 = scmp.eq.s32.totalorder %s18, 0
      %p131 = por %p129, %p130
      %p132 = scmp.ne.s32.totalorder %s118, %s119
      %p133 = scmp.eq.s32.totalorder %s19, 1
      %p134 = por %p132, %p133
      %p136 = scmp.ne.s32.totalorder %s119, %s135
      %p137 = scmp.eq.s32.totalorder %s19, 0
      %p138 = por %p136, %p137
      %p139 = scmp.le.s32.totalorder 1, %s13
      %p140 = scmp.lt.s32.totalorder %s13, 3
      %p141 = pnand %p139, %p140
      %p142 = pneg %p141
      // Predicated region
      $region9: #{encoder_forward.9} parent=5 // pred_check
        _
      $region10: #{encoder_forward.9} parent=5 // pred_check_branch
        %144 = sbr.rel (%p141) target = $region12
      $region11: #{encoder_forward.9} parent=5 // pred_region
        %s145 = ssub.s32 %s13, 1
      $region12: #{encoder_forward.9} parent=5 // pred_fallthru
        _
      %p146 = scmp.lt.s32.totalorder %s13, 2
      // Predicated region
      $region13: #{encoder_forward.9} parent=5 // pred_check
        %p147 = pneg %p146
      $region14: #{encoder_forward.9} parent=5 // pred_check_branch
        %149 = sbr.rel (%p147) target = $region16
      $region15: #{encoder_forward.9} parent=5 // pred_region
        // Predicated region
        $region17: #{encoder_forward.9} parent=15 // pred_check
          %p150 = pneg %p47
        $region18: #{encoder_forward.9} parent=15 // pred_check_branch
          %152 = sbr.rel (%p150) target = $region20
        $region19: #{encoder_forward.9} parent=15 // pred_region
          %s153 = sand.u32 %s37, 1
          %s154 = sand.u32 %s37, 1
          %s155 = smul.addr %s154, 64
          %s156 = scalar_lea.vmem [#allocation3], %s155
          %s157 = smul.u32 4, %s20
          %s158 = smul.u32 4, %s21
          %s159 = smul.addr %s157, 8
          %s160 = sadd.s32 %s158, %s159
          %s161 = smul.addr %s160, 4
          %s162 = scalar_lea.vmem %s0, %s161
          // Predicated region
          $region21: #{encoder_forward.9} parent=19 // pred_check
            _
          $region22: #{encoder_forward.9} parent=19 // pred_check_branch
            %164 = sbr.rel (0) target = $region24
          $region23: #{encoder_forward.9} parent=19 // pred_region
            // Predicated region
            $region25: #{encoder_forward.9} parent=23 // pred_check
              _
            $region26: #{encoder_forward.9} parent=23 // pred_check_branch
              %166 = sbr.rel (0) target = $region28
            $region27: #{encoder_forward.9} parent=23 // pred_region
              loop: start=0, step=1, limit=1
              $region29: #{encoder_forward.9} parent=27 // loop_pre_header
                _
              $region30: #{encoder_forward.9} parent=27 // loop_header
                %s168 = sphi 0, %s172
                %p169 = scmp.ge.s32.totalorder %s168, 1
                %s173 = sphi %s162, %s162
                %s174 = sphi %s156, %s156
              $region31: #{encoder_forward.9} parent=27 // loop_header_branch
                %171 = sbr.rel (%p169) target = $region35
              $region32: #{encoder_forward.9} parent=27 // loop_body
                %v175 = vld [vmem:[%s173] sm:$0xff]
                %176 = vst [vmem:[%s174] sm:$0xff] %v175
                %v177 = vld [vmem:[%s173 + $0x8] sm:$0xff]
                %178 = vst [vmem:[%s174 + $0x8] sm:$0xff] %v177
                %v179 = vld [vmem:[%s173 + $0x20] sm:$0xff]
                %180 = vst [vmem:[%s174 + $0x10] sm:$0xff] %v179
                %v181 = vld [vmem:[%s173 + $0x28] sm:$0xff]
                %182 = vst [vmem:[%s174 + $0x18] sm:$0xff] %v181
                %v183 = vld [vmem:[%s173 + $0x40] sm:$0xff]
                %184 = vst [vmem:[%s174 + $0x20] sm:$0xff] %v183
                %v185 = vld [vmem:[%s173 + $0x48] sm:$0xff]
                %186 = vst [vmem:[%s174 + $0x28] sm:$0xff] %v185
                %v187 = vld [vmem:[%s173 + $0x60] sm:$0xff]
                %188 = vst [vmem:[%s174 + $0x30] sm:$0xff] %v187
                %v189 = vld [vmem:[%s173 + $0x68] sm:$0xff]
                %190 = vst [vmem:[%s174 + $0x38] sm:$0xff] %v189
              $region33: #{encoder_forward.9} parent=27 // loop_footer
                %s172 = sadd.s32 1, %s168
              $region34: #{encoder_forward.9} parent=27 // loop_footer_branch
                %167 = sbr.rel target = $region30
              $region35: #{encoder_forward.9} parent=27 // loop_exit
                _
            $region28: #{encoder_forward.9} parent=23 // pred_fallthru
              _
            // Predicated region
            $region36: #{encoder_forward.9} parent=23 // pred_check
              _
            $region37: #{encoder_forward.9} parent=23 // pred_check_branch
              %192 = sbr.rel target = $region39
            $region38: #{encoder_forward.9} parent=23 // pred_region
              _
            $region39: #{encoder_forward.9} parent=23 // pred_fallthru
              _
          $region24: #{encoder_forward.9} parent=19 // pred_fallthru
            _
          %193 = vnop
        $region20: #{encoder_forward.9} parent=15 // pred_fallthru
          _
        // Predicated region
        $region40: #{encoder_forward.9} parent=15 // pred_check
          %p194 = pneg %p73
        $region41: #{encoder_forward.9} parent=15 // pred_check_branch
          %196 = sbr.rel (%p194) target = $region43
        $region42: #{encoder_forward.9} parent=15 // pred_region
          %s197 = sand.u32 %s63, 1
          %s198 = scalar_lea.sflag [#allocation5], %s197
          %s199 = sand.u32 %s63, 1
          %s200 = smul.addr %s199, 256
          %s201 = scalar_lea.vmem [#allocation4], %s200
          %s202 = smul.u32 64, %s21
          %s204 = ssub.s32 4096, 4096
          %205 = vsyncadd %s198, %s204
          %s206 = smul.addr %s202, 64
          %s207 = scalar_lea.hbm %s1, %s206
          %s208 = sshll.u32 %s201, 4
          %s209 = int_to_ptr.vmem [resolvable:$true] %s208
          %214 = dma.hbm_to_vmem [thread:$0]  %s207, 4096, %s209, %s198, 64, 64, 4
        $region43: #{encoder_forward.9} parent=15 // pred_fallthru
          _
      $region16: #{encoder_forward.9} parent=5 // pred_fallthru
        _
      %p215 = scmp.le.s32.totalorder 1, %s13
      %p216 = scmp.lt.s32.totalorder %s13, 3
      %p217 = pnand %p215, %p216
      %p218 = pneg %p217
      // Predicated region
      $region44: #{encoder_forward.9} parent=5 // pred_check
        _
      $region45: #{encoder_forward.9} parent=5 // pred_check_branch
        %220 = sbr.rel (%p217) target = $region47
      $region46: #{encoder_forward.9} parent=5 // pred_region
        %s221 = ssub.s32 %s13, 1
        %s222 = sand.u32 %s40, 1
        %s223 = sand.u32 %s40, 1
        %s224 = smul.addr %s223, 64
        %s225 = scalar_lea.vmem [#allocation3], %s224
        // Predicated region
        $region48: #{encoder_forward.9} parent=46 // pred_check
          %p226 = pneg %p53
        $region49: #{encoder_forward.9} parent=46 // pred_check_branch
          %228 = sbr.rel (%p226) target = $region51
        $region50: #{encoder_forward.9} parent=46 // pred_region
          _
        $region51: #{encoder_forward.9} parent=46 // pred_fallthru
          _
        %s229 = sand.u32 %s66, 1
        %s230 = scalar_lea.sflag [#allocation5], %s229
        %s231 = sand.u32 %s66, 1
        %s232 = smul.addr %s231, 256
        %s233 = scalar_lea.vmem [#allocation4], %s232
        // Predicated region
        $region52: #{encoder_forward.9} parent=46 // pred_check
          %p234 = pneg %p79
        $region53: #{encoder_forward.9} parent=46 // pred_check_branch
          %236 = sbr.rel (%p234) target = $region55
        $region54: #{encoder_forward.9} parent=46 // pred_region
          %237 = dma.done %s230, 4096
        $region55: #{encoder_forward.9} parent=46 // pred_fallthru
          _
        %s238 = sand.u32 %s40, 1
        %s239 = sand.u32 %s40, 1
        %s240 = smul.addr %s239, 64
        %s241 = scalar_lea.vmem [#allocation3], %s240
        %p242 = pneg %p53
        %p243 = pneg %p50
        %s244 = sand.u32 %s66, 1
        %s245 = scalar_lea.sflag [#allocation5], %s244
        %s246 = sand.u32 %s66, 1
        %s247 = smul.addr %s246, 256
        %s248 = scalar_lea.vmem [#allocation4], %s247
        %p249 = pneg %p79
        %p250 = pneg %p76
        %p251 = pneg %p105
        %p252 = pneg %p102
        %s253 = smul.u32 4, %s22
        %p254 = scmp.lt.s32.totalorder %s253, 3
        %s255 = scalar_select %p254, %s253, 3
        %s256 = smul.addr %s255, 8
        %s257 = scalar_lea.vmem %s2, %s256
        %p258 = pneg %p131
        %p259 = pneg %p128
        %p260 = scmp.lt.s32.totalorder %s22, 0
        %s261 = scalar_select %p260, %s22, 0
        %s262 = smul.addr %s261, 8
        %s263 = scalar_lea.vmem %s3, %s262
        %s264 = smul.u32 4, %s22
        %s265 = smul.u32 4, %s23
        %s266 = smul.u32 64, %s23
        %s267 = smul.u32 4, %s22
        %p268 = scmp.lt.s32.totalorder %s267, 3
        %s269 = scalar_select %p268, %s267, 3
        %s270 = smul.addr %s269, 8
        %s271 = scalar_lea.vmem %s2, %s270
        %s272 = smul.u32 4, %s22
        %p273 = scmp.lt.s32.totalorder %s22, 0
        %s274 = scalar_select %p273, %s22, 0
        %s275 = smul.addr %s274, 8
        %s276 = scalar_lea.vmem %s3, %s275
        %p278 = scmp.eq.s32.totalorder %s23, 0
        // Predicated region
        $region56: #{encoder_forward.9} parent=46 // pred_check
          %p279 = pneg %p278
        $region57: #{encoder_forward.9} parent=46 // pred_check_branch
          %281 = sbr.rel (%p279) target = $region59
        $region58: #{encoder_forward.9} parent=46 // pred_region
          %282 = vst [vmem:[#allocation2] sm:$0xff] 0.0
          %283 = vst [vmem:[#allocation2 + $0x8] sm:$0xff] 0.0
          %284 = vst [vmem:[#allocation2 + $0x10] sm:$0xff] 0.0
          %285 = vst [vmem:[#allocation2 + $0x18] sm:$0xff] 0.0
        $region59: #{encoder_forward.9} parent=46 // pred_fallthru
          _
        %v286 = vld [vmem:[#allocation2] sm:$0xff]
        %v287 = vld [vmem:[#allocation2 + $0x8] sm:$0xff]
        %v288 = vld [vmem:[#allocation2 + $0x10] sm:$0xff]
        %v289 = vld [vmem:[#allocation2 + $0x18] sm:$0xff]
        %v290 = vld [vmem:[%s225] sm:$0xff]
        %v291 = vld [vmem:[%s225 + $0x8] sm:$0xff]
        %v292 = vld [vmem:[%s225 + $0x10] sm:$0xff]
        %v293 = vld [vmem:[%s225 + $0x18] sm:$0xff]
        %v294 = vld [vmem:[%s225 + $0x20] sm:$0xff]
        %v295 = vld [vmem:[%s225 + $0x28] sm:$0xff]
        %v296 = vld [vmem:[%s225 + $0x30] sm:$0xff]
        %v297 = vld [vmem:[%s225 + $0x38] sm:$0xff]
        %v298 = vld [vmem:[%s233] sm:$0xf]
        %v299 = vld [vmem:[%s233 + $0x4] sm:$0xf]
        %v300 = vld [vmem:[%s233 + $0x8] sm:$0xf]
        %v301 = vld [vmem:[%s233 + $0xc] sm:$0xf]
        %v302 = vld [vmem:[%s233 + $0x10] sm:$0xf]
        %v303 = vld [vmem:[%s233 + $0x14] sm:$0xf]
        %v304 = vld [vmem:[%s233 + $0x18] sm:$0xf]
        %v305 = vld [vmem:[%s233 + $0x1c] sm:$0xf]
        %v306 = vld [vmem:[%s233 + $0x20] sm:$0xf]
        %v307 = vld [vmem:[%s233 + $0x24] sm:$0xf]
        %v308 = vld [vmem:[%s233 + $0x28] sm:$0xf]
        %v309 = vld [vmem:[%s233 + $0x2c] sm:$0xf]
        %v310 = vld [vmem:[%s233 + $0x30] sm:$0xf]
        %v311 = vld [vmem:[%s233 + $0x34] sm:$0xf]
        %v312 = vld [vmem:[%s233 + $0x38] sm:$0xf]
        %v313 = vld [vmem:[%s233 + $0x3c] sm:$0xf]
        %v314 = vld [vmem:[%s233 + $0x40] sm:$0xf]
        %v315 = vld [vmem:[%s233 + $0x44] sm:$0xf]
        %v316 = vld [vmem:[%s233 + $0x48] sm:$0xf]
        %v317 = vld [vmem:[%s233 + $0x4c] sm:$0xf]
        %v318 = vld [vmem:[%s233 + $0x50] sm:$0xf]
        %v319 = vld [vmem:[%s233 + $0x54] sm:$0xf]
        %v320 = vld [vmem:[%s233 + $0x58] sm:$0xf]
        %v321 = vld [vmem:[%s233 + $0x5c] sm:$0xf]
        %v322 = vld [vmem:[%s233 + $0x60] sm:$0xf]
        %v323 = vld [vmem:[%s233 + $0x64] sm:$0xf]
        %v324 = vld [vmem:[%s233 + $0x68] sm:$0xf]
        %v325 = vld [vmem:[%s233 + $0x6c] sm:$0xf]
        %v326 = vld [vmem:[%s233 + $0x70] sm:$0xf]
        %v327 = vld [vmem:[%s233 + $0x74] sm:$0xf]
        %v328 = vld [vmem:[%s233 + $0x78] sm:$0xf]
        %v329 = vld [vmem:[%s233 + $0x7c] sm:$0xf]
        %v330 = vld [vmem:[%s233 + $0x80] sm:$0xf]
        %v331 = vld [vmem:[%s233 + $0x84] sm:$0xf]
        %v332 = vld [vmem:[%s233 + $0x88] sm:$0xf]
        %v333 = vld [vmem:[%s233 + $0x8c] sm:$0xf]
        %v334 = vld [vmem:[%s233 + $0x90] sm:$0xf]
        %v335 = vld [vmem:[%s233 + $0x94] sm:$0xf]
        %v336 = vld [vmem:[%s233 + $0x98] sm:$0xf]
        %v337 = vld [vmem:[%s233 + $0x9c] sm:$0xf]
        %v338 = vld [vmem:[%s233 + $0xa0] sm:$0xf]
        %v339 = vld [vmem:[%s233 + $0xa4] sm:$0xf]
        %v340 = vld [vmem:[%s233 + $0xa8] sm:$0xf]
        %v341 = vld [vmem:[%s233 + $0xac] sm:$0xf]
        %v342 = vld [vmem:[%s233 + $0xb0] sm:$0xf]
        %v343 = vld [vmem:[%s233 + $0xb4] sm:$0xf]
        %v344 = vld [vmem:[%s233 + $0xb8] sm:$0xf]
        %v345 = vld [vmem:[%s233 + $0xbc] sm:$0xf]
        %v346 = vld [vmem:[%s233 + $0xc0] sm:$0xf]
        %v347 = vld [vmem:[%s233 + $0xc4] sm:$0xf]
        %v348 = vld [vmem:[%s233 + $0xc8] sm:$0xf]
        %v349 = vld [vmem:[%s233 + $0xcc] sm:$0xf]
        %v350 = vld [vmem:[%s233 + $0xd0] sm:$0xf]
        %v351 = vld [vmem:[%s233 + $0xd4] sm:$0xf]
        %v352 = vld [vmem:[%s233 + $0xd8] sm:$0xf]
        %v353 = vld [vmem:[%s233 + $0xdc] sm:$0xf]
        %v354 = vld [vmem:[%s233 + $0xe0] sm:$0xf]
        %v355 = vld [vmem:[%s233 + $0xe4] sm:$0xf]
        %v356 = vld [vmem:[%s233 + $0xe8] sm:$0xf]
        %v357 = vld [vmem:[%s233 + $0xec] sm:$0xf]
        %v358 = vld [vmem:[%s233 + $0xf0] sm:$0xf]
        %v359 = vld [vmem:[%s233 + $0xf4] sm:$0xf]
        %v360 = vld [vmem:[%s233 + $0xf8] sm:$0xf]
        %v361 = vld [vmem:[%s233 + $0xfc] sm:$0xf]
        %v370 = vunpack.c.l.b16 %v290
        %v371 = vunpack.c.h.b16 %v290
        %v372 = vunpack.c.l.b16 %v291
        %v373 = vunpack.c.h.b16 %v291
        %v374 = vunpack.c.l.b16 %v292
        %v375 = vunpack.c.h.b16 %v292
        %v376 = vunpack.c.l.b16 %v293
        %v377 = vunpack.c.h.b16 %v293
        %v378 = vunpack.c.l.b16 %v294
        %v379 = vunpack.c.h.b16 %v294
        %v380 = vunpack.c.l.b16 %v295
        %v381 = vunpack.c.h.b16 %v295
        %v382 = vunpack.c.l.b16 %v296
        %v383 = vunpack.c.h.b16 %v296
        %v384 = vunpack.c.l.b16 %v297
        %v385 = vunpack.c.h.b16 %v297
        %v386 = vpack.c.b16 %v374, %v370
        %v387 = vpack.c.b16 %v375, %v371
        %v388 = vpack.c.b16 %v376, %v372
        %v389 = vpack.c.b16 %v377, %v373
        %v390 = vpack.c.b16 %v382, %v378
        %v391 = vpack.c.b16 %v383, %v379
        %v392 = vpack.c.b16 %v384, %v380
        %v393 = vpack.c.b16 %v385, %v381
        %v466 = vunpack.c.l.b16 %v298
        %v467 = vunpack.c.l.b16 %v299
        %v468 = vunpack.c.l.b16 %v300
        %v469 = vunpack.c.l.b16 %v301
        %v470 = vunpack.c.l.b16 %v302
        %v471 = vunpack.c.l.b16 %v303
        %v472 = vunpack.c.l.b16 %v304
        %v473 = vunpack.c.l.b16 %v305
        %v474 = vunpack.c.l.b16 %v306
        %v475 = vunpack.c.l.b16 %v307
        %v476 = vunpack.c.l.b16 %v308
        %v477 = vunpack.c.l.b16 %v309
        %v478 = vunpack.c.l.b16 %v310
        %v479 = vunpack.c.l.b16 %v311
        %v480 = vunpack.c.l.b16 %v312
        %v481 = vunpack.c.l.b16 %v313
        %v482 = vunpack.c.l.b16 %v314
        %v483 = vunpack.c.l.b16 %v315
        %v484 = vunpack.c.l.b16 %v316
        %v485 = vunpack.c.l.b16 %v317
        %v486 = vunpack.c.l.b16 %v318
        %v487 = vunpack.c.l.b16 %v319
        %v488 = vunpack.c.l.b16 %v320
        %v489 = vunpack.c.l.b16 %v321
        %v490 = vunpack.c.l.b16 %v322
        %v491 = vunpack.c.l.b16 %v323
        %v492 = vunpack.c.l.b16 %v324
        %v493 = vunpack.c.l.b16 %v325
        %v494 = vunpack.c.l.b16 %v326
        %v495 = vunpack.c.l.b16 %v327
        %v496 = vunpack.c.l.b16 %v328
        %v497 = vunpack.c.l.b16 %v329
        %v498 = vunpack.c.l.b16 %v330
        %v499 = vunpack.c.l.b16 %v331
        %v500 = vunpack.c.l.b16 %v332
        %v501 = vunpack.c.l.b16 %v333
        %v502 = vunpack.c.l.b16 %v334
        %v503 = vunpack.c.l.b16 %v335
        %v504 = vunpack.c.l.b16 %v336
        %v505 = vunpack.c.l.b16 %v337
        %v506 = vunpack.c.l.b16 %v338
        %v507 = vunpack.c.l.b16 %v339
        %v508 = vunpack.c.l.b16 %v340
        %v509 = vunpack.c.l.b16 %v341
        %v510 = vunpack.c.l.b16 %v342
        %v511 = vunpack.c.l.b16 %v343
        %v512 = vunpack.c.l.b16 %v344
        %v513 = vunpack.c.l.b16 %v345
        %v514 = vunpack.c.l.b16 %v346
        %v515 = vunpack.c.l.b16 %v347
        %v516 = vunpack.c.l.b16 %v348
        %v517 = vunpack.c.l.b16 %v349
        %v518 = vunpack.c.l.b16 %v350
        %v519 = vunpack.c.l.b16 %v351
        %v520 = vunpack.c.l.b16 %v352
        %v521 = vunpack.c.l.b16 %v353
        %v522 = vunpack.c.l.b16 %v354
        %v523 = vunpack.c.l.b16 %v355
        %v524 = vunpack.c.l.b16 %v356
        %v525 = vunpack.c.l.b16 %v357
        %v526 = vunpack.c.l.b16 %v358
        %v527 = vunpack.c.l.b16 %v359
        %v528 = vunpack.c.l.b16 %v360
        %v529 = vunpack.c.l.b16 %v361
        %v530 = vpack.c.b16 %v467, %v466
        %v531 = vpack.c.b16 %v469, %v468
        %v532 = vpack.c.b16 %v471, %v470
        %v533 = vpack.c.b16 %v473, %v472
        %v534 = vpack.c.b16 %v475, %v474
        %v535 = vpack.c.b16 %v477, %v476
        %v536 = vpack.c.b16 %v479, %v478
        %v537 = vpack.c.b16 %v481, %v480
        %v538 = vpack.c.b16 %v483, %v482
        %v539 = vpack.c.b16 %v485, %v484
        %v540 = vpack.c.b16 %v487, %v486
        %v541 = vpack.c.b16 %v489, %v488
        %v542 = vpack.c.b16 %v491, %v490
        %v543 = vpack.c.b16 %v493, %v492
        %v544 = vpack.c.b16 %v495, %v494
        %v545 = vpack.c.b16 %v497, %v496
        %v546 = vpack.c.b16 %v499, %v498
        %v547 = vpack.c.b16 %v501, %v500
        %v548 = vpack.c.b16 %v503, %v502
        %v549 = vpack.c.b16 %v505, %v504
        %v550 = vpack.c.b16 %v507, %v506
        %v551 = vpack.c.b16 %v509, %v508
        %v552 = vpack.c.b16 %v511, %v510
        %v553 = vpack.c.b16 %v513, %v512
        %v554 = vpack.c.b16 %v515, %v514
        %v555 = vpack.c.b16 %v517, %v516
        %v556 = vpack.c.b16 %v519, %v518
        %v557 = vpack.c.b16 %v521, %v520
        %v558 = vpack.c.b16 %v523, %v522
        %v559 = vpack.c.b16 %v525, %v524
        %v560 = vpack.c.b16 %v527, %v526
        %v561 = vpack.c.b16 %v529, %v528
        %594 = vmatprep.subr.bf16.mxu0 0
        %595 = vmatpush1.bf16.msra.mxu0 %v530
        %596 = vmatprep.subr.bf16.mxu0 0
        %597 = vmatpush1.bf16.msra.mxu0 %v531
        %598 = vmatprep.subr.bf16.mxu0 0
        %599 = vmatpush1.bf16.msra.mxu0 %v532
        %600 = vmatprep.subr.bf16.mxu0 0
        %601 = vmatpush1.bf16.msra.mxu0 %v533
        %602 = vmatprep.subr.bf16.mxu0 0
        %603 = vmatpush1.bf16.msra.mxu0 %v534
        %604 = vmatprep.subr.bf16.mxu0 0
        %605 = vmatpush1.bf16.msra.mxu0 %v535
        %606 = vmatprep.subr.bf16.mxu0 0
        %607 = vmatpush1.bf16.msra.mxu0 %v536
        %608 = vmatprep.subr.bf16.mxu0 0
        %609 = vmatpush1.bf16.msra.mxu0 %v537
        %610 = vmatprep.subr.bf16.mxu0 0
        %611 = vmatpush1.bf16.msra.mxu0 %v538
        %612 = vmatprep.subr.bf16.mxu0 0
        %613 = vmatpush1.bf16.msra.mxu0 %v539
        %614 = vmatprep.subr.bf16.mxu0 0
        %615 = vmatpush1.bf16.msra.mxu0 %v540
        %616 = vmatprep.subr.bf16.mxu0 0
        %617 = vmatpush1.bf16.msra.mxu0 %v541
        %618 = vmatprep.subr.bf16.mxu0 0
        %619 = vmatpush1.bf16.msra.mxu0 %v542
        %620 = vmatprep.subr.bf16.mxu0 0
        %621 = vmatpush1.bf16.msra.mxu0 %v543
        %622 = vmatprep.subr.bf16.mxu0 0
        %623 = vmatpush1.bf16.msra.mxu0 %v544
        %624 = vmatprep.subr.bf16.mxu0 0
        %625 = vmatpush1.bf16.msra.mxu0 %v545
        %626 = vmatprep.mubr.bf16.mxu0 %v387
        %627 = vmatmul.mubr.bf16.gmra.mrb[0].mxu0 %v386
        %v628 = vpop.f32.mrb[0].mxu0
        %v629 = vadd.f32 0.0, %v628
        %v630 = vpop.f32.mrb[0].mxu0
        %v631 = vpop.f32.mrb[0].mxu0
        %v632 = vadd.f32 0.0, %v631
        %v633 = vpop.f32.mrb[0].mxu0
        %634 = vmatprep.mubr.bf16.mxu0 %v391
        %635 = vmatmul.mubr.bf16.gmra.mrb[0].mxu0 %v390
        %v636 = vpop.f32.mrb[0].mxu0
        %v637 = vadd.f32 0.0, %v636
        %v638 = vpop.f32.mrb[0].mxu0
        %v639 = vpop.f32.mrb[0].mxu0
        %v640 = vadd.f32 0.0, %v639
        %v641 = vpop.f32.mrb[0].mxu0
        %642 = vdwg.mxu0
        %643 = vmatprep.subr.bf16.mxu0 0
        %644 = vmatpush1.bf16.msra.mxu0 %v546
        %645 = vmatprep.subr.bf16.mxu0 0
        %646 = vmatpush1.bf16.msra.mxu0 %v547
        %647 = vmatprep.subr.bf16.mxu0 0
        %648 = vmatpush1.bf16.msra.mxu0 %v548
        %649 = vmatprep.subr.bf16.mxu0 0
        %650 = vmatpush1.bf16.msra.mxu0 %v549
        %651 = vmatprep.subr.bf16.mxu0 0
        %652 = vmatpush1.bf16.msra.mxu0 %v550
        %653 = vmatprep.subr.bf16.mxu0 0
        %654 = vmatpush1.bf16.msra.mxu0 %v551
        %655 = vmatprep.subr.bf16.mxu0 0
        %656 = vmatpush1.bf16.msra.mxu0 %v552
        %657 = vmatprep.subr.bf16.mxu0 0
        %658 = vmatpush1.bf16.msra.mxu0 %v553
        %659 = vmatprep.subr.bf16.mxu0 0
        %660 = vmatpush1.bf16.msra.mxu0 %v554
        %661 = vmatprep.subr.bf16.mxu0 0
        %662 = vmatpush1.bf16.msra.mxu0 %v555
        %663 = vmatprep.subr.bf16.mxu0 0
        %664 = vmatpush1.bf16.msra.mxu0 %v556
        %665 = vmatprep.subr.bf16.mxu0 0
        %666 = vmatpush1.bf16.msra.mxu0 %v557
        %667 = vmatprep.subr.bf16.mxu0 0
        %668 = vmatpush1.bf16.msra.mxu0 %v558
        %669 = vmatprep.subr.bf16.mxu0 0
        %670 = vmatpush1.bf16.msra.mxu0 %v559
        %671 = vmatprep.subr.bf16.mxu0 0
        %672 = vmatpush1.bf16.msra.mxu0 %v560
        %673 = vmatprep.subr.bf16.mxu0 0
        %674 = vmatpush1.bf16.msra.mxu0 %v561
        %675 = vmatprep.mubr.bf16.mxu0 %v389
        %676 = vmatmul.mubr.bf16.gmra.mrb[0].mxu0 %v388
        %v677 = vpop.f32.mrb[0].mxu0
        %v678 = vadd.f32 %v629, %v677
        %v679 = vpop.f32.mrb[0].mxu0
        %v680 = vpop.f32.mrb[0].mxu0
        %v681 = vadd.f32 %v632, %v680
        %v682 = vpop.f32.mrb[0].mxu0
        %683 = vmatprep.mubr.bf16.mxu0 %v393
        %684 = vmatmul.mubr.bf16.gmra.mrb[0].mxu0 %v392
        %v685 = vpop.f32.mrb[0].mxu0
        %v686 = vadd.f32 %v637, %v685
        %v687 = vpop.f32.mrb[0].mxu0
        %v688 = vpop.f32.mrb[0].mxu0
        %v689 = vadd.f32 %v640, %v688
        %v690 = vpop.f32.mrb[0].mxu0
        %691 = vdwg.mxu0
        %v692 = vadd.f32 %v286, %v678
        %v693 = vadd.f32 %v287, %v681
        %v694 = vadd.f32 %v288, %v686
        %v695 = vadd.f32 %v289, %v689
        %696 = vst [vmem:[#allocation2] sm:$0xff] %v692
        %697 = vst [vmem:[#allocation2 + $0x8] sm:$0xff] %v693
        %698 = vst [vmem:[#allocation2 + $0x10] sm:$0xff] %v694
        %699 = vst [vmem:[#allocation2 + $0x18] sm:$0xff] %v695
        %p700 = scmp.eq.s32.totalorder %s23, 1
        // Predicated region
        $region60: #{encoder_forward.9} parent=46 // pred_check
          %p701 = pneg %p700
        $region61: #{encoder_forward.9} parent=46 // pred_check_branch
          %703 = sbr.rel (%p701) target = $region63
        $region62: #{encoder_forward.9} parent=46 // pred_region
          %v704 = vld [vmem:[#allocation2] sm:$0xff]
          %v705 = vld [vmem:[#allocation2 + $0x8] sm:$0xff]
          %v706 = vld [vmem:[#allocation2 + $0x10] sm:$0xff]
          %v707 = vld [vmem:[#allocation2 + $0x18] sm:$0xff]
          %708 = vst [vmem:[%s271] sm:$0xff] %v704
          %709 = vst [vmem:[%s271 + $0x8] sm:$0xff] %v705
          %710 = vst [vmem:[%s271 + $0x10] sm:$0xff] %v706
          %711 = vst [vmem:[%s271 + $0x18] sm:$0xff] %v707
          %v712 = vadd.f32 %v704, %v705
          %v713 = vadd.f32 %v712, %v706
          %v714 = vadd.f32 %v713, %v707
          %v715 = vrot.slane %v714, 4
          %v716 = vadd.f32 %v714, %v715
          %v717 = vrot.slane %v716, 2
          %v718 = vadd.f32 %v716, %v717
          %v719 = vrot.slane %v718, 1
          %v720 = vadd.f32 %v718, %v719
          %721 = vst [vmem:[%s276] sm:$0x1] %v720
          %v722 = vmul.f32 %v704, %v704
          %v723 = vmul.f32 %v705, %v705
          %v724 = vmul.f32 %v706, %v706
          %v725 = vmul.f32 %v707, %v707
          %v726 = vadd.f32 %v722, %v723
          %v727 = vadd.f32 %v726, %v724
          %v728 = vadd.f32 %v727, %v725
          %v729 = vrot.slane %v728, 4
          %v730 = vadd.f32 %v728, %v729
          %v731 = vrot.slane %v730, 2
          %v732 = vadd.f32 %v730, %v731
          %v733 = vrot.slane %v732, 1
          %v734 = vadd.f32 %v732, %v733
          %735 = vst [vmem:[%s276 + $0x1] sm:$0x1] %v734
        $region63: #{encoder_forward.9} parent=46 // pred_fallthru
          _
        %s736 = smul.u32 4, %s22
        %p737 = scmp.lt.s32.totalorder %s736, 3
        %s738 = scalar_select %p737, %s736, 3
        %s739 = smul.addr %s738, 8
        %s740 = scalar_lea.vmem %s2, %s739
        %p741 = scmp.lt.s32.totalorder %s22, 0
        %s742 = scalar_select %p741, %s22, 0
        %s743 = smul.addr %s742, 8
        %s744 = scalar_lea.vmem %s3, %s743
        // Predicated region
        $region64: #{encoder_forward.9} parent=46 // pred_check
          %p745 = pneg %p102
        $region65: #{encoder_forward.9} parent=46 // pred_check_branch
          %747 = sbr.rel (%p745) target = $region67
        $region66: #{encoder_forward.9} parent=46 // pred_region
          %s748 = smul.u32 4, %s22
        $region67: #{encoder_forward.9} parent=46 // pred_fallthru
          _
        // Predicated region
        $region68: #{encoder_forward.9} parent=46 // pred_check
          %p749 = pneg %p128
        $region69: #{encoder_forward.9} parent=46 // pred_check_branch
          %751 = sbr.rel (%p749) target = $region71
        $region70: #{encoder_forward.9} parent=46 // pred_region
          _
        $region71: #{encoder_forward.9} parent=46 // pred_fallthru
          _
        // Predicated region
        $region72: #{encoder_forward.9} parent=46 // pred_check
          %p752 = pneg %p102
        $region73: #{encoder_forward.9} parent=46 // pred_check_branch
          %754 = sbr.rel (%p752) target = $region75
        $region74: #{encoder_forward.9} parent=46 // pred_region
          %s755 = smul.u32 4, %s22
          %p756 = scmp.lt.s32.totalorder %s755, 3
          %s757 = scalar_select %p756, %s755, 3
          %s758 = smul.addr %s757, 8
          %s759 = scalar_lea.vmem %s2, %s758
        $region75: #{encoder_forward.9} parent=46 // pred_fallthru
          _
        // Predicated region
        $region76: #{encoder_forward.9} parent=46 // pred_check
          %p760 = pneg %p128
        $region77: #{encoder_forward.9} parent=46 // pred_check_branch
          %762 = sbr.rel (%p760) target = $region79
        $region78: #{encoder_forward.9} parent=46 // pred_region
          %p763 = scmp.lt.s32.totalorder %s22, 0
          %s764 = scalar_select %p763, %s22, 0
          %s765 = smul.addr %s764, 8
          %s766 = scalar_lea.vmem %s3, %s765
        $region79: #{encoder_forward.9} parent=46 // pred_fallthru
          _
      $region47: #{encoder_forward.9} parent=5 // pred_fallthru
        _
      %p767 = scmp.le.s32.totalorder 2, %s13
      // Predicated region
      $region80: #{encoder_forward.9} parent=5 // pred_check
        %p768 = pneg %p767
      $region81: #{encoder_forward.9} parent=5 // pred_check_branch
        %770 = sbr.rel (%p768) target = $region83
      $region82: #{encoder_forward.9} parent=5 // pred_region
        %s771 = ssub.s32 %s13, 2
      $region83: #{encoder_forward.9} parent=5 // pred_fallthru
        _
    $region6: #{encoder_forward.9} parent=1 // loop_footer
      %s17 = sadd.s32 1, %s13
    $region7: #{encoder_forward.9} parent=1 // loop_footer_branch
      %12 = sbr.rel target = $region3
    $region8: #{encoder_forward.9} parent=1 // loop_exit
      _
    %772 = vsyncpa [#allocation5], 1
    %s773 = scalar_lea.sflag [#allocation5], 1
    %774 = vsyncpa %s773, 1

// kernel: encoder_forward.11
$region0: #{encoder_forward.11}
  #allocation0 [shape = 'u32[]', space=smem, size = 0x4, offset = 0x4, fixed_abs, tag = 'smem constant byte address 0x4 - core index']
  #allocation1 [shape = 'u32[144,128]{1,0:T(1,128)}', space=vmem, size = 0x12000, scoped, tag = 'internal scratch']
  #allocation2 [shape = 'f32[2,1024]{1,0:T(2,128)}', space=vmem, size = 0x2000, scoped, tag = 'scratch operand']
  %s0 = inlined_call_operand.vmem [shape: bf16[2,2048], index: 0, kind: input, shape index: {}]
  %s1 = inlined_call_operand.hbm [shape: bf16[2048,1024], index: 1, kind: input, shape index: {}]
  %s2 = inlined_call_operand.hbm [shape: f32[1,1024], index: 2, kind: input, shape index: {}]
  %s3 = inlined_call_operand.hbm [shape: f32[1,1024], index: 3, kind: input, shape index: {}]
  %s4 = inlined_call_operand.hbm [shape: bf16[1024,384], index: 4, kind: input, shape index: {}]
  %s5 = inlined_call_operand.vmem [shape: f32[1,384], index: 5, kind: input, shape index: {}]
  %s6 = inlined_call_operand.vmem [shape: f32[2,128], index: 6, kind: input, shape index: {}]
  %s7 = inlined_call_operand.vmem [shape: f32[2,128], index: 7, kind: input, shape index: {}]
  %s8 = inlined_call_operand.hbm [shape: f32[2,128], index: 8, kind: output, shape index: {0}]
  %s9 = inlined_call_operand.hbm [shape: f32[2,128], index: 9, kind: output, shape index: {1}]
  %s10 = inlined_call_operand.hbm [shape: f32[2,128], index: 10, kind: output, shape index: {2}]
  %11 = xla_tuple %s8, %s9, %s10
  %s12 = sld [smem:[#allocation0]]
  $region105: #{encoder_forward.11} parent=0
    _
  %s14 = ssub.s32 1, %s12
  %s15 = scalar_select 0, %s14, %s12
  $region1: #{encoder_forward.11} parent=0
    #allocation3 [shape = 'u8[2097152]{0}', space=vmem, size = 0x200000, scoped, tag = 'input window, operand 1']
    #allocation4 [shape = 's32[2]{0}', space=sflag, size = 0x8, scoped, tag = 'scoped memory for encoder_forward.11']
    #allocation5 [shape = 's32[2]{0}', space=sflag, size = 0x8, scoped, tag = 'scoped memory for encoder_forward.11']
    #allocation6 [shape = 'u8[4096]{0}', space=vmem, size = 0x1000, scoped, tag = 'input window, operand 2, single buffered']
    #allocation7 [shape = 's32[1]{0}', space=sflag, size = 0x4, scoped, tag = 'scoped memory for encoder_forward.11']
    #allocation8 [shape = 'u8[4096]{0}', space=vmem, size = 0x1000, scoped, tag = 'input window, operand 3, single buffered']
    #allocation9 [shape = 'u8[786432]{0}', space=vmem, size = 0xc0000, scoped, tag = 'input window, operand 4, single buffered']
    #allocation10 [shape = 's32[1]{0}', space=sflag, size = 0x4, scoped, tag = 'scoped memory for encoder_forward.11']
    #allocation11 [shape = 'u8[1024]{0}', space=vmem, size = 0x400, scoped, tag = 'output window, operand 0, single buffered']
    #allocation12 [shape = 'u8[1024]{0}', space=vmem, size = 0x400, scoped, tag = 'output window, operand 1, single buffered']
    #allocation13 [shape = 's32[1]{0}', space=sflag, size = 0x4, scoped, tag = 'scoped memory for encoder_forward.11']
    #allocation14 [shape = 'u8[1024]{0}', space=vmem, size = 0x400, scoped, tag = 'output window, operand 2, single buffered']
    %16 = vsyncpa [#allocation4], 0
    %s17 = scalar_lea.sflag [#allocation4], 1
    %18 = vsyncpa %s17, 0
    %19 = vsyncpa [#allocation7], 0
    %20 = vsyncpa [#allocation10], 0
    %21 = vsyncpa [#allocation5], 0
    %22 = vsyncpa [#allocation13], 0
    loop: start=0, step=1, limit=6
    $region2: #{encoder_forward.11} parent=1 // loop_pre_header
      _
    $region3: #{encoder_forward.11} parent=1 // loop_header
      %s24 = sphi 0, %s28
      %p25 = scmp.ge.s32.totalorder %s24, 6
      %s34 = sphi 0, %s36
      %s37 = sphi 0, %s34
      %s38 = sphi 0, %s37
      %s54 = sphi 0, %s38
      %s60 = sphi 0, %s62
      %s63 = sphi 0, %s60
      %s64 = sphi 0, %s63
      %s80 = sphi 0, %s64
      %s84 = sphi 0, %s84
      %s86 = sphi 0, %s84
      %s87 = sphi 0, %s86
      %s101 = sphi 0, %s87
      %s105 = sphi 0, %s105
      %s107 = sphi 0, %s105
      %s108 = sphi 0, %s107
      %s122 = sphi 0, %s108
      %s126 = sphi 0, %s126
      %s128 = sphi 0, %s126
      %s129 = sphi 0, %s128
      %s143 = sphi 0, %s129
      %s147 = sphi 0, %s147
      %s149 = sphi 0, %s147
      %s150 = sphi 0, %s149
      %s164 = sphi 0, %s150
      %s168 = sphi 0, %s168
      %s170 = sphi 0, %s168
      %s171 = sphi 0, %s170
      %s185 = sphi 0, %s171
      %s189 = sphi 0, %s189
      %s191 = sphi 0, %s189
      %s192 = sphi 0, %s191
      %s206 = sphi 0, %s192
      %s210 = sphi 0, %s210
      %s212 = sphi 0, %s210
      %s213 = sphi 0, %s212
      %s227 = sphi 0, %s213
      %s231 = sphi 0, %s231
      %s233 = sphi 0, %s231
      %s234 = sphi 0, %s233
      %s248 = sphi 0, %s234
      %s252 = sphi 0, %s252
      %s254 = sphi 0, %s252
      %s255 = sphi 0, %s254
      %s269 = sphi 0, %s255
    $region4: #{encoder_forward.11} parent=1 // loop_header_branch
      %27 = sbr.rel (%p25) target = $region8
    $region5: #{encoder_forward.11} parent=1 // loop_body
      %s29 = ssub.s32 %s24, 1
      %s30 = ssub.s32 %s24, 2
      %s31 = sadd.s32 %s24, 1
      %s32 = ssub.s32 %s24, %s31
      %p33 = scmp.eq.s32.totalorder %s32, 0
      %s35 = sadd.s32 %s34, 1
      %s36 = scalar_select %p33, %s34, %s35
      %p39 = pneg %p33
      %p40 = scmp.eq.s32.totalorder %s24, 3
      %p41 = por %p39, %p40
      %p42 = scmp.ne.s32.totalorder %s34, %s37
      %p43 = scmp.eq.s32.totalorder %s24, 0
      %p44 = por %p42, %p43
      %p45 = scmp.ne.s32.totalorder %s34, %s37
      %p46 = scmp.eq.s32.totalorder %s29, 3
      %p47 = por %p45, %p46
      %p48 = scmp.ne.s32.totalorder %s37, %s38
      %p49 = scmp.eq.s32.totalorder %s29, 0
      %p50 = por %p48, %p49
      %p51 = scmp.ne.s32.totalorder %s37, %s38
      %p52 = scmp.eq.s32.totalorder %s30, 3
      %p53 = por %p51, %p52
      %p55 = scmp.ne.s32.totalorder %s38, %s54
      %p56 = scmp.eq.s32.totalorder %s30, 0
      %p57 = por %p55, %p56
      %s58 = ssub.s32 %s24, %s31
      %p59 = scmp.eq.s32.totalorder %s58, 0
      %s61 = sadd.s32 %s60, 1
      %s62 = scalar_select %p59, %s60, %s61
      %p65 = pneg %p59
      %p66 = scmp.eq.s32.totalorder %s24, 3
      %p67 = por %p65, %p66
      %p68 = scmp.ne.s32.totalorder %s60, %s63
      %p69 = scmp.eq.s32.totalorder %s24, 0
      %p70 = por %p68, %p69
      %p71 = scmp.ne.s32.totalorder %s60, %s63
      %p72 = scmp.eq.s32.totalorder %s29, 3
      %p73 = por %p71, %p72
      %p74 = scmp.ne.s32.totalorder %s63, %s64
      %p75 = scmp.eq.s32.totalorder %s29, 0
      %p76 = por %p74, %p75
      %p77 = scmp.ne.s32.totalorder %s63, %s64
      %p78 = scmp.eq.s32.totalorder %s30, 3
      %p79 = por %p77, %p78
      %p81 = scmp.ne.s32.totalorder %s64, %s80
      %p82 = scmp.eq.s32.totalorder %s30, 0
      %p83 = por %p81, %p82
      %s85 = sadd.s32 %s84, 1
      %p88 = scmp.eq.s32.totalorder %s24, 3
      %p89 = scmp.ne.s32.totalorder %s84, %s86
      %p90 = scmp.eq.s32.totalorder %s24, 0
      %p91 = por %p89, %p90
      %p92 = scmp.ne.s32.totalorder %s84, %s86
      %p93 = scmp.eq.s32.totalorder %s29, 3
      %p94 = por %p92, %p93
      %p95 = scmp.ne.s32.totalorder %s86, %s87
      %p96 = scmp.eq.s32.totalorder %s29, 0
      %p97 = por %p95, %p96
      %p98 = scmp.ne.s32.totalorder %s86, %s87
      %p99 = scmp.eq.s32.totalorder %s30, 3
      %p100 = por %p98, %p99
      %p102 = scmp.ne.s32.totalorder %s87, %s101
      %p103 = scmp.eq.s32.totalorder %s30, 0
      %p104 = por %p102, %p103
      %s106 = sadd.s32 %s105, 1
      %p109 = scmp.eq.s32.totalorder %s24, 3
      %p110 = scmp.ne.s32.totalorder %s105, %s107
      %p111 = scmp.eq.s32.totalorder %s24, 0
      %p112 = por %p110, %p111
      %p113 = scmp.ne.s32.totalorder %s105, %s107
      %p114 = scmp.eq.s32.totalorder %s29, 3
      %p115 = por %p113, %p114
      %p116 = scmp.ne.s32.totalorder %s107, %s108
      %p117 = scmp.eq.s32.totalorder %s29, 0
      %p118 = por %p116, %p117
      %p119 = scmp.ne.s32.totalorder %s107, %s108
      %p120 = scmp.eq.s32.totalorder %s30, 3
      %p121 = por %p119, %p120
      %p123 = scmp.ne.s32.totalorder %s108, %s122
      %p124 = scmp.eq.s32.totalorder %s30, 0
      %p125 = por %p123, %p124
      %s127 = sadd.s32 %s126, 1
      %p130 = scmp.eq.s32.totalorder %s24, 3
      %p131 = scmp.ne.s32.totalorder %s126, %s128
      %p132 = scmp.eq.s32.totalorder %s24, 0
      %p133 = por %p131, %p132
      %p134 = scmp.ne.s32.totalorder %s126, %s128
      %p135 = scmp.eq.s32.totalorder %s29, 3
      %p136 = por %p134, %p135
      %p137 = scmp.ne.s32.totalorder %s128, %s129
      %p138 = scmp.eq.s32.totalorder %s29, 0
      %p139 = por %p137, %p138
      %p140 = scmp.ne.s32.totalorder %s128, %s129
      %p141 = scmp.eq.s32.totalorder %s30, 3
      %p142 = por %p140, %p141
      %p144 = scmp.ne.s32.totalorder %s129, %s143
      %p145 = scmp.eq.s32.totalorder %s30, 0
      %p146 = por %p144, %p145
      %s148 = sadd.s32 %s147, 1
      %p151 = scmp.eq.s32.totalorder %s24, 3
      %p152 = scmp.ne.s32.totalorder %s147, %s149
      %p153 = scmp.eq.s32.totalorder %s24, 0
      %p154 = por %p152, %p153
      %p155 = scmp.ne.s32.totalorder %s147, %s149
      %p156 = scmp.eq.s32.totalorder %s29, 3
      %p157 = por %p155, %p156
      %p158 = scmp.ne.s32.totalorder %s149, %s150
      %p159 = scmp.eq.s32.totalorder %s29, 0
      %p160 = por %p158, %p159
      %p161 = scmp.ne.s32.totalorder %s149, %s150
      %p162 = scmp.eq.s32.totalorder %s30, 3
      %p163 = por %p161, %p162
      %p165 = scmp.ne.s32.totalorder %s150, %s164
      %p166 = scmp.eq.s32.totalorder %s30, 0
      %p167 = por %p165, %p166
      %s169 = sadd.s32 %s168, 1
      %p172 = scmp.eq.s32.totalorder %s24, 3
      %p173 = scmp.ne.s32.totalorder %s168, %s170
      %p174 = scmp.eq.s32.totalorder %s24, 0
      %p175 = por %p173, %p174
      %p176 = scmp.ne.s32.totalorder %s168, %s170
      %p177 = scmp.eq.s32.totalorder %s29, 3
      %p178 = por %p176, %p177
      %p179 = scmp.ne.s32.totalorder %s170, %s171
      %p180 = scmp.eq.s32.totalorder %s29, 0
      %p181 = por %p179, %p180
      %p182 = scmp.ne.s32.totalorder %s170, %s171
      %p183 = scmp.eq.s32.totalorder %s30, 3
      %p184 = por %p182, %p183
      %p186 = scmp.ne.s32.totalorder %s171, %s185
      %p187 = scmp.eq.s32.totalorder %s30, 0
      %p188 = por %p186, %p187
      %s190 = sadd.s32 %s189, 1
      %p193 = scmp.eq.s32.totalorder %s24, 3
      %p194 = scmp.ne.s32.totalorder %s189, %s191
      %p195 = scmp.eq.s32.totalorder %s24, 0
      %p196 = por %p194, %p195
      %p197 = scmp.ne.s32.totalorder %s189, %s191
      %p198 = scmp.eq.s32.totalorder %s29, 3
      %p199 = por %p197, %p198
      %p200 = scmp.ne.s32.totalorder %s191, %s192
      %p201 = scmp.eq.s32.totalorder %s29, 0
      %p202 = por %p200, %p201
      %p203 = scmp.ne.s32.totalorder %s191, %s192
      %p204 = scmp.eq.s32.totalorder %s30, 3
      %p205 = por %p203, %p204
      %p207 = scmp.ne.s32.totalorder %s192, %s206
      %p208 = scmp.eq.s32.totalorder %s30, 0
      %p209 = por %p207, %p208
      %s211 = sadd.s32 %s210, 1
      %p214 = scmp.eq.s32.totalorder %s24, 3
      %p215 = scmp.ne.s32.totalorder %s210, %s212
      %p216 = scmp.eq.s32.totalorder %s24, 0
      %p217 = por %p215, %p216
      %p218 = scmp.ne.s32.totalorder %s210, %s212
      %p219 = scmp.eq.s32.totalorder %s29, 3
      %p220 = por %p218, %p219
      %p221 = scmp.ne.s32.totalorder %s212, %s213
      %p222 = scmp.eq.s32.totalorder %s29, 0
      %p223 = por %p221, %p222
      %p224 = scmp.ne.s32.totalorder %s212, %s213
      %p225 = scmp.eq.s32.totalorder %s30, 3
      %p226 = por %p224, %p225
      %p228 = scmp.ne.s32.totalorder %s213, %s227
      %p229 = scmp.eq.s32.totalorder %s30, 0
      %p230 = por %p228, %p229
      %s232 = sadd.s32 %s231, 1
      %p235 = scmp.eq.s32.totalorder %s24, 3
      %p236 = scmp.ne.s32.totalorder %s231, %s233
      %p237 = scmp.eq.s32.totalorder %s24, 0
      %p238 = por %p236, %p237
      %p239 = scmp.ne.s32.totalorder %s231, %s233
      %p240 = scmp.eq.s32.totalorder %s29, 3
      %p241 = por %p239, %p240
      %p242 = scmp.ne.s32.totalorder %s233, %s234
      %p243 = scmp.eq.s32.totalorder %s29, 0
      %p244 = por %p242, %p243
      %p245 = scmp.ne.s32.totalorder %s233, %s234
      %p246 = scmp.eq.s32.totalorder %s30, 3
      %p247 = por %p245, %p246
      %p249 = scmp.ne.s32.totalorder %s234, %s248
      %p250 = scmp.eq.s32.totalorder %s30, 0
      %p251 = por %p249, %p250
      %s253 = sadd.s32 %s252, 1
      %p256 = scmp.eq.s32.totalorder %s24, 3
      %p257 = scmp.ne.s32.totalorder %s252, %s254
      %p258 = scmp.eq.s32.totalorder %s24, 0
      %p259 = por %p257, %p258
      %p260 = scmp.ne.s32.totalorder %s252, %s254
      %p261 = scmp.eq.s32.totalorder %s29, 3
      %p262 = por %p260, %p261
      %p263 = scmp.ne.s32.totalorder %s254, %s255
      %p264 = scmp.eq.s32.totalorder %s29, 0
      %p265 = por %p263, %p264
      %p266 = scmp.ne.s32.totalorder %s254, %s255
      %p267 = scmp.eq.s32.totalorder %s30, 3
      %p268 = por %p266, %p267
      %p270 = scmp.ne.s32.totalorder %s255, %s269
      %p271 = scmp.eq.s32.totalorder %s30, 0
      %p272 = por %p270, %p271
      %p273 = scmp.le.s32.totalorder 1, %s24
      %p274 = scmp.lt.s32.totalorder %s24, 5
      %p275 = pnand %p273, %p274
      %p276 = pneg %p275
      // Predicated region
      $region9: #{encoder_forward.11} parent=5 // pred_check
        _
      $region10: #{encoder_forward.11} parent=5 // pred_check_branch
        %278 = sbr.rel (%p275) target = $region12
      $region11: #{encoder_forward.11} parent=5 // pred_region
        %s279 = ssub.s32 %s24, 1
        // Predicated region
        $region13: #{encoder_forward.11} parent=11 // pred_check
          %p280 = pneg %p97
        $region14: #{encoder_forward.11} parent=11 // pred_check_branch
          %282 = sbr.rel (%p280) target = $region16
        $region15: #{encoder_forward.11} parent=11 // pred_region
          %s284 = ssub.s32 128, 128
          %285 = vsyncadd [#allocation7], %s284
          %s287 = sshll.u32 [#allocation6], 4
          %s288 = int_to_ptr.vmem [resolvable:$true] %s287
          %290 = dma.hbm_to_vmem [thread:$0]  %s2, 128, %s288, [#allocation7]
        $region16: #{encoder_forward.11} parent=11 // pred_fallthru
          _
        // Predicated region
        $region17: #{encoder_forward.11} parent=11 // pred_check
          %p291 = pneg %p118
        $region18: #{encoder_forward.11} parent=11 // pred_check_branch
          %293 = sbr.rel (%p291) target = $region20
        $region19: #{encoder_forward.11} parent=11 // pred_region
          %s295 = ssub.s32 128, 128
          %296 = vsyncadd [#allocation7], %s295
          %s298 = sshll.u32 [#allocation8], 4
          %s299 = int_to_ptr.vmem [resolvable:$true] %s298
          %301 = dma.hbm_to_vmem [thread:$0]  %s3, 128, %s299, [#allocation7]
        $region20: #{encoder_forward.11} parent=11 // pred_fallthru
          _
        // Predicated region
        $region21: #{encoder_forward.11} parent=11 // pred_check
          %p302 = pneg %p139
        $region22: #{encoder_forward.11} parent=11 // pred_check_branch
          %304 = sbr.rel (%p302) target = $region24
        $region23: #{encoder_forward.11} parent=11 // pred_region
          %s306 = ssub.s32 24576, 24576
          %307 = vsyncadd [#allocation10], %s306
          %s308 = sshll.u32 [#allocation9], 4
          %s309 = int_to_ptr.vmem [resolvable:$true] %s308
          %314 = dma.hbm_to_vmem [thread:$0]  %s4, 24576, %s309, [#allocation10], 192, 192, 12
        $region24: #{encoder_forward.11} parent=11 // pred_fallthru
          _
        // Predicated region
        $region25: #{encoder_forward.11} parent=11 // pred_check
          %p315 = pneg %p160
        $region26: #{encoder_forward.11} parent=11 // pred_check_branch
          %317 = sbr.rel (%p315) target = $region28
        $region27: #{encoder_forward.11} parent=11 // pred_region
          _
        $region28: #{encoder_forward.11} parent=11 // pred_fallthru
          _
        // Predicated region
        $region29: #{encoder_forward.11} parent=11 // pred_check
          %p318 = pneg %p181
        $region30: #{encoder_forward.11} parent=11 // pred_check_branch
          %320 = sbr.rel (%p318) target = $region32
        $region31: #{encoder_forward.11} parent=11 // pred_region
          _
        $region32: #{encoder_forward.11} parent=11 // pred_fallthru
          _
        // Predicated region
        $region33: #{encoder_forward.11} parent=11 // pred_check
          %p321 = pneg %p202
        $region34: #{encoder_forward.11} parent=11 // pred_check_branch
          %323 = sbr.rel (%p321) target = $region36
        $region35: #{encoder_forward.11} parent=11 // pred_region
          _
        $region36: #{encoder_forward.11} parent=11 // pred_fallthru
          _
      $region12: #{encoder_forward.11} parent=5 // pred_fallthru
        _
      %p324 = scmp.lt.s32.totalorder %s24, 4
      // Predicated region
      $region37: #{encoder_forward.11} parent=5 // pred_check
        %p325 = pneg %p324
      $region38: #{encoder_forward.11} parent=5 // pred_check_branch
        %327 = sbr.rel (%p325) target = $region40
      $region39: #{encoder_forward.11} parent=5 // pred_region
        // Predicated region
        $region41: #{encoder_forward.11} parent=39 // pred_check
          %p328 = pneg %p44
        $region42: #{encoder_forward.11} parent=39 // pred_check_branch
          %330 = sbr.rel (%p328) target = $region44
        $region43: #{encoder_forward.11} parent=39 // pred_region
          %s331 = smul.u32 4, %s24
          %p332 = scmp.lt.s32.totalorder %s331, 15
          %s333 = scalar_select %p332, %s331, 15
          %s334 = scalar_lea.vmem %s0, %s333
          %s335 = smul.u32 4, %s24
        $region44: #{encoder_forward.11} parent=39 // pred_fallthru
          _
        // Predicated region
        $region45: #{encoder_forward.11} parent=39 // pred_check
          %p336 = pneg %p70
        $region46: #{encoder_forward.11} parent=39 // pred_check_branch
          %338 = sbr.rel (%p336) target = $region48
        $region47: #{encoder_forward.11} parent=39 // pred_region
          %s339 = sand.u32 %s60, 1
          %s340 = scalar_lea.sflag [#allocation4], %s339
          %s341 = sand.u32 %s60, 1
          %s342 = smul.addr %s341, 2048
          %s343 = scalar_lea.vmem [#allocation3], %s342
          %s344 = smul.u32 64, %s24
          %s346 = ssub.s32 32768, 32768
          %347 = vsyncadd %s340, %s346
          %s348 = smul.addr %s344, 8
          %s349 = smul.addr %s348, 64
          %s350 = scalar_lea.hbm %s1, %s349
          %s351 = sshll.u32 %s343, 4
          %s352 = int_to_ptr.vmem [resolvable:$true] %s351
          %357 = dma.hbm_to_vmem [thread:$0]  %s350, 32768, %s352, %s340, 512, 512, 32
        $region48: #{encoder_forward.11} parent=39 // pred_fallthru
          _
      $region40: #{encoder_forward.11} parent=5 // pred_fallthru
        _
      %p358 = scmp.le.s32.totalorder 1, %s24
      %p359 = scmp.lt.s32.totalorder %s24, 5
      %p360 = pnand %p358, %p359
      %p361 = pneg %p360
      // Predicated region
      $region49: #{encoder_forward.11} parent=5 // pred_check
        _
      $region50: #{encoder_forward.11} parent=5 // pred_check_branch
        %363 = sbr.rel (%p360) target = $region52
      $region51: #{encoder_forward.11} parent=5 // pred_region
        %s364 = ssub.s32 %s24, 1
        %s365 = sand.u32 %s63, 1
        %s366 = scalar_lea.sflag [#allocation4], %s365
        %s367 = sand.u32 %s63, 1
        %s368 = smul.addr %s367, 2048
        %s369 = scalar_lea.vmem [#allocation3], %s368
        // Predicated region
        $region53: #{encoder_forward.11} parent=51 // pred_check
          %p370 = pneg %p76
        $region54: #{encoder_forward.11} parent=51 // pred_check_branch
          %372 = sbr.rel (%p370) target = $region56
        $region55: #{encoder_forward.11} parent=51 // pred_region
          %373 = dma.done %s366, 32768
        $region56: #{encoder_forward.11} parent=51 // pred_fallthru
          _
        // Predicated region
        $region57: #{encoder_forward.11} parent=51 // pred_check
          %p374 = pneg %p97
        $region58: #{encoder_forward.11} parent=51 // pred_check_branch
          %376 = sbr.rel (%p374) target = $region60
        $region59: #{encoder_forward.11} parent=51 // pred_region
          %377 = dma.done [#allocation7], 128
        $region60: #{encoder_forward.11} parent=51 // pred_fallthru
          _
        // Predicated region
        $region61: #{encoder_forward.11} parent=51 // pred_check
          %p378 = pneg %p118
        $region62: #{encoder_forward.11} parent=51 // pred_check_branch
          %380 = sbr.rel (%p378) target = $region64
        $region63: #{encoder_forward.11} parent=51 // pred_region
          %381 = dma.done [#allocation7], 128
        $region64: #{encoder_forward.11} parent=51 // pred_fallthru
          _
        // Predicated region
        $region65: #{encoder_forward.11} parent=51 // pred_check
          %p382 = pneg %p139
        $region66: #{encoder_forward.11} parent=51 // pred_check_branch
          %384 = sbr.rel (%p382) target = $region68
        $region67: #{encoder_forward.11} parent=51 // pred_region
          %385 = dma.done [#allocation10], 24576
        $region68: #{encoder_forward.11} parent=51 // pred_fallthru
          _
        %s386 = smul.u32 4, %s29
        %p387 = scmp.lt.s32.totalorder %s386, 15
        %s388 = scalar_select %p387, %s386, 15
        %s389 = scalar_lea.vmem %s0, %s388
        %p390 = pneg %p50
        %p391 = pneg %p47
        %s392 = sand.u32 %s63, 1
        %s393 = scalar_lea.sflag [#allocation4], %s392
        %s394 = sand.u32 %s63, 1
        %s395 = smul.addr %s394, 2048
        %s396 = scalar_lea.vmem [#allocation3], %s395
        %p397 = pneg %p76
        %p398 = pneg %p73
        %p399 = pneg %p97
        %p400 = pneg %p94
        %p401 = pneg %p118
        %p402 = pneg %p115
        %p403 = pneg %p139
        %p404 = pneg %p136
        %p405 = pneg %p160
        %p406 = pneg %p157
        %p407 = pneg %p181
        %p408 = pneg %p178
        %p409 = pneg %p202
        %p410 = pneg %p199
        %p411 = pneg %p223
        %p412 = pneg %p220
        %p413 = pneg %p244
        %p414 = pneg %p241
        %p415 = pneg %p265
        %p416 = pneg %p262
        %s417 = smul.u32 4, %s29
        %p418 = scmp.lt.s32.totalorder %s417, 15
        %s419 = scalar_select %p418, %s417, 15
        %s420 = scalar_lea.vmem %s0, %s419
        %s421 = smul.u32 4, %s29
        %s422 = smul.u32 64, %s29
        %p424 = scmp.eq.s32.totalorder %s29, 0
        // Predicated region
        $region69: #{encoder_forward.11} parent=51 // pred_check
          %p425 = pneg %p424
        $region70: #{encoder_forward.11} parent=51 // pred_check_branch
          %427 = sbr.rel (%p425) target = $region72
        $region71: #{encoder_forward.11} parent=51 // pred_region
          %428 = vst [vmem:[#allocation2] sm:$0xff] 0.0
          %429 = vst [vmem:[#allocation2 + $0x8] sm:$0xff] 0.0
        $region72: #{encoder_forward.11} parent=51 // pred_fallthru
          _
        %v430 = vld [vmem:[#allocation2] sm:$0xff]
        %v431 = vld [vmem:[#allocation2 + $0x8] sm:$0xff]
        %v432 = vld [vmem:[%s420] sm:$0xf]
        %v433 = vld [vmem:[%s369] sm:$0xff]
        %v434 = vld [vmem:[%s369 + $0x8] sm:$0xff]
        %v435 = vld [vmem:[%s369 + $0x10] sm:$0xff]
        %v436 = vld [vmem:[%s369 + $0x18] sm:$0xff]
        %v437 = vld [vmem:[%s369 + $0x20] sm:$0xff]
        %v438 = vld [vmem:[%s369 + $0x28] sm:$0xff]
        %v439 = vld [vmem:[%s369 + $0x30] sm:$0xff]
        %v440 = vld [vmem:[%s369 + $0x38] sm:$0xff]
        %v441 = vld [vmem:[%s369 + $0x40] sm:$0xff]
        %v442 = vld [vmem:[%s369 + $0x48] sm:$0xff]
        %v443 = vld [vmem:[%s369 + $0x50] sm:$0xff]
        %v444 = vld [vmem:[%s369 + $0x58] sm:$0xff]
        %v445 = vld [vmem:[%s369 + $0x60] sm:$0xff]
        %v446 = vld [vmem:[%s369 + $0x68] sm:$0xff]
        %v447 = vld [vmem:[%s369 + $0x70] sm:$0xff]
        %v448 = vld [vmem:[%s369 + $0x78] sm:$0xff]
        %v449 = vld [vmem:[%s369 + $0x80] sm:$0xff]
        %v450 = vld [vmem:[%s369 + $0x88] sm:$0xff]
        %v451 = vld [vmem:[%s369 + $0x90] sm:$0xff]
        %v452 = vld [vmem:[%s369 + $0x98] sm:$0xff]
        %v453 = vld [vmem:[%s369 + $0xa0] sm:$0xff]
        %v454 = vld [vmem:[%s369 + $0xa8] sm:$0xff]
        %v455 = vld [vmem:[%s369 + $0xb0] sm:$0xff]
        %v456 = vld [vmem:[%s369 + $0xb8] sm:$0xff]
        %v457 = vld [vmem:[%s369 + $0xc0] sm:$0xff]
        %v458 = vld [vmem:[%s369 + $0xc8] sm:$0xff]
        %v459 = vld [vmem:[%s369 + $0xd0] sm:$0xff]
        %v460 = vld [vmem:[%s369 + $0xd8] sm:$0xff]
        %v461 = vld [vmem:[%s369 + $0xe0] sm:$0xff]
        %v462 = vld [vmem:[%s369 + $0xe8] sm:$0xff]
        %v463 = vld [vmem:[%s369 + $0xf0] sm:$0xff]
        %v464 = vld [vmem:[%s369 + $0xf8] sm:$0xff]
        %v465 = vld [vmem:[%s369 + $0x100] sm:$0xff]
        %v466 = vld [vmem:[%s369 + $0x108] sm:$0xff]
        %v467 = vld [vmem:[%s369 + $0x110] sm:$0xff]
        %v468 = vld [vmem:[%s369 + $0x118] sm:$0xff]
        %v469 = vld [vmem:[%s369 + $0x120] sm:$0xff]
        %v470 = vld [vmem:[%s369 + $0x128] sm:$0xff]
        %v471 = vld [vmem:[%s369 + $0x130] sm:$0xff]
        %v472 = vld [vmem:[%s369 + $0x138] sm:$0xff]
        %v473 = vld [vmem:[%s369 + $0x140] sm:$0xff]
        %v474 = vld [vmem:[%s369 + $0x148] sm:$0xff]
        %v475 = vld [vmem:[%s369 + $0x150] sm:$0xff]
        %v476 = vld [vmem:[%s369 + $0x158] sm:$0xff]
        %v477 = vld [vmem:[%s369 + $0x160] sm:$0xff]
        %v478 = vld [vmem:[%s369 + $0x168] sm:$0xff]
        %v479 = vld [vmem:[%s369 + $0x170] sm:$0xff]
        %v480 = vld [vmem:[%s369 + $0x178] sm:$0xff]
        %v481 = vld [vmem:[%s369 + $0x180] sm:$0xff]
        %v482 = vld [vmem:[%s369 + $0x188] sm:$0xff]
        %v483 = vld [vmem:[%s369 + $0x190] sm:$0xff]
        %v484 = vld [vmem:[%s369 + $0x198] sm:$0xff]
        %v485 = vld [vmem:[%s369 + $0x1a0] sm:$0xff]
        %v486 = vld [vmem:[%s369 + $0x1a8] sm:$0xff]
        %v487 = vld [vmem:[%s369 + $0x1b0] sm:$0xff]
        %v488 = vld [vmem:[%s369 + $0x1b8] sm:$0xff]
        %v489 = vld [vmem:[%s369 + $0x1c0] sm:$0xff]
        %v490 = vld [vmem:[%s369 + $0x1c8] sm:$0xff]
        %v491 = vld [vmem:[%s369 + $0x1d0] sm:$0xff]
        %v492 = vld [vmem:[%s369 + $0x1d8] sm:$0xff]
        %v493 = vld [vmem:[%s369 + $0x1e0] sm:$0xff]
        %v494 = vld [vmem:[%s369 + $0x1e8] sm:$0xff]
        %v495 = vld [vmem:[%s369 + $0x1f0] sm:$0xff]
        %v496 = vld [vmem:[%s369 + $0x1f8] sm:$0xff]
        %v497 = vld [vmem:[%s369 + $0x200] sm:$0xff]
        %v498 = vld [vmem:[%s369 + $0x208] sm:$0xff]
        %v499 = vld [vmem:[%s369 + $0x210] sm:$0xff]
        %v500 = vld [vmem:[%s369 + $0x218] sm:$0xff]
        %v501 = vld [vmem:[%s369 + $0x220] sm:$0xff]
        %v502 = vld [vmem:[%s369 + $0x228] sm:$0xff]
        %v503 = vld [vmem:[%s369 + $0x230] sm:$0xff]
        %v504 = vld [vmem:[%s369 + $0x238] sm:$0xff]
        %v505 = vld [vmem:[%s369 + $0x240] sm:$0xff]
        %v506 = vld [vmem:[%s369 + $0x248] sm:$0xff]
        %v507 = vld [vmem:[%s369 + $0x250] sm:$0xff]
        %v508 = vld [vmem:[%s369 + $0x258] sm:$0xff]
        %v509 = vld [vmem:[%s369 + $0x260] sm:$0xff]
        %v510 = vld [vmem:[%s369 + $0x268] sm:$0xff]
        %v511 = vld [vmem:[%s369 + $0x270] sm:$0xff]
        %v512 = vld [vmem:[%s369 + $0x278] sm:$0xff]
        %v513 = vld [vmem:[%s369 + $0x280] sm:$0xff]
        %v514 = vld [vmem:[%s369 + $0x288] sm:$0xff]
        %v515 = vld [vmem:[%s369 + $0x290] sm:$0xff]
        %v516 = vld [vmem:[%s369 + $0x298] sm:$0xff]
        %v517 = vld [vmem:[%s369 + $0x2a0] sm:$0xff]
        %v518 = vld [vmem:[%s369 + $0x2a8] sm:$0xff]
        %v519 = vld [vmem:[%s369 + $0x2b0] sm:$0xff]
        %v520 = vld [vmem:[%s369 + $0x2b8] sm:$0xff]
        %v521 = vld [vmem:[%s369 + $0x2c0] sm:$0xff]
        %v522 = vld [vmem:[%s369 + $0x2c8] sm:$0xff]
        %v523 = vld [vmem:[%s369 + $0x2d0] sm:$0xff]
        %v524 = vld [vmem:[%s369 + $0x2d8] sm:$0xff]
        %v525 = vld [vmem:[%s369 + $0x2e0] sm:$0xff]
        %v526 = vld [vmem:[%s369 + $0x2e8] sm:$0xff]
        %v527 = vld [vmem:[%s369 + $0x2f0] sm:$0xff]
        %v528 = vld [vmem:[%s369 + $0x2f8] sm:$0xff]
        %v529 = vld [vmem:[%s369 + $0x300] sm:$0xff]
        %v530 = vld [vmem:[%s369 + $0x308] sm:$0xff]
        %v531 = vld [vmem:[%s369 + $0x310] sm:$0xff]
        %v532 = vld [vmem:[%s369 + $0x318] sm:$0xff]
        %v533 = vld [vmem:[%s369 + $0x320] sm:$0xff]
        %v534 = vld [vmem:[%s369 + $0x328] sm:$0xff]
        %v535 = vld [vmem:[%s369 + $0x330] sm:$0xff]
        %v536 = vld [vmem:[%s369 + $0x338] sm:$0xff]
        %v537 = vld [vmem:[%s369 + $0x340] sm:$0xff]
        %v538 = vld [vmem:[%s369 + $0x348] sm:$0xff]
        %v539 = vld [vmem:[%s369 + $0x350] sm:$0xff]
        %v540 = vld [vmem:[%s369 + $0x358] sm:$0xff]
        %v541 = vld [vmem:[%s369 + $0x360] sm:$0xff]
        %v542 = vld [vmem:[%s369 + $0x368] sm:$0xff]
        %v543 = vld [vmem:[%s369 + $0x370] sm:$0xff]
        %v544 = vld [vmem:[%s369 + $0x378] sm:$0xff]
        %v545 = vld [vmem:[%s369 + $0x380] sm:$0xff]
        %v546 = vld [vmem:[%s369 + $0x388] sm:$0xff]
        %v547 = vld [vmem:[%s369 + $0x390] sm:$0xff]
        %v548 = vld [vmem:[%s369 + $0x398] sm:$0xff]
        %v549 = vld [vmem:[%s369 + $0x3a0] sm:$0xff]
        %v550 = vld [vmem:[%s369 + $0x3a8] sm:$0xff]
        %v551 = vld [vmem:[%s369 + $0x3b0] sm:$0xff]
        %v552 = vld [vmem:[%s369 + $0x3b8] sm:$0xff]
        %v553 = vld [vmem:[%s369 + $0x3c0] sm:$0xff]
        %v554 = vld [vmem:[%s369 + $0x3c8] sm:$0xff]
        %v555 = vld [vmem:[%s369 + $0x3d0] sm:$0xff]
        %v556 = vld [vmem:[%s369 + $0x3d8] sm:$0xff]
        %v557 = vld [vmem:[%s369 + $0x3e0] sm:$0xff]
        %v558 = vld [vmem:[%s369 + $0x3e8] sm:$0xff]
        %v559 = vld [vmem:[%s369 + $0x3f0] sm:$0xff]
        %v560 = vld [vmem:[%s369 + $0x3f8] sm:$0xff]
        %v561 = vld [vmem:[%s369 + $0x400] sm:$0xff]
        %v562 = vld [vmem:[%s369 + $0x408] sm:$0xff]
        %v563 = vld [vmem:[%s369 + $0x410] sm:$0xff]
        %v564 = vld [vmem:[%s369 + $0x418] sm:$0xff]
        %v565 = vld [vmem:[%s369 + $0x420] sm:$0xff]
        %v566 = vld [vmem:[%s369 + $0x428] sm:$0xff]
        %v567 = vld [vmem:[%s369 + $0x430] sm:$0xff]
        %v568 = vld [vmem:[%s369 + $0x438] sm:$0xff]
        %v569 = vld [vmem:[%s369 + $0x440] sm:$0xff]
        %v570 = vld [vmem:[%s369 + $0x448] sm:$0xff]
        %v571 = vld [vmem:[%s369 + $0x450] sm:$0xff]
        %v572 = vld [vmem:[%s369 + $0x458] sm:$0xff]
        %v573 = vld [vmem:[%s369 + $0x460] sm:$0xff]
        %v574 = vld [vmem:[%s369 + $0x468] sm:$0xff]
        %v575 = vld [vmem:[%s369 + $0x470] sm:$0xff]
        %v576 = vld [vmem:[%s369 + $0x478] sm:$0xff]
        %v577 = vld [vmem:[%s369 + $0x480] sm:$0xff]
        %v578 = vld [vmem:[%s369 + $0x488] sm:$0xff]
        %v579 = vld [vmem:[%s369 + $0x490] sm:$0xff]
        %v580 = vld [vmem:[%s369 + $0x498] sm:$0xff]
        %v581 = vld [vmem:[%s369 + $0x4a0] sm:$0xff]
        %v582 = vld [vmem:[%s369 + $0x4a8] sm:$0xff]
        %v583 = vld [vmem:[%s369 + $0x4b0] sm:$0xff]
        %v584 = vld [vmem:[%s369 + $0x4b8] sm:$0xff]
        %v585 = vld [vmem:[%s369 + $0x4c0] sm:$0xff]
        %v586 = vld [vmem:[%s369 + $0x4c8] sm:$0xff]
        %v587 = vld [vmem:[%s369 + $0x4d0] sm:$0xff]
        %v588 = vld [vmem:[%s369 + $0x4d8] sm:$0xff]
        %v589 = vld [vmem:[%s369 + $0x4e0] sm:$0xff]
        %v590 = vld [vmem:[%s369 + $0x4e8] sm:$0xff]
        %v591 = vld [vmem:[%s369 + $0x4f0] sm:$0xff]
        %v592 = vld [vmem:[%s369 + $0x4f8] sm:$0xff]
        %v593 = vld [vmem:[%s369 + $0x500] sm:$0xff]
        %v594 = vld [vmem:[%s369 + $0x508] sm:$0xff]
        %v595 = vld [vmem:[%s369 + $0x510] sm:$0xff]
        %v596 = vld [vmem:[%s369 + $0x518] sm:$0xff]
        %v597 = vld [vmem:[%s369 + $0x520] sm:$0xff]
        %v598 = vld [vmem:[%s369 + $0x528] sm:$0xff]
        %v599 = vld [vmem:[%s369 + $0x530] sm:$0xff]
        %v600 = vld [vmem:[%s369 + $0x538] sm:$0xff]
        %v601 = vld [vmem:[%s369 + $0x540] sm:$0xff]
        %v602 = vld [vmem:[%s369 + $0x548] sm:$0xff]
        %v603 = vld [vmem:[%s369 + $0x550] sm:$0xff]
        %v604 = vld [vmem:[%s369 + $0x558] sm:$0xff]
        %v605 = vld [vmem:[%s369 + $0x560] sm:$0xff]
        %v606 = vld [vmem:[%s369 + $0x568] sm:$0xff]
        %v607 = vld [vmem:[%s369 + $0x570] sm:$0xff]
        %v608 = vld [vmem:[%s369 + $0x578] sm:$0xff]
        %v609 = vld [vmem:[%s369 + $0x580] sm:$0xff]
        %v610 = vld [vmem:[%s369 + $0x588] sm:$0xff]
        %v611 = vld [vmem:[%s369 + $0x590] sm:$0xff]
        %v612 = vld [vmem:[%s369 + $0x598] sm:$0xff]
        %v613 = vld [vmem:[%s369 + $0x5a0] sm:$0xff]
        %v614 = vld [vmem:[%s369 + $0x5a8] sm:$0xff]
        %v615 = vld [vmem:[%s369 + $0x5b0] sm:$0xff]
        %v616 = vld [vmem:[%s369 + $0x5b8] sm:$0xff]
        %v617 = vld [vmem:[%s369 + $0x5c0] sm:$0xff]
        %v618 = vld [vmem:[%s369 + $0x5c8] sm:$0xff]
        %v619 = vld [vmem:[%s369 + $0x5d0] sm:$0xff]
        %v620 = vld [vmem:[%s369 + $0x5d8] sm:$0xff]
        %v621 = vld [vmem:[%s369 + $0x5e0] sm:$0xff]
        %v622 = vld [vmem:[%s369 + $0x5e8] sm:$0xff]
        %v623 = vld [vmem:[%s369 + $0x5f0] sm:$0xff]
        %v624 = vld [vmem:[%s369 + $0x5f8] sm:$0xff]
        %v625 = vld [vmem:[%s369 + $0x600] sm:$0xff]
        %v626 = vld [vmem:[%s369 + $0x608] sm:$0xff]
        %v627 = vld [vmem:[%s369 + $0x610] sm:$0xff]
        %v628 = vld [vmem:[%s369 + $0x618] sm:$0xff]
        %v629 = vld [vmem:[%s369 + $0x620] sm:$0xff]
        %v630 = vld [vmem:[%s369 + $0x628] sm:$0xff]
        %v631 = vld [vmem:[%s369 + $0x630] sm:$0xff]
        %v632 = vld [vmem:[%s369 + $0x638] sm:$0xff]
        %v633 = vld [vmem:[%s369 + $0x640] sm:$0xff]
        %v634 = vld [vmem:[%s369 + $0x648] sm:$0xff]
        %v635 = vld [vmem:[%s369 + $0x650] sm:$0xff]
        %v636 = vld [vmem:[%s369 + $0x658] sm:$0xff]
        %v637 = vld [vmem:[%s369 + $0x660] sm:$0xff]
        %v638 = vld [vmem:[%s369 + $0x668] sm:$0xff]
        %v639 = vld [vmem:[%s369 + $0x670] sm:$0xff]
        %v640 = vld [vmem:[%s369 + $0x678] sm:$0xff]
        %v641 = vld [vmem:[%s369 + $0x680] sm:$0xff]
        %v642 = vld [vmem:[%s369 + $0x688] sm:$0xff]
        %v643 = vld [vmem:[%s369 + $0x690] sm:$0xff]
        %v644 = vld [vmem:[%s369 + $0x698] sm:$0xff]
        %v645 = vld [vmem:[%s369 + $0x6a0] sm:$0xff]
        %v646 = vld [vmem:[%s369 + $0x6a8] sm:$0xff]
        %v647 = vld [vmem:[%s369 + $0x6b0] sm:$0xff]
        %v648 = vld [vmem:[%s369 + $0x6b8] sm:$0xff]
        %v649 = vld [vmem:[%s369 + $0x6c0] sm:$0xff]
        %v650 = vld [vmem:[%s369 + $0x6c8] sm:$0xff]
        %v651 = vld [vmem:[%s369 + $0x6d0] sm:$0xff]
        %v652 = vld [vmem:[%s369 + $0x6d8] sm:$0xff]
        %v653 = vld [vmem:[%s369 + $0x6e0] sm:$0xff]
        %v654 = vld [vmem:[%s369 + $0x6e8] sm:$0xff]
        %v655 = vld [vmem:[%s369 + $0x6f0] sm:$0xff]
        %v656 = vld [vmem:[%s369 + $0x6f8] sm:$0xff]
        %v657 = vld [vmem:[%s369 + $0x700] sm:$0xff]
        %v658 = vld [vmem:[%s369 + $0x708] sm:$0xff]
        %v659 = vld [vmem:[%s369 + $0x710] sm:$0xff]
        %v660 = vld [vmem:[%s369 + $0x718] sm:$0xff]
        %v661 = vld [vmem:[%s369 + $0x720] sm:$0xff]
        %v662 = vld [vmem:[%s369 + $0x728] sm:$0xff]
        %v663 = vld [vmem:[%s369 + $0x730] sm:$0xff]
        %v664 = vld [vmem:[%s369 + $0x738] sm:$0xff]
        %v665 = vld [vmem:[%s369 + $0x740] sm:$0xff]
        %v666 = vld [vmem:[%s369 + $0x748] sm:$0xff]
        %v667 = vld [vmem:[%s369 + $0x750] sm:$0xff]
        %v668 = vld [vmem:[%s369 + $0x758] sm:$0xff]
        %v669 = vld [vmem:[%s369 + $0x760] sm:$0xff]
        %v670 = vld [vmem:[%s369 + $0x768] sm:$0xff]
        %v671 = vld [vmem:[%s369 + $0x770] sm:$0xff]
        %v672 = vld [vmem:[%s369 + $0x778] sm:$0xff]
        %v673 = vld [vmem:[%s369 + $0x780] sm:$0xff]
        %v674 = vld [vmem:[%s369 + $0x788] sm:$0xff]
        %v675 = vld [vmem:[%s369 + $0x790] sm:$0xff]
        %v676 = vld [vmem:[%s369 + $0x798] sm:$0xff]
        %v677 = vld [vmem:[%s369 + $0x7a0] sm:$0xff]
        %v678 = vld [vmem:[%s369 + $0x7a8] sm:$0xff]
        %v679 = vld [vmem:[%s369 + $0x7b0] sm:$0xff]
        %v680 = vld [vmem:[%s369 + $0x7b8] sm:$0xff]
        %v681 = vld [vmem:[%s369 + $0x7c0] sm:$0xff]
        %v682 = vld [vmem:[%s369 + $0x7c8] sm:$0xff]
        %v683 = vld [vmem:[%s369 + $0x7d0] sm:$0xff]
        %v684 = vld [vmem:[%s369 + $0x7d8] sm:$0xff]
        %v685 = vld [vmem:[%s369 + $0x7e0] sm:$0xff]
        %v686 = vld [vmem:[%s369 + $0x7e8] sm:$0xff]
        %v687 = vld [vmem:[%s369 + $0x7f0] sm:$0xff]
        %v688 = vld [vmem:[%s369 + $0x7f8] sm:$0xff]
        %v691 = vunpack.c.l.s4 1966171168
        %v692 = vunpack.c.0.s8 %v691
        %v693 = vlaneseq
        %v694 = vshrl.u32 %v693, 7
        %v695 = vsub.s32 %v692, %v694
        %v696 = vrot.slane %v432, %v695
        %v697 = vcombine.high %v696, %v696
        %v699 = vunpack.c.l.s4 1966171168
        %v700 = vunpack.c.0.s8 %v699
        %v701 = vlaneseq
        %v702 = vshrl.u32 %v701, 7
        %v703 = vsub.s32 %v700, %v702
        %v704 = vrot.slane %v696, %v703
        %v706 = vunpack.c.l.s4 1966171168
        %v707 = vunpack.c.0.s8 %v706
        %v708 = vlaneseq
        %v709 = vshrl.u32 %v708, 7
        %v710 = vsub.s32 %v707, %v709
        %v711 = vrot.slane %v697, %v710
        %v712 = vcombine.high %v704, %v704
        %v713 = vcombine.high %v711, %v711
        %v974 = vunpack.c.l.b16 %v433
        %v975 = vunpack.c.h.b16 %v433
        %v976 = vunpack.c.l.b16 %v434
        %v977 = vunpack.c.h.b16 %v434
        %v978 = vunpack.c.l.b16 %v435
        %v979 = vunpack.c.h.b16 %v435
        %v980 = vunpack.c.l.b16 %v436
        %v981 = vunpack.c.h.b16 %v436
        %v982 = vunpack.c.l.b16 %v437
        %v983 = vunpack.c.h.b16 %v437
        %v984 = vunpack.c.l.b16 %v438
        %v985 = vunpack.c.h.b16 %v438
        %v986 = vunpack.c.l.b16 %v439
        %v987 = vunpack.c.h.b16 %v439
        %v988 = vunpack.c.l.b16 %v440
        %v989 = vunpack.c.h.b16 %v440
        %v990 = vunpack.c.l.b16 %v441
        %v991 = vunpack.c.h.b16 %v441
        %v992 = vunpack.c.l.b16 %v442
        %v993 = vunpack.c.h.b16 %v442
        %v994 = vunpack.c.l.b16 %v443
        %v995 = vunpack.c.h.b16 %v443
        %v996 = vunpack.c.l.b16 %v444
        %v997 = vunpack.c.h.b16 %v444
        %v998 = vunpack.c.l.b16 %v445
        %v999 = vunpack.c.h.b16 %v445
        %v1000 = vunpack.c.l.b16 %v446
        %v1001 = vunpack.c.h.b16 %v446
        %v1002 = vunpack.c.l.b16 %v447
        %v1003 = vunpack.c.h.b16 %v447
        %v1004 = vunpack.c.l.b16 %v448
        %v1005 = vunpack.c.h.b16 %v448
        %v1006 = vunpack.c.l.b16 %v449
        %v1007 = vunpack.c.h.b16 %v449
        %v1008 = vunpack.c.l.b16 %v450
        %v1009 = vunpack.c.h.b16 %v450
        %v1010 = vunpack.c.l.b16 %v451
        %v1011 = vunpack.c.h.b16 %v451
        %v1012 = vunpack.c.l.b16 %v452
        %v1013 = vunpack.c.h.b16 %v452
        %v1014 = vunpack.c.l.b16 %v453
        %v1015 = vunpack.c.h.b16 %v453
        %v1016 = vunpack.c.l.b16 %v454
        %v1017 = vunpack.c.h.b16 %v454
        %v1018 = vunpack.c.l.b16 %v455
        %v1019 = vunpack.c.h.b16 %v455
        %v1020 = vunpack.c.l.b16 %v456
        %v1021 = vunpack.c.h.b16 %v456
        %v1022 = vunpack.c.l.b16 %v457
        %v1023 = vunpack.c.h.b16 %v457
        %v1024 = vunpack.c.l.b16 %v458
        %v1025 = vunpack.c.h.b16 %v458
        %v1026 = vunpack.c.l.b16 %v459
        %v1027 = vunpack.c.h.b16 %v459
        %v1028 = vunpack.c.l.b16 %v460
        %v1029 = vunpack.c.h.b16 %v460
        %v1030 = vunpack.c.l.b16 %v461
        %v1031 = vunpack.c.h.b16 %v461
        %v1032 = vunpack.c.l.b16 %v462
        %v1033 = vunpack.c.h.b16 %v462
        %v1034 = vunpack.c.l.b16 %v463
        %v1035 = vunpack.c.h.b16 %v463
        %v1036 = vunpack.c.l.b16 %v464
        %v1037 = vunpack.c.h.b16 %v464
        %v1038 = vunpack.c.l.b16 %v465
        %v1039 = vunpack.c.h.b16 %v465
        %v1040 = vunpack.c.l.b16 %v466
        %v1041 = vunpack.c.h.b16 %v466
        %v1042 = vunpack.c.l.b16 %v467
        %v1043 = vunpack.c.h.b16 %v467
        %v1044 = vunpack.c.l.b16 %v468
        %v1045 = vunpack.c.h.b16 %v468
        %v1046 = vunpack.c.l.b16 %v469
        %v1047 = vunpack.c.h.b16 %v469
        %v1048 = vunpack.c.l.b16 %v470
        %v1049 = vunpack.c.h.b16 %v470
        %v1050 = vunpack.c.l.b16 %v471
        %v1051 = vunpack.c.h.b16 %v471
        %v1052 = vunpack.c.l.b16 %v472
        %v1053 = vunpack.c.h.b16 %v472
        %v1054 = vunpack.c.l.b16 %v473
        %v1055 = vunpack.c.h.b16 %v473
        %v1056 = vunpack.c.l.b16 %v474
        %v1057 = vunpack.c.h.b16 %v474
        %v1058 = vunpack.c.l.b16 %v475
        %v1059 = vunpack.c.h.b16 %v475
        %v1060 = vunpack.c.l.b16 %v476
        %v1061 = vunpack.c.h.b16 %v476
        %v1062 = vunpack.c.l.b16 %v477
        %v1063 = vunpack.c.h.b16 %v477
        %v1064 = vunpack.c.l.b16 %v478
        %v1065 = vunpack.c.h.b16 %v478
        %v1066 = vunpack.c.l.b16 %v479
        %v1067 = vunpack.c.h.b16 %v479
        %v1068 = vunpack.c.l.b16 %v480
        %v1069 = vunpack.c.h.b16 %v480
        %v1070 = vunpack.c.l.b16 %v481
        %v1071 = vunpack.c.h.b16 %v481
        %v1072 = vunpack.c.l.b16 %v482
        %v1073 = vunpack.c.h.b16 %v482
        %v1074 = vunpack.c.l.b16 %v483
        %v1075 = vunpack.c.h.b16 %v483
        %v1076 = vunpack.c.l.b16 %v484
        %v1077 = vunpack.c.h.b16 %v484
        %v1078 = vunpack.c.l.b16 %v485
        %v1079 = vunpack.c.h.b16 %v485
        %v1080 = vunpack.c.l.b16 %v486
        %v1081 = vunpack.c.h.b16 %v486
        %v1082 = vunpack.c.l.b16 %v487
        %v1083 = vunpack.c.h.b16 %v487
        %v1084 = vunpack.c.l.b16 %v488
        %v1085 = vunpack.c.h.b16 %v488
        %v1086 = vunpack.c.l.b16 %v489
        %v1087 = vunpack.c.h.b16 %v489
        %v1088 = vunpack.c.l.b16 %v490
        %v1089 = vunpack.c.h.b16 %v490
        %v1090 = vunpack.c.l.b16 %v491
        %v1091 = vunpack.c.h.b16 %v491
        %v1092 = vunpack.c.l.b16 %v492
        %v1093 = vunpack.c.h.b16 %v492
        %v1094 = vunpack.c.l.b16 %v493
        %v1095 = vunpack.c.h.b16 %v493
        %v1096 = vunpack.c.l.b16 %v494
        %v1097 = vunpack.c.h.b16 %v494
        %v1098 = vunpack.c.l.b16 %v495
        %v1099 = vunpack.c.h.b16 %v495
        %v1100 = vunpack.c.l.b16 %v496
        %v1101 = vunpack.c.h.b16 %v496
        %v1102 = vunpack.c.l.b16 %v497
        %v1103 = vunpack.c.h.b16 %v497
        %v1104 = vunpack.c.l.b16 %v498
        %v1105 = vunpack.c.h.b16 %v498
        %v1106 = vunpack.c.l.b16 %v499
        %v1107 = vunpack.c.h.b16 %v499
        %v1108 = vunpack.c.l.b16 %v500
        %v1109 = vunpack.c.h.b16 %v500
        %v1110 = vunpack.c.l.b16 %v501
        %v1111 = vunpack.c.h.b16 %v501
        %v1112 = vunpack.c.l.b16 %v502
        %v1113 = vunpack.c.h.b16 %v502
        %v1114 = vunpack.c.l.b16 %v503
        %v1115 = vunpack.c.h.b16 %v503
        %v1116 = vunpack.c.l.b16 %v504
        %v1117 = vunpack.c.h.b16 %v504
        %v1118 = vunpack.c.l.b16 %v505
        %v1119 = vunpack.c.h.b16 %v505
        %v1120 = vunpack.c.l.b16 %v506
        %v1121 = vunpack.c.h.b16 %v506
        %v1122 = vunpack.c.l.b16 %v507
        %v1123 = vunpack.c.h.b16 %v507
        %v1124 = vunpack.c.l.b16 %v508
        %v1125 = vunpack.c.h.b16 %v508
        %v1126 = vunpack.c.l.b16 %v509
        %v1127 = vunpack.c.h.b16 %v509
        %v1128 = vunpack.c.l.b16 %v510
        %v1129 = vunpack.c.h.b16 %v510
        %v1130 = vunpack.c.l.b16 %v511
        %v1131 = vunpack.c.h.b16 %v511
        %v1132 = vunpack.c.l.b16 %v512
        %v1133 = vunpack.c.h.b16 %v512
        %v1134 = vunpack.c.l.b16 %v513
        %v1135 = vunpack.c.h.b16 %v513
        %v1136 = vunpack.c.l.b16 %v514
        %v1137 = vunpack.c.h.b16 %v514
        %v1138 = vunpack.c.l.b16 %v515
        %v1139 = vunpack.c.h.b16 %v515
        %v1140 = vunpack.c.l.b16 %v516
        %v1141 = vunpack.c.h.b16 %v516
        %v1142 = vunpack.c.l.b16 %v517
        %v1143 = vunpack.c.h.b16 %v517
        %v1144 = vunpack.c.l.b16 %v518
        %v1145 = vunpack.c.h.b16 %v518
        %v1146 = vunpack.c.l.b16 %v519
        %v1147 = vunpack.c.h.b16 %v519
        %v1148 = vunpack.c.l.b16 %v520
        %v1149 = vunpack.c.h.b16 %v520
        %v1150 = vunpack.c.l.b16 %v521
        %v1151 = vunpack.c.h.b16 %v521
        %v1152 = vunpack.c.l.b16 %v522
        %v1153 = vunpack.c.h.b16 %v522
        %v1154 = vunpack.c.l.b16 %v523
        %v1155 = vunpack.c.h.b16 %v523
        %v1156 = vunpack.c.l.b16 %v524
        %v1157 = vunpack.c.h.b16 %v524
        %v1158 = vunpack.c.l.b16 %v525
        %v1159 = vunpack.c.h.b16 %v525
        %v1160 = vunpack.c.l.b16 %v526
        %v1161 = vunpack.c.h.b16 %v526
        %v1162 = vunpack.c.l.b16 %v527
        %v1163 = vunpack.c.h.b16 %v527
        %v1164 = vunpack.c.l.b16 %v528
        %v1165 = vunpack.c.h.b16 %v528
        %v1166 = vunpack.c.l.b16 %v529
        %v1167 = vunpack.c.h.b16 %v529
        %v1168 = vunpack.c.l.b16 %v530
        %v1169 = vunpack.c.h.b16 %v530
        %v1170 = vunpack.c.l.b16 %v531
        %v1171 = vunpack.c.h.b16 %v531
        %v1172 = vunpack.c.l.b16 %v532
        %v1173 = vunpack.c.h.b16 %v532
        %v1174 = vunpack.c.l.b16 %v533
        %v1175 = vunpack.c.h.b16 %v533
        %v1176 = vunpack.c.l.b16 %v534
        %v1177 = vunpack.c.h.b16 %v534
        %v1178 = vunpack.c.l.b16 %v535
        %v1179 = vunpack.c.h.b16 %v535
        %v1180 = vunpack.c.l.b16 %v536
        %v1181 = vunpack.c.h.b16 %v536
        %v1182 = vunpack.c.l.b16 %v537
        %v1183 = vunpack.c.h.b16 %v537
        %v1184 = vunpack.c.l.b16 %v538
        %v1185 = vunpack.c.h.b16 %v538
        %v1186 = vunpack.c.l.b16 %v539
        %v1187 = vunpack.c.h.b16 %v539
        %v1188 = vunpack.c.l.b16 %v540
        %v1189 = vunpack.c.h.b16 %v540
        %v1190 = vunpack.c.l.b16 %v541
        %v1191 = vunpack.c.h.b16 %v541
        %v1192 = vunpack.c.l.b16 %v542
        %v1193 = vunpack.c.h.b16 %v542
        %v1194 = vunpack.c.l.b16 %v543
        %v1195 = vunpack.c.h.b16 %v543
        %v1196 = vunpack.c.l.b16 %v544
        %v1197 = vunpack.c.h.b16 %v544
        %v1198 = vunpack.c.l.b16 %v545
        %v1199 = vunpack.c.h.b16 %v545
        %v1200 = vunpack.c.l.b16 %v546
        %v1201 = vunpack.c.h.b16 %v546
        %v1202 = vunpack.c.l.b16 %v547
        %v1203 = vunpack.c.h.b16 %v547
        %v1204 = vunpack.c.l.b16 %v548
        %v1205 = vunpack.c.h.b16 %v548
        %v1206 = vunpack.c.l.b16 %v549
        %v1207 = vunpack.c.h.b16 %v549
        %v1208 = vunpack.c.l.b16 %v550
        %v1209 = vunpack.c.h.b16 %v550
        %v1210 = vunpack.c.l.b16 %v551
        %v1211 = vunpack.c.h.b16 %v551
        %v1212 = vunpack.c.l.b16 %v552
        %v1213 = vunpack.c.h.b16 %v552
        %v1214 = vunpack.c.l.b16 %v553
        %v1215 = vunpack.c.h.b16 %v553
        %v1216 = vunpack.c.l.b16 %v554
        %v1217 = vunpack.c.h.b16 %v554
        %v1218 = vunpack.c.l.b16 %v555
        %v1219 = vunpack.c.h.b16 %v555
        %v1220 = vunpack.c.l.b16 %v556
        %v1221 = vunpack.c.h.b16 %v556
        %v1222 = vunpack.c.l.b16 %v557
        %v1223 = vunpack.c.h.b16 %v557
        %v1224 = vunpack.c.l.b16 %v558
        %v1225 = vunpack.c.h.b16 %v558
        %v1226 = vunpack.c.l.b16 %v559
        %v1227 = vunpack.c.h.b16 %v559
        %v1228 = vunpack.c.l.b16 %v560
        %v1229 = vunpack.c.h.b16 %v560
        %v1230 = vunpack.c.l.b16 %v561
        %v1231 = vunpack.c.h.b16 %v561
        %v1232 = vunpack.c.l.b16 %v562
        %v1233 = vunpack.c.h.b16 %v562
        %v1234 = vunpack.c.l.b16 %v563
        %v1235 = vunpack.c.h.b16 %v563
        %v1236 = vunpack.c.l.b16 %v564
        %v1237 = vunpack.c.h.b16 %v564
        %v1238 = vunpack.c.l.b16 %v565
        %v1239 = vunpack.c.h.b16 %v565
        %v1240 = vunpack.c.l.b16 %v566
        %v1241 = vunpack.c.h.b16 %v566
        %v1242 = vunpack.c.l.b16 %v567
        %v1243 = vunpack.c.h.b16 %v567
        %v1244 = vunpack.c.l.b16 %v568
        %v1245 = vunpack.c.h.b16 %v568
        %v1246 = vunpack.c.l.b16 %v569
        %v1247 = vunpack.c.h.b16 %v569
        %v1248 = vunpack.c.l.b16 %v570
        %v1249 = vunpack.c.h.b16 %v570
        %v1250 = vunpack.c.l.b16 %v571
        %v1251 = vunpack.c.h.b16 %v571
        %v1252 = vunpack.c.l.b16 %v572
        %v1253 = vunpack.c.h.b16 %v572
        %v1254 = vunpack.c.l.b16 %v573
        %v1255 = vunpack.c.h.b16 %v573
        %v1256 = vunpack.c.l.b16 %v574
        %v1257 = vunpack.c.h.b16 %v574
        %v1258 = vunpack.c.l.b16 %v575
        %v1259 = vunpack.c.h.b16 %v575
        %v1260 = vunpack.c.l.b16 %v576
        %v1261 = vunpack.c.h.b16 %v576
        %v1262 = vunpack.c.l.b16 %v577
        %v1263 = vunpack.c.h.b16 %v577
        %v1264 = vunpack.c.l.b16 %v578
        %v1265 = vunpack.c.h.b16 %v578
        %v1266 = vunpack.c.l.b16 %v579
        %v1267 = vunpack.c.h.b16 %v579
        %v1268 = vunpack.c.l.b16 %v580
        %v1269 = vunpack.c.h.b16 %v580
        %v1270 = vunpack.c.l.b16 %v581
        %v1271 = vunpack.c.h.b16 %v581
        %v1272 = vunpack.c.l.b16 %v582
        %v1273 = vunpack.c.h.b16 %v582
        %v1274 = vunpack.c.l.b16 %v583
        %v1275 = vunpack.c.h.b16 %v583
        %v1276 = vunpack.c.l.b16 %v584
        %v1277 = vunpack.c.h.b16 %v584
        %v1278 = vunpack.c.l.b16 %v585
        %v1279 = vunpack.c.h.b16 %v585
        %v1280 = vunpack.c.l.b16 %v586
        %v1281 = vunpack.c.h.b16 %v586
        %v1282 = vunpack.c.l.b16 %v587
        %v1283 = vunpack.c.h.b16 %v587
        %v1284 = vunpack.c.l.b16 %v588
        %v1285 = vunpack.c.h.b16 %v588
        %v1286 = vunpack.c.l.b16 %v589
        %v1287 = vunpack.c.h.b16 %v589
        %v1288 = vunpack.c.l.b16 %v590
        %v1289 = vunpack.c.h.b16 %v590
        %v1290 = vunpack.c.l.b16 %v591
        %v1291 = vunpack.c.h.b16 %v591
        %v1292 = vunpack.c.l.b16 %v592
        %v1293 = vunpack.c.h.b16 %v592
        %v1294 = vunpack.c.l.b16 %v593
        %v1295 = vunpack.c.h.b16 %v593
        %v1296 = vunpack.c.l.b16 %v594
        %v1297 = vunpack.c.h.b16 %v594
        %v1298 = vunpack.c.l.b16 %v595
        %v1299 = vunpack.c.h.b16 %v595
        %v1300 = vunpack.c.l.b16 %v596
        %v1301 = vunpack.c.h.b16 %v596
        %v1302 = vunpack.c.l.b16 %v597
        %v1303 = vunpack.c.h.b16 %v597
        %v1304 = vunpack.c.l.b16 %v598
        %v1305 = vunpack.c.h.b16 %v598
        %v1306 = vunpack.c.l.b16 %v599
        %v1307 = vunpack.c.h.b16 %v599
        %v1308 = vunpack.c.l.b16 %v600
        %v1309 = vunpack.c.h.b16 %v600
        %v1310 = vunpack.c.l.b16 %v601
        %v1311 = vunpack.c.h.b16 %v601
        %v1312 = vunpack.c.l.b16 %v602
        %v1313 = vunpack.c.h.b16 %v602
        %v1314 = vunpack.c.l.b16 %v603
        %v1315 = vunpack.c.h.b16 %v603
        %v1316 = vunpack.c.l.b16 %v604
        %v1317 = vunpack.c.h.b16 %v604
        %v1318 = vunpack.c.l.b16 %v605
        %v1319 = vunpack.c.h.b16 %v605
        %v1320 = vunpack.c.l.b16 %v606
        %v1321 = vunpack.c.h.b16 %v606
        %v1322 = vunpack.c.l.b16 %v607
        %v1323 = vunpack.c.h.b16 %v607
        %v1324 = vunpack.c.l.b16 %v608
        %v1325 = vunpack.c.h.b16 %v608
        %v1326 = vunpack.c.l.b16 %v609
        %v1327 = vunpack.c.h.b16 %v609
        %v1328 = vunpack.c.l.b16 %v610
        %v1329 = vunpack.c.h.b16 %v610
        %v1330 = vunpack.c.l.b16 %v611
        %v1331 = vunpack.c.h.b16 %v611
        %v1332 = vunpack.c.l.b16 %v612
        %v1333 = vunpack.c.h.b16 %v612
        %v1334 = vunpack.c.l.b16 %v613
        %v1335 = vunpack.c.h.b16 %v613
        %v1336 = vunpack.c.l.b16 %v614
        %v1337 = vunpack.c.h.b16 %v614
        %v1338 = vunpack.c.l.b16 %v615
        %v1339 = vunpack.c.h.b16 %v615
        %v1340 = vunpack.c.l.b16 %v616
        %v1341 = vunpack.c.h.b16 %v616
        %v1342 = vunpack.c.l.b16 %v617
        %v1343 = vunpack.c.h.b16 %v617
        %v1344 = vunpack.c.l.b16 %v618
        %v1345 = vunpack.c.h.b16 %v618
        %v1346 = vunpack.c.l.b16 %v619
        %v1347 = vunpack.c.h.b16 %v619
        %v1348 = vunpack.c.l.b16 %v620
        %v1349 = vunpack.c.h.b16 %v620
        %v1350 = vunpack.c.l.b16 %v621
        %v1351 = vunpack.c.h.b16 %v621
        %v1352 = vunpack.c.l.b16 %v622
        %v1353 = vunpack.c.h.b16 %v622
        %v1354 = vunpack.c.l.b16 %v623
        %v1355 = vunpack.c.h.b16 %v623
        %v1356 = vunpack.c.l.b16 %v624
        %v1357 = vunpack.c.h.b16 %v624
        %v1358 = vunpack.c.l.b16 %v625
        %v1359 = vunpack.c.h.b16 %v625
        %v1360 = vunpack.c.l.b16 %v626
        %v1361 = vunpack.c.h.b16 %v626
        %v1362 = vunpack.c.l.b16 %v627
        %v1363 = vunpack.c.h.b16 %v627
        %v1364 = vunpack.c.l.b16 %v628
        %v1365 = vunpack.c.h.b16 %v628
        %v1366 = vunpack.c.l.b16 %v629
        %v1367 = vunpack.c.h.b16 %v629
        %v1368 = vunpack.c.l.b16 %v630
        %v1369 = vunpack.c.h.b16 %v630
        %v1370 = vunpack.c.l.b16 %v631
        %v1371 = vunpack.c.h.b16 %v631
        %v1372 = vunpack.c.l.b16 %v632
        %v1373 = vunpack.c.h.b16 %v632
        %v1374 = vunpack.c.l.b16 %v633
        %v1375 = vunpack.c.h.b16 %v633
        %v1376 = vunpack.c.l.b16 %v634
        %v1377 = vunpack.c.h.b16 %v634
        %v1378 = vunpack.c.l.b16 %v635
        %v1379 = vunpack.c.h.b16 %v635
        %v1380 = vunpack.c.l.b16 %v636
        %v1381 = vunpack.c.h.b16 %v636
        %v1382 = vunpack.c.l.b16 %v637
        %v1383 = vunpack.c.h.b16 %v637
        %v1384 = vunpack.c.l.b16 %v638
        %v1385 = vunpack.c.h.b16 %v638
        %v1386 = vunpack.c.l.b16 %v639
        %v1387 = vunpack.c.h.b16 %v639
        %v1388 = vunpack.c.l.b16 %v640
        %v1389 = vunpack.c.h.b16 %v640
        %v1390 = vunpack.c.l.b16 %v641
        %v1391 = vunpack.c.h.b16 %v641
        %v1392 = vunpack.c.l.b16 %v642
        %v1393 = vunpack.c.h.b16 %v642
        %v1394 = vunpack.c.l.b16 %v643
        %v1395 = vunpack.c.h.b16 %v643
        %v1396 = vunpack.c.l.b16 %v644
        %v1397 = vunpack.c.h.b16 %v644
        %v1398 = vunpack.c.l.b16 %v645
        %v1399 = vunpack.c.h.b16 %v645
        %v1400 = vunpack.c.l.b16 %v646
        %v1401 = vunpack.c.h.b16 %v646
        %v1402 = vunpack.c.l.b16 %v647
        %v1403 = vunpack.c.h.b16 %v647
        %v1404 = vunpack.c.l.b16 %v648
        %v1405 = vunpack.c.h.b16 %v648
        %v1406 = vunpack.c.l.b16 %v649
        %v1407 = vunpack.c.h.b16 %v649
        %v1408 = vunpack.c.l.b16 %v650
        %v1409 = vunpack.c.h.b16 %v650
        %v1410 = vunpack.c.l.b16 %v651
        %v1411 = vunpack.c.h.b16 %v651
        %v1412 = vunpack.c.l.b16 %v652
        %v1413 = vunpack.c.h.b16 %v652
        %v1414 = vunpack.c.l.b16 %v653
        %v1415 = vunpack.c.h.b16 %v653
        %v1416 = vunpack.c.l.b16 %v654
        %v1417 = vunpack.c.h.b16 %v654
        %v1418 = vunpack.c.l.b16 %v655
        %v1419 = vunpack.c.h.b16 %v655
        %v1420 = vunpack.c.l.b16 %v656
        %v1421 = vunpack.c.h.b16 %v656
        %v1422 = vunpack.c.l.b16 %v657
        %v1423 = vunpack.c.h.b16 %v657
        %v1424 = vunpack.c.l.b16 %v658
        %v1425 = vunpack.c.h.b16 %v658
        %v1426 = vunpack.c.l.b16 %v659
        %v1427 = vunpack.c.h.b16 %v659
        %v1428 = vunpack.c.l.b16 %v660
        %v1429 = vunpack.c.h.b16 %v660
        %v1430 = vunpack.c.l.b16 %v661
        %v1431 = vunpack.c.h.b16 %v661
        %v1432 = vunpack.c.l.b16 %v662
        %v1433 = vunpack.c.h.b16 %v662
        %v1434 = vunpack.c.l.b16 %v663
        %v1435 = vunpack.c.h.b16 %v663
        %v1436 = vunpack.c.l.b16 %v664
        %v1437 = vunpack.c.h.b16 %v664
        %v1438 = vunpack.c.l.b16 %v665
        %v1439 = vunpack.c.h.b16 %v665
        %v1440 = vunpack.c.l.b16 %v666
        %v1441 = vunpack.c.h.b16 %v666
        %v1442 = vunpack.c.l.b16 %v667
        %v1443 = vunpack.c.h.b16 %v667
        %v1444 = vunpack.c.l.b16 %v668
        %v1445 = vunpack.c.h.b16 %v668
        %v1446 = vunpack.c.l.b16 %v669
        %v1447 = vunpack.c.h.b16 %v669
        %v1448 = vunpack.c.l.b16 %v670
        %v1449 = vunpack.c.h.b16 %v670
        %v1450 = vunpack.c.l.b16 %v671
        %v1451 = vunpack.c.h.b16 %v671
        %v1452 = vunpack.c.l.b16 %v672
        %v1453 = vunpack.c.h.b16 %v672
        %v1454 = vunpack.c.l.b16 %v673
        %v1455 = vunpack.c.h.b16 %v673
        %v1456 = vunpack.c.l.b16 %v674
        %v1457 = vunpack.c.h.b16 %v674
        %v1458 = vunpack.c.l.b16 %v675
        %v1459 = vunpack.c.h.b16 %v675
        %v1460 = vunpack.c.l.b16 %v676
        %v1461 = vunpack.c.h.b16 %v676
        %v1462 = vunpack.c.l.b16 %v677
        %v1463 = vunpack.c.h.b16 %v677
        %v1464 = vunpack.c.l.b16 %v678
        %v1465 = vunpack.c.h.b16 %v678
        %v1466 = vunpack.c.l.b16 %v679
        %v1467 = vunpack.c.h.b16 %v679
        %v1468 = vunpack.c.l.b16 %v680
        %v1469 = vunpack.c.h.b16 %v680
        %v1470 = vunpack.c.l.b16 %v681
        %v1471 = vunpack.c.h.b16 %v681
        %v1472 = vunpack.c.l.b16 %v682
        %v1473 = vunpack.c.h.b16 %v682
        %v1474 = vunpack.c.l.b16 %v683
        %v1475 = vunpack.c.h.b16 %v683
        %v1476 = vunpack.c.l.b16 %v684
        %v1477 = vunpack.c.h.b16 %v684
        %v1478 = vunpack.c.l.b16 %v685
        %v1479 = vunpack.c.h.b16 %v685
        %v1480 = vunpack.c.l.b16 %v686
        %v1481 = vunpack.c.h.b16 %v686
        %v1482 = vunpack.c.l.b16 %v687
        %v1483 = vunpack.c.h.b16 %v687
        %v1484 = vunpack.c.l.b16 %v688
        %v1485 = vunpack.c.h.b16 %v688
        %v1486 = vpack.c.b16 %v982, %v974
        %v1487 = vpack.c.b16 %v983, %v975
        %v1488 = vpack.c.b16 %v984, %v976
        %v1489 = vpack.c.b16 %v985, %v977
        %v1490 = vpack.c.b16 %v986, %v978
        %v1491 = vpack.c.b16 %v987, %v979
        %v1492 = vpack.c.b16 %v988, %v980
        %v1493 = vpack.c.b16 %v989, %v981
        %v1494 = vpack.c.b16 %v998, %v990
        %v1495 = vpack.c.b16 %v999, %v991
        %v1496 = vpack.c.b16 %v1000, %v992
        %v1497 = vpack.c.b16 %v1001, %v993
        %v1498 = vpack.c.b16 %v1002, %v994
        %v1499 = vpack.c.b16 %v1003, %v995
        %v1500 = vpack.c.b16 %v1004, %v996
        %v1501 = vpack.c.b16 %v1005, %v997
        %v1502 = vpack.c.b16 %v1014, %v1006
        %v1503 = vpack.c.b16 %v1015, %v1007
        %v1504 = vpack.c.b16 %v1016, %v1008
        %v1505 = vpack.c.b16 %v1017, %v1009
        %v1506 = vpack.c.b16 %v1018, %v1010
        %v1507 = vpack.c.b16 %v1019, %v1011
        %v1508 = vpack.c.b16 %v1020, %v1012
        %v1509 = vpack.c.b16 %v1021, %v1013
        %v1510 = vpack.c.b16 %v1030, %v1022
        %v1511 = vpack.c.b16 %v1031, %v1023
        %v1512 = vpack.c.b16 %v1032, %v1024
        %v1513 = vpack.c.b16 %v1033, %v1025
        %v1514 = vpack.c.b16 %v1034, %v1026
        %v1515 = vpack.c.b16 %v1035, %v1027
        %v1516 = vpack.c.b16 %v1036, %v1028
        %v1517 = vpack.c.b16 %v1037, %v1029
        %v1518 = vpack.c.b16 %v1046, %v1038
        %v1519 = vpack.c.b16 %v1047, %v1039
        %v1520 = vpack.c.b16 %v1048, %v1040
        %v1521 = vpack.c.b16 %v1049, %v1041
        %v1522 = vpack.c.b16 %v1050, %v1042
        %v1523 = vpack.c.b16 %v1051, %v1043
        %v1524 = vpack.c.b16 %v1052, %v1044
        %v1525 = vpack.c.b16 %v1053, %v1045
        %v1526 = vpack.c.b16 %v1062, %v1054
        %v1527 = vpack.c.b16 %v1063, %v1055
        %v1528 = vpack.c.b16 %v1064, %v1056
        %v1529 = vpack.c.b16 %v1065, %v1057
        %v1530 = vpack.c.b16 %v1066, %v1058
        %v1531 = vpack.c.b16 %v1067, %v1059
        %v1532 = vpack.c.b16 %v1068, %v1060
        %v1533 = vpack.c.b16 %v1069, %v1061
        %v1534 = vpack.c.b16 %v1078, %v1070
        %v1535 = vpack.c.b16 %v1079, %v1071
        %v1536 = vpack.c.b16 %v1080, %v1072
        %v1537 = vpack.c.b16 %v1081, %v1073
        %v1538 = vpack.c.b16 %v1082, %v1074
        %v1539 = vpack.c.b16 %v1083, %v1075
        %v1540 = vpack.c.b16 %v1084, %v1076
        %v1541 = vpack.c.b16 %v1085, %v1077
        %v1542 = vpack.c.b16 %v1094, %v1086
        %v1543 = vpack.c.b16 %v1095, %v1087
        %v1544 = vpack.c.b16 %v1096, %v1088
        %v1545 = vpack.c.b16 %v1097, %v1089
        %v1546 = vpack.c.b16 %v1098, %v1090
        %v1547 = vpack.c.b16 %v1099, %v1091
        %v1548 = vpack.c.b16 %v1100, %v1092
        %v1549 = vpack.c.b16 %v1101, %v1093
        %v1550 = vpack.c.b16 %v1110, %v1102
        %v1551 = vpack.c.b16 %v1111, %v1103
        %v1552 = vpack.c.b16 %v1112, %v1104
        %v1553 = vpack.c.b16 %v1113, %v1105
        %v1554 = vpack.c.b16 %v1114, %v1106
        %v1555 = vpack.c.b16 %v1115, %v1107
        %v1556 = vpack.c.b16 %v1116, %v1108
        %v1557 = vpack.c.b16 %v1117, %v1109
        %v1558 = vpack.c.b16 %v1126, %v1118
        %v1559 = vpack.c.b16 %v1127, %v1119
        %v1560 = vpack.c.b16 %v1128, %v1120
        %v1561 = vpack.c.b16 %v1129, %v1121
        %v1562 = vpack.c.b16 %v1130, %v1122
        %v1563 = vpack.c.b16 %v1131, %v1123
        %v1564 = vpack.c.b16 %v1132, %v1124
        %v1565 = vpack.c.b16 %v1133, %v1125
        %v1566 = vpack.c.b16 %v1142, %v1134
        %v1567 = vpack.c.b16 %v1143, %v1135
        %v1568 = vpack.c.b16 %v1144, %v1136
        %v1569 = vpack.c.b16 %v1145, %v1137
        %v1570 = vpack.c.b16 %v1146, %v1138
        %v1571 = vpack.c.b16 %v1147, %v1139
        %v1572 = vpack.c.b16 %v1148, %v1140
        %v1573 = vpack.c.b16 %v1149, %v1141
        %v1574 = vpack.c.b16 %v1158, %v1150
        %v1575 = vpack.c.b16 %v1159, %v1151
        %v1576 = vpack.c.b16 %v1160, %v1152
        %v1577 = vpack.c.b16 %v1161, %v1153
        %v1578 = vpack.c.b16 %v1162, %v1154
        %v1579 = vpack.c.b16 %v1163, %v1155
        %v1580 = vpack.c.b16 %v1164, %v1156
        %v1581 = vpack.c.b16 %v1165, %v1157
        %v1582 = vpack.c.b16 %v1174, %v1166
        %v1583 = vpack.c.b16 %v1175, %v1167
        %v1584 = vpack.c.b16 %v1176, %v1168
        %v1585 = vpack.c.b16 %v1177, %v1169
        %v1586 = vpack.c.b16 %v1178, %v1170
        %v1587 = vpack.c.b16 %v1179, %v1171
        %v1588 = vpack.c.b16 %v1180, %v1172
        %v1589 = vpack.c.b16 %v1181, %v1173
        %v1590 = vpack.c.b16 %v1190, %v1182
        %v1591 = vpack.c.b16 %v1191, %v1183
        %v1592 = vpack.c.b16 %v1192, %v1184
        %v1593 = vpack.c.b16 %v1193, %v1185
        %v1594 = vpack.c.b16 %v1194, %v1186
        %v1595 = vpack.c.b16 %v1195, %v1187
        %v1596 = vpack.c.b16 %v1196, %v1188
        %v1597 = vpack.c.b16 %v1197, %v1189
        %v1598 = vpack.c.b16 %v1206, %v1198
        %v1599 = vpack.c.b16 %v1207, %v1199
        %v1600 = vpack.c.b16 %v1208, %v1200
        %v1601 = vpack.c.b16 %v1209, %v1201
        %v1602 = vpack.c.b16 %v1210, %v1202
        %v1603 = vpack.c.b16 %v1211, %v1203
        %v1604 = vpack.c.b16 %v1212, %v1204
        %v1605 = vpack.c.b16 %v1213, %v1205
        %v1606 = vpack.c.b16 %v1222, %v1214
        %v1607 = vpack.c.b16 %v1223, %v1215
        %v1608 = vpack.c.b16 %v1224, %v1216
        %v1609 = vpack.c.b16 %v1225, %v1217
        %v1610 = vpack.c.b16 %v1226, %v1218
        %v1611 = vpack.c.b16 %v1227, %v1219
        %v1612 = vpack.c.b16 %v1228, %v1220
        %v1613 = vpack.c.b16 %v1229, %v1221
        %v1614 = vpack.c.b16 %v1238, %v1230
        %v1615 = vpack.c.b16 %v1239, %v1231
        %v1616 = vpack.c.b16 %v1240, %v1232
        %v1617 = vpack.c.b16 %v1241, %v1233
        %v1618 = vpack.c.b16 %v1242, %v1234
        %v1619 = vpack.c.b16 %v1243, %v1235
        %v1620 = vpack.c.b16 %v1244, %v1236
        %v1621 = vpack.c.b16 %v1245, %v1237
        %v1622 = vpack.c.b16 %v1254, %v1246
        %v1623 = vpack.c.b16 %v1255, %v1247
        %v1624 = vpack.c.b16 %v1256, %v1248
        %v1625 = vpack.c.b16 %v1257, %v1249
        %v1626 = vpack.c.b16 %v1258, %v1250
        %v1627 = vpack.c.b16 %v1259, %v1251
        %v1628 = vpack.c.b16 %v1260, %v1252
        %v1629 = vpack.c.b16 %v1261, %v1253
        %v1630 = vpack.c.b16 %v1270, %v1262
        %v1631 = vpack.c.b16 %v1271, %v1263
        %v1632 = vpack.c.b16 %v1272, %v1264
        %v1633 = vpack.c.b16 %v1273, %v1265
        %v1634 = vpack.c.b16 %v1274, %v1266
        %v1635 = vpack.c.b16 %v1275, %v1267
        %v1636 = vpack.c.b16 %v1276, %v1268
        %v1637 = vpack.c.b16 %v1277, %v1269
        %v1638 = vpack.c.b16 %v1286, %v1278
        %v1639 = vpack.c.b16 %v1287, %v1279
        %v1640 = vpack.c.b16 %v1288, %v1280
        %v1641 = vpack.c.b16 %v1289, %v1281
        %v1642 = vpack.c.b16 %v1290, %v1282
        %v1643 = vpack.c.b16 %v1291, %v1283
        %v1644 = vpack.c.b16 %v1292, %v1284
        %v1645 = vpack.c.b16 %v1293, %v1285
        %v1646 = vpack.c.b16 %v1302, %v1294
        %v1647 = vpack.c.b16 %v1303, %v1295
        %v1648 = vpack.c.b16 %v1304, %v1296
        %v1649 = vpack.c.b16 %v1305, %v1297
        %v1650 = vpack.c.b16 %v1306, %v1298
        %v1651 = vpack.c.b16 %v1307, %v1299
        %v1652 = vpack.c.b16 %v1308, %v1300
        %v1653 = vpack.c.b16 %v1309, %v1301
        %v1654 = vpack.c.b16 %v1318, %v1310
        %v1655 = vpack.c.b16 %v1319, %v1311
        %v1656 = vpack.c.b16 %v1320, %v1312
        %v1657 = vpack.c.b16 %v1321, %v1313
        %v1658 = vpack.c.b16 %v1322, %v1314
        %v1659 = vpack.c.b16 %v1323, %v1315
        %v1660 = vpack.c.b16 %v1324, %v1316
        %v1661 = vpack.c.b16 %v1325, %v1317
        %v1662 = vpack.c.b16 %v1334, %v1326
        %v1663 = vpack.c.b16 %v1335, %v1327
        %v1664 = vpack.c.b16 %v1336, %v1328
        %v1665 = vpack.c.b16 %v1337, %v1329
        %v1666 = vpack.c.b16 %v1338, %v1330
        %v1667 = vpack.c.b16 %v1339, %v1331
        %v1668 = vpack.c.b16 %v1340, %v1332
        %v1669 = vpack.c.b16 %v1341, %v1333
        %v1670 = vpack.c.b16 %v1350, %v1342
        %v1671 = vpack.c.b16 %v1351, %v1343
        %v1672 = vpack.c.b16 %v1352, %v1344
        %v1673 = vpack.c.b16 %v1353, %v1345
        %v1674 = vpack.c.b16 %v1354, %v1346
        %v1675 = vpack.c.b16 %v1355, %v1347
        %v1676 = vpack.c.b16 %v1356, %v1348
        %v1677 = vpack.c.b16 %v1357, %v1349
        %v1678 = vpack.c.b16 %v1366, %v1358
        %v1679 = vpack.c.b16 %v1367, %v1359
        %v1680 = vpack.c.b16 %v1368, %v1360
        %v1681 = vpack.c.b16 %v1369, %v1361
        %v1682 = vpack.c.b16 %v1370, %v1362
        %v1683 = vpack.c.b16 %v1371, %v1363
        %v1684 = vpack.c.b16 %v1372, %v1364
        %v1685 = vpack.c.b16 %v1373, %v1365
        %v1686 = vpack.c.b16 %v1382, %v1374
        %v1687 = vpack.c.b16 %v1383, %v1375
        %v1688 = vpack.c.b16 %v1384, %v1376
        %v1689 = vpack.c.b16 %v1385, %v1377
        %v1690 = vpack.c.b16 %v1386, %v1378
        %v1691 = vpack.c.b16 %v1387, %v1379
        %v1692 = vpack.c.b16 %v1388, %v1380
        %v1693 = vpack.c.b16 %v1389, %v1381
        %v1694 = vpack.c.b16 %v1398, %v1390
        %v1695 = vpack.c.b16 %v1399, %v1391
        %v1696 = vpack.c.b16 %v1400, %v1392
        %v1697 = vpack.c.b16 %v1401, %v1393
        %v1698 = vpack.c.b16 %v1402, %v1394
        %v1699 = vpack.c.b16 %v1403, %v1395
        %v1700 = vpack.c.b16 %v1404, %v1396
        %v1701 = vpack.c.b16 %v1405, %v1397
        %v1702 = vpack.c.b16 %v1414, %v1406
        %v1703 = vpack.c.b16 %v1415, %v1407
        %v1704 = vpack.c.b16 %v1416, %v1408
        %v1705 = vpack.c.b16 %v1417, %v1409
        %v1706 = vpack.c.b16 %v1418, %v1410
        %v1707 = vpack.c.b16 %v1419, %v1411
        %v1708 = vpack.c.b16 %v1420, %v1412
        %v1709 = vpack.c.b16 %v1421, %v1413
        %v1710 = vpack.c.b16 %v1430, %v1422
        %v1711 = vpack.c.b16 %v1431, %v1423
        %v1712 = vpack.c.b16 %v1432, %v1424
        %v1713 = vpack.c.b16 %v1433, %v1425
        %v1714 = vpack.c.b16 %v1434, %v1426
        %v1715 = vpack.c.b16 %v1435, %v1427
        %v1716 = vpack.c.b16 %v1436, %v1428
        %v1717 = vpack.c.b16 %v1437, %v1429
        %v1718 = vpack.c.b16 %v1446, %v1438
        %v1719 = vpack.c.b16 %v1447, %v1439
        %v1720 = vpack.c.b16 %v1448, %v1440
        %v1721 = vpack.c.b16 %v1449, %v1441
        %v1722 = vpack.c.b16 %v1450, %v1442
        %v1723 = vpack.c.b16 %v1451, %v1443
        %v1724 = vpack.c.b16 %v1452, %v1444
        %v1725 = vpack.c.b16 %v1453, %v1445
        %v1726 = vpack.c.b16 %v1462, %v1454
        %v1727 = vpack.c.b16 %v1463, %v1455
        %v1728 = vpack.c.b16 %v1464, %v1456
        %v1729 = vpack.c.b16 %v1465, %v1457
        %v1730 = vpack.c.b16 %v1466, %v1458
        %v1731 = vpack.c.b16 %v1467, %v1459
        %v1732 = vpack.c.b16 %v1468, %v1460
        %v1733 = vpack.c.b16 %v1469, %v1461
        %v1734 = vpack.c.b16 %v1478, %v1470
        %v1735 = vpack.c.b16 %v1479, %v1471
        %v1736 = vpack.c.b16 %v1480, %v1472
        %v1737 = vpack.c.b16 %v1481, %v1473
        %v1738 = vpack.c.b16 %v1482, %v1474
        %v1739 = vpack.c.b16 %v1483, %v1475
        %v1740 = vpack.c.b16 %v1484, %v1476
        %v1741 = vpack.c.b16 %v1485, %v1477
        %1998 = vmatprep.subr.bf16.mxu0 %v1487
        %1999 = vmatpush1.bf16.msra.mxu0 %v1486
        %2000 = vmatprep.subr.bf16.mxu0 %v1495
        %2001 = vmatpush1.bf16.msra.mxu0 %v1494
        %2002 = vmatprep.subr.bf16.mxu0 %v1503
        %2003 = vmatpush1.bf16.msra.mxu0 %v1502
        %2004 = vmatprep.subr.bf16.mxu0 %v1511
        %2005 = vmatpush1.bf16.msra.mxu0 %v1510
        %2006 = vmatprep.subr.bf16.mxu0 %v1519
        %2007 = vmatpush1.bf16.msra.mxu0 %v1518
        %2008 = vmatprep.subr.bf16.mxu0 %v1527
        %2009 = vmatpush1.bf16.msra.mxu0 %v1526
        %2010 = vmatprep.subr.bf16.mxu0 %v1535
        %2011 = vmatpush1.bf16.msra.mxu0 %v1534
        %2012 = vmatprep.subr.bf16.mxu0 %v1543
        %2013 = vmatpush1.bf16.msra.mxu0 %v1542
        %2014 = vmatprep.subr.bf16.mxu0 %v1551
        %2015 = vmatpush1.bf16.msra.mxu0 %v1550
        %2016 = vmatprep.subr.bf16.mxu0 %v1559
        %2017 = vmatpush1.bf16.msra.mxu0 %v1558
        %2018 = vmatprep.subr.bf16.mxu0 %v1567
        %2019 = vmatpush1.bf16.msra.mxu0 %v1566
        %2020 = vmatprep.subr.bf16.mxu0 %v1575
        %2021 = vmatpush1.bf16.msra.mxu0 %v1574
        %2022 = vmatprep.subr.bf16.mxu0 %v1583
        %2023 = vmatpush1.bf16.msra.mxu0 %v1582
        %2024 = vmatprep.subr.bf16.mxu0 %v1591
        %2025 = vmatpush1.bf16.msra.mxu0 %v1590
        %2026 = vmatprep.subr.bf16.mxu0 %v1599
        %2027 = vmatpush1.bf16.msra.mxu0 %v1598
        %2028 = vmatprep.subr.bf16.mxu0 %v1607
        %2029 = vmatpush1.bf16.msra.mxu0 %v1606
        %2030 = vmatprep.mubr.bf16.mxu0 %v711
        %2031 = vmatmul.mubr.bf16.gmra.mrb[0].mxu0 %v704
        %v2032 = vpop.f32.mrb[0].mxu0
        %v2033 = vadd.f32 0.0, %v2032
        %v2034 = vpop.f32.mrb[0].mxu0
        %v2035 = vadd.f32 0.0, %v2034
        %v2036 = vpop.f32.mrb[0].mxu0
        %v2037 = vpop.f32.mrb[0].mxu0
        %2038 = vdwg.mxu0
        %2039 = vmatprep.subr.bf16.mxu0 %v1615
        %2040 = vmatpush1.bf16.msra.mxu0 %v1614
        %2041 = vmatprep.subr.bf16.mxu0 %v1623
        %2042 = vmatpush1.bf16.msra.mxu0 %v1622
        %2043 = vmatprep.subr.bf16.mxu0 %v1631
        %2044 = vmatpush1.bf16.msra.mxu0 %v1630
        %2045 = vmatprep.subr.bf16.mxu0 %v1639
        %2046 = vmatpush1.bf16.msra.mxu0 %v1638
        %2047 = vmatprep.subr.bf16.mxu0 %v1647
        %2048 = vmatpush1.bf16.msra.mxu0 %v1646
        %2049 = vmatprep.subr.bf16.mxu0 %v1655
        %2050 = vmatpush1.bf16.msra.mxu0 %v1654
        %2051 = vmatprep.subr.bf16.mxu0 %v1663
        %2052 = vmatpush1.bf16.msra.mxu0 %v1662
        %2053 = vmatprep.subr.bf16.mxu0 %v1671
        %2054 = vmatpush1.bf16.msra.mxu0 %v1670
        %2055 = vmatprep.subr.bf16.mxu0 %v1679
        %2056 = vmatpush1.bf16.msra.mxu0 %v1678
        %2057 = vmatprep.subr.bf16.mxu0 %v1687
        %2058 = vmatpush1.bf16.msra.mxu0 %v1686
        %2059 = vmatprep.subr.bf16.mxu0 %v1695
        %2060 = vmatpush1.bf16.msra.mxu0 %v1694
        %2061 = vmatprep.subr.bf16.mxu0 %v1703
        %2062 = vmatpush1.bf16.msra.mxu0 %v1702
        %2063 = vmatprep.subr.bf16.mxu0 %v1711
        %2064 = vmatpush1.bf16.msra.mxu0 %v1710
        %2065 = vmatprep.subr.bf16.mxu0 %v1719
        %2066 = vmatpush1.bf16.msra.mxu0 %v1718
        %2067 = vmatprep.subr.bf16.mxu0 %v1727
        %2068 = vmatpush1.bf16.msra.mxu0 %v1726
        %2069 = vmatprep.subr.bf16.mxu0 %v1735
        %2070 = vmatpush1.bf16.msra.mxu0 %v1734
        %2071 = vmatprep.mubr.bf16.mxu0 %v713
        %2072 = vmatmul.mubr.bf16.gmra.mrb[0].mxu0 %v712
        %v2073 = vpop.f32.mrb[0].mxu0
        %v2074 = vadd.f32 %v2033, %v2073
        %v2075 = vpop.f32.mrb[0].mxu0
        %v2076 = vadd.f32 %v2035, %v2075
        %v2077 = vpop.f32.mrb[0].mxu0
        %v2078 = vpop.f32.mrb[0].mxu0
        %2079 = vdwg.mxu0
        %2080 = vmatprep.subr.bf16.mxu0 %v1489
        %2081 = vmatpush1.bf16.msra.mxu0 %v1488
        %2082 = vmatprep.subr.bf16.mxu0 %v1497
        %2083 = vmatpush1.bf16.msra.mxu0 %v1496
        %2084 = vmatprep.subr.bf16.mxu0 %v1505
        %2085 = vmatpush1.bf16.msra.mxu0 %v1504
        %2086 = vmatprep.subr.bf16.mxu0 %v1513
        %2087 = vmatpush1.bf16.msra.mxu0 %v1512
        %2088 = vmatprep.subr.bf16.mxu0 %v1521
        %2089 = vmatpush1.bf16.msra.mxu0 %v1520
        %2090 = vmatprep.subr.bf16.mxu0 %v1529
        %2091 = vmatpush1.bf16.msra.mxu0 %v1528
        %2092 = vmatprep.subr.bf16.mxu0 %v1537
        %2093 = vmatpush1.bf16.msra.mxu0 %v1536
        %2094 = vmatprep.subr.bf16.mxu0 %v1545
        %2095 = vmatpush1.bf16.msra.mxu0 %v1544
        %2096 = vmatprep.subr.bf16.mxu0 %v1553
        %2097 = vmatpush1.bf16.msra.mxu0 %v1552
        %2098 = vmatprep.subr.bf16.mxu0 %v1561
        %2099 = vmatpush1.bf16.msra.mxu0 %v1560
        %2100 = vmatprep.subr.bf16.mxu0 %v1569
        %2101 = vmatpush1.bf16.msra.mxu0 %v1568
        %2102 = vmatprep.subr.bf16.mxu0 %v1577
        %2103 = vmatpush1.bf16.msra.mxu0 %v1576
        %2104 = vmatprep.subr.bf16.mxu0 %v1585
        %2105 = vmatpush1.bf16.msra.mxu0 %v1584
        %2106 = vmatprep.subr.bf16.mxu0 %v1593
        %2107 = vmatpush1.bf16.msra.mxu0 %v1592
        %2108 = vmatprep.subr.bf16.mxu0 %v1601
        %2109 = vmatpush1.bf16.msra.mxu0 %v1600
        %2110 = vmatprep.subr.bf16.mxu0 %v1609
        %2111 = vmatpush1.bf16.msra.mxu0 %v1608
        %2112 = vmatprep.mubr.bf16.mxu0 %v711
        %2113 = vmatmul.mubr.bf16.gmra.mrb[0].mxu0 %v704
        %v2114 = vpop.f32.mrb[0].mxu0
        %v2115 = vadd.f32 0.0, %v2114
        %v2116 = vpop.f32.mrb[0].mxu0
        %v2117 = vadd.f32 0.0, %v2116
        %v2118 = vpop.f32.mrb[0].mxu0
        %v2119 = vpop.f32.mrb[0].mxu0
        %2120 = vdwg.mxu0
        %2121 = vmatprep.subr.bf16.mxu0 %v1617
        %2122 = vmatpush1.bf16.msra.mxu0 %v1616
        %2123 = vmatprep.subr.bf16.mxu0 %v1625
        %2124 = vmatpush1.bf16.msra.mxu0 %v1624
        %2125 = vmatprep.subr.bf16.mxu0 %v1633
        %2126 = vmatpush1.bf16.msra.mxu0 %v1632
        %2127 = vmatprep.subr.bf16.mxu0 %v1641
        %2128 = vmatpush1.bf16.msra.mxu0 %v1640
        %2129 = vmatprep.subr.bf16.mxu0 %v1649
        %2130 = vmatpush1.bf16.msra.mxu0 %v1648
        %2131 = vmatprep.subr.bf16.mxu0 %v1657
        %2132 = vmatpush1.bf16.msra.mxu0 %v1656
        %2133 = vmatprep.subr.bf16.mxu0 %v1665
        %2134 = vmatpush1.bf16.msra.mxu0 %v1664
        %2135 = vmatprep.subr.bf16.mxu0 %v1673
        %2136 = vmatpush1.bf16.msra.mxu0 %v1672
        %2137 = vmatprep.subr.bf16.mxu0 %v1681
        %2138 = vmatpush1.bf16.msra.mxu0 %v1680
        %2139 = vmatprep.subr.bf16.mxu0 %v1689
        %2140 = vmatpush1.bf16.msra.mxu0 %v1688
        %2141 = vmatprep.subr.bf16.mxu0 %v1697
        %2142 = vmatpush1.bf16.msra.mxu0 %v1696
        %2143 = vmatprep.subr.bf16.mxu0 %v1705
        %2144 = vmatpush1.bf16.msra.mxu0 %v1704
        %2145 = vmatprep.subr.bf16.mxu0 %v1713
        %2146 = vmatpush1.bf16.msra.mxu0 %v1712
        %2147 = vmatprep.subr.bf16.mxu0 %v1721
        %2148 = vmatpush1.bf16.msra.mxu0 %v1720
        %2149 = vmatprep.subr.bf16.mxu0 %v1729
        %2150 = vmatpush1.bf16.msra.mxu0 %v1728
        %2151 = vmatprep.subr.bf16.mxu0 %v1737
        %2152 = vmatpush1.bf16.msra.mxu0 %v1736
        %2153 = vmatprep.mubr.bf16.mxu0 %v713
        %2154 = vmatmul.mubr.bf16.gmra.mrb[0].mxu0 %v712
        %v2155 = vpop.f32.mrb[0].mxu0
        %v2156 = vadd.f32 %v2115, %v2155
        %v2157 = vpop.f32.mrb[0].mxu0
        %v2158 = vadd.f32 %v2117, %v2157
        %v2159 = vpop.f32.mrb[0].mxu0
        %v2160 = vpop.f32.mrb[0].mxu0
        %2161 = vdwg.mxu0
        %2162 = vmatprep.subr.bf16.mxu0 %v1491
        %2163 = vmatpush1.bf16.msra.mxu0 %v1490
        %2164 = vmatprep.subr.bf16.mxu0 %v1499
        %2165 = vmatpush1.bf16.msra.mxu0 %v1498
        %2166 = vmatprep.subr.bf16.mxu0 %v1507
        %2167 = vmatpush1.bf16.msra.mxu0 %v1506
        %2168 = vmatprep.subr.bf16.mxu0 %v1515
        %2169 = vmatpush1.bf16.msra.mxu0 %v1514
        %2170 = vmatprep.subr.bf16.mxu0 %v1523
        %2171 = vmatpush1.bf16.msra.mxu0 %v1522
        %2172 = vmatprep.subr.bf16.mxu0 %v1531
        %2173 = vmatpush1.bf16.msra.mxu0 %v1530
        %2174 = vmatprep.subr.bf16.mxu0 %v1539
        %2175 = vmatpush1.bf16.msra.mxu0 %v1538
        %2176 = vmatprep.subr.bf16.mxu0 %v1547
        %2177 = vmatpush1.bf16.msra.mxu0 %v1546
        %2178 = vmatprep.subr.bf16.mxu0 %v1555
        %2179 = vmatpush1.bf16.msra.mxu0 %v1554
        %2180 = vmatprep.subr.bf16.mxu0 %v1563
        %2181 = vmatpush1.bf16.msra.mxu0 %v1562
        %2182 = vmatprep.subr.bf16.mxu0 %v1571
        %2183 = vmatpush1.bf16.msra.mxu0 %v1570
        %2184 = vmatprep.subr.bf16.mxu0 %v1579
        %2185 = vmatpush1.bf16.msra.mxu0 %v1578
        %2186 = vmatprep.subr.bf16.mxu0 %v1587
        %2187 = vmatpush1.bf16.msra.mxu0 %v1586
        %2188 = vmatprep.subr.bf16.mxu0 %v1595
        %2189 = vmatpush1.bf16.msra.mxu0 %v1594
        %2190 = vmatprep.subr.bf16.mxu0 %v1603
        %2191 = vmatpush1.bf16.msra.mxu0 %v1602
        %2192 = vmatprep.subr.bf16.mxu0 %v1611
        %2193 = vmatpush1.bf16.msra.mxu0 %v1610
        %2194 = vmatprep.mubr.bf16.mxu0 %v711
        %2195 = vmatmul.mubr.bf16.gmra.mrb[0].mxu0 %v704
        %v2196 = vpop.f32.mrb[0].mxu0
        %v2197 = vadd.f32 0.0, %v2196
        %v2198 = vpop.f32.mrb[0].mxu0
        %v2199 = vadd.f32 0.0, %v2198
        %v2200 = vpop.f32.mrb[0].mxu0
        %v2201 = vpop.f32.mrb[0].mxu0
        %2202 = vdwg.mxu0
        %2203 = vmatprep.subr.bf16.mxu0 %v1619
        %2204 = vmatpush1.bf16.msra.mxu0 %v1618
        %2205 = vmatprep.subr.bf16.mxu0 %v1627
        %2206 = vmatpush1.bf16.msra.mxu0 %v1626
        %2207 = vmatprep.subr.bf16.mxu0 %v1635
        %2208 = vmatpush1.bf16.msra.mxu0 %v1634
        %2209 = vmatprep.subr.bf16.mxu0 %v1643
        %2210 = vmatpush1.bf16.msra.mxu0 %v1642
        %2211 = vmatprep.subr.bf16.mxu0 %v1651
        %2212 = vmatpush1.bf16.msra.mxu0 %v1650
        %2213 = vmatprep.subr.bf16.mxu0 %v1659
        %2214 = vmatpush1.bf16.msra.mxu0 %v1658
        %2215 = vmatprep.subr.bf16.mxu0 %v1667
        %2216 = vmatpush1.bf16.msra.mxu0 %v1666
        %2217 = vmatprep.subr.bf16.mxu0 %v1675
        %2218 = vmatpush1.bf16.msra.mxu0 %v1674
        %2219 = vmatprep.subr.bf16.mxu0 %v1683
        %2220 = vmatpush1.bf16.msra.mxu0 %v1682
        %2221 = vmatprep.subr.bf16.mxu0 %v1691
        %2222 = vmatpush1.bf16.msra.mxu0 %v1690
        %2223 = vmatprep.subr.bf16.mxu0 %v1699
        %2224 = vmatpush1.bf16.msra.mxu0 %v1698
        %2225 = vmatprep.subr.bf16.mxu0 %v1707
        %2226 = vmatpush1.bf16.msra.mxu0 %v1706
        %2227 = vmatprep.subr.bf16.mxu0 %v1715
        %2228 = vmatpush1.bf16.msra.mxu0 %v1714
        %2229 = vmatprep.subr.bf16.mxu0 %v1723
        %2230 = vmatpush1.bf16.msra.mxu0 %v1722
        %2231 = vmatprep.subr.bf16.mxu0 %v1731
        %2232 = vmatpush1.bf16.msra.mxu0 %v1730
        %2233 = vmatprep.subr.bf16.mxu0 %v1739
        %2234 = vmatpush1.bf16.msra.mxu0 %v1738
        %2235 = vmatprep.mubr.bf16.mxu0 %v713
        %2236 = vmatmul.mubr.bf16.gmra.mrb[0].mxu0 %v712
        %v2237 = vpop.f32.mrb[0].mxu0
        %v2238 = vadd.f32 %v2197, %v2237
        %v2239 = vpop.f32.mrb[0].mxu0
        %v2240 = vadd.f32 %v2199, %v2239
        %v2241 = vpop.f32.mrb[0].mxu0
        %v2242 = vpop.f32.mrb[0].mxu0
        %2243 = vdwg.mxu0
        %2244 = vmatprep.subr.bf16.mxu0 %v1493
        %2245 = vmatpush1.bf16.msra.mxu0 %v1492
        %2246 = vmatprep.subr.bf16.mxu0 %v1501
        %2247 = vmatpush1.bf16.msra.mxu0 %v1500
        %2248 = vmatprep.subr.bf16.mxu0 %v1509
        %2249 = vmatpush1.bf16.msra.mxu0 %v1508
        %2250 = vmatprep.subr.bf16.mxu0 %v1517
        %2251 = vmatpush1.bf16.msra.mxu0 %v1516
        %2252 = vmatprep.subr.bf16.mxu0 %v1525
        %2253 = vmatpush1.bf16.msra.mxu0 %v1524
        %2254 = vmatprep.subr.bf16.mxu0 %v1533
        %2255 = vmatpush1.bf16.msra.mxu0 %v1532
        %2256 = vmatprep.subr.bf16.mxu0 %v1541
        %2257 = vmatpush1.bf16.msra.mxu0 %v1540
        %2258 = vmatprep.subr.bf16.mxu0 %v1549
        %2259 = vmatpush1.bf16.msra.mxu0 %v1548
        %2260 = vmatprep.subr.bf16.mxu0 %v1557
        %2261 = vmatpush1.bf16.msra.mxu0 %v1556
        %2262 = vmatprep.subr.bf16.mxu0 %v1565
        %2263 = vmatpush1.bf16.msra.mxu0 %v1564
        %2264 = vmatprep.subr.bf16.mxu0 %v1573
        %2265 = vmatpush1.bf16.msra.mxu0 %v1572
        %2266 = vmatprep.subr.bf16.mxu0 %v1581
        %2267 = vmatpush1.bf16.msra.mxu0 %v1580
        %2268 = vmatprep.subr.bf16.mxu0 %v1589
        %2269 = vmatpush1.bf16.msra.mxu0 %v1588
        %2270 = vmatprep.subr.bf16.mxu0 %v1597
        %2271 = vmatpush1.bf16.msra.mxu0 %v1596
        %2272 = vmatprep.subr.bf16.mxu0 %v1605
        %2273 = vmatpush1.bf16.msra.mxu0 %v1604
        %2274 = vmatprep.subr.bf16.mxu0 %v1613
        %2275 = vmatpush1.bf16.msra.mxu0 %v1612
        %2276 = vmatprep.mubr.bf16.mxu0 %v711
        %2277 = vmatmul.mubr.bf16.gmra.mrb[0].mxu0 %v704
        %v2278 = vpop.f32.mrb[0].mxu0
        %v2279 = vadd.f32 0.0, %v2278
        %v2280 = vpop.f32.mrb[0].mxu0
        %v2281 = vadd.f32 0.0, %v2280
        %v2282 = vpop.f32.mrb[0].mxu0
        %v2283 = vpop.f32.mrb[0].mxu0
        %2284 = vdwg.mxu0
        %2285 = vmatprep.subr.bf16.mxu0 %v1621
        %2286 = vmatpush1.bf16.msra.mxu0 %v1620
        %2287 = vmatprep.subr.bf16.mxu0 %v1629
        %2288 = vmatpush1.bf16.msra.mxu0 %v1628
        %2289 = vmatprep.subr.bf16.mxu0 %v1637
        %2290 = vmatpush1.bf16.msra.mxu0 %v1636
        %2291 = vmatprep.subr.bf16.mxu0 %v1645
        %2292 = vmatpush1.bf16.msra.mxu0 %v1644
        %2293 = vmatprep.subr.bf16.mxu0 %v1653
        %2294 = vmatpush1.bf16.msra.mxu0 %v1652
        %2295 = vmatprep.subr.bf16.mxu0 %v1661
        %2296 = vmatpush1.bf16.msra.mxu0 %v1660
        %2297 = vmatprep.subr.bf16.mxu0 %v1669
        %2298 = vmatpush1.bf16.msra.mxu0 %v1668
        %2299 = vmatprep.subr.bf16.mxu0 %v1677
        %2300 = vmatpush1.bf16.msra.mxu0 %v1676
        %2301 = vmatprep.subr.bf16.mxu0 %v1685
        %2302 = vmatpush1.bf16.msra.mxu0 %v1684
        %2303 = vmatprep.subr.bf16.mxu0 %v1693
        %2304 = vmatpush1.bf16.msra.mxu0 %v1692
        %2305 = vmatprep.subr.bf16.mxu0 %v1701
        %2306 = vmatpush1.bf16.msra.mxu0 %v1700
        %2307 = vmatprep.subr.bf16.mxu0 %v1709
        %2308 = vmatpush1.bf16.msra.mxu0 %v1708
        %2309 = vmatprep.subr.bf16.mxu0 %v1717
        %2310 = vmatpush1.bf16.msra.mxu0 %v1716
        %2311 = vmatprep.subr.bf16.mxu0 %v1725
        %2312 = vmatpush1.bf16.msra.mxu0 %v1724
        %2313 = vmatprep.subr.bf16.mxu0 %v1733
        %2314 = vmatpush1.bf16.msra.mxu0 %v1732
        %2315 = vmatprep.subr.bf16.mxu0 %v1741
        %2316 = vmatpush1.bf16.msra.mxu0 %v1740
        %2317 = vmatprep.mubr.bf16.mxu0 %v713
        %2318 = vmatmul.mubr.bf16.gmra.mrb[0].mxu0 %v712
        %v2319 = vpop.f32.mrb[0].mxu0
        %v2320 = vadd.f32 %v2279, %v2319
        %v2321 = vpop.f32.mrb[0].mxu0
        %v2322 = vadd.f32 %v2281, %v2321
        %v2323 = vpop.f32.mrb[0].mxu0
        %v2324 = vpop.f32.mrb[0].mxu0
        %2325 = vdwg.mxu0
        %v2334 = vcombine.low %v2074, %v2076
        %v2335 = vcombine.low %v2156, %v2158
        %v2337 = vunpack.c.l.s4 1983009808
        %v2338 = vunpack.c.0.s8 %v2337
        %v2339 = vlaneseq
        %v2340 = vshrl.u32 %v2339, 7
        %v2341 = vsub.s32 %v2338, %v2340
        %v2342 = vrot.slane %v2334, %v2341
        %v2344 = vunpack.c.l.s4 1983009808
        %v2345 = vunpack.c.0.s8 %v2344
        %v2346 = vlaneseq
        %v2347 = vshrl.u32 %v2346, 7
        %v2348 = vsub.s32 %v2345, %v2347
        %v2349 = vrot.slane %v2335, %v2348
        %v2350 = vcombine.low %v2342, %v2349
        %v2351 = vcombine.low %v2238, %v2240
        %v2352 = vcombine.low %v2320, %v2322
        %v2354 = vunpack.c.l.s4 1983009808
        %v2355 = vunpack.c.0.s8 %v2354
        %v2356 = vlaneseq
        %v2357 = vshrl.u32 %v2356, 7
        %v2358 = vsub.s32 %v2355, %v2357
        %v2359 = vrot.slane %v2351, %v2358
        %v2361 = vunpack.c.l.s4 1983009808
        %v2362 = vunpack.c.0.s8 %v2361
        %v2363 = vlaneseq
        %v2364 = vshrl.u32 %v2363, 7
        %v2365 = vsub.s32 %v2362, %v2364
        %v2366 = vrot.slane %v2352, %v2365
        %v2367 = vcombine.low %v2359, %v2366
        %v2370 = vadd.f32 %v430, %v2350
        %v2371 = vadd.f32 %v431, %v2367
        %2372 = vst [vmem:[#allocation2] sm:$0xff] %v2370
        %2373 = vst [vmem:[#allocation2 + $0x8] sm:$0xff] %v2371
        %p2374 = scmp.eq.s32.totalorder %s29, 3
        // Predicated region
        $region73: #{encoder_forward.11} parent=51 // pred_check
          %p2375 = pneg %p2374
        $region74: #{encoder_forward.11} parent=51 // pred_check_branch
          %2377 = sbr.rel (%p2375) target = $region76
        $region75: #{encoder_forward.11} parent=51 // pred_region
          %v2378 = vld [vmem:[#allocation2] sm:$0xff]
          %v2379 = vld [vmem:[#allocation2 + $0x8] sm:$0xff]
          %v2382 = vcombine.high %v2378, %v2378
          %v2384 = vunpack.c.l.s4 1983009808
          %v2385 = vunpack.c.0.s8 %v2384
          %v2386 = vlaneseq
          %v2387 = vshrl.u32 %v2386, 7
          %v2388 = vsub.s32 %v2385, %v2387
          %v2389 = vrot.slane %v2378, %v2388
          %v2391 = vunpack.c.l.s4 1983009808
          %v2392 = vunpack.c.0.s8 %v2391
          %v2393 = vlaneseq
          %v2394 = vshrl.u32 %v2393, 7
          %v2395 = vsub.s32 %v2392, %v2394
          %v2396 = vrot.slane %v2382, %v2395
          %v2397 = vcombine.high %v2389, %v2389
          %v2398 = vcombine.high %v2396, %v2396
          %v2399 = vcombine.high %v2379, %v2379
          %v2401 = vunpack.c.l.s4 1983009808
          %v2402 = vunpack.c.0.s8 %v2401
          %v2403 = vlaneseq
          %v2404 = vshrl.u32 %v2403, 7
          %v2405 = vsub.s32 %v2402, %v2404
          %v2406 = vrot.slane %v2379, %v2405
          %v2408 = vunpack.c.l.s4 1983009808
          %v2409 = vunpack.c.0.s8 %v2408
          %v2410 = vlaneseq
          %v2411 = vshrl.u32 %v2410, 7
          %v2412 = vsub.s32 %v2409, %v2411
          %v2413 = vrot.slane %v2399, %v2412
          %v2414 = vcombine.high %v2406, %v2406
          %v2415 = vcombine.high %v2413, %v2413
          %vm2424 = vcmask 1041408
          %v2425 = vsel %vm2424, %v2389, 0.0
          %v2426 = vrot.slane %v2425, 4
          %v2427 = vadd.f32 %v2425, %v2426
          %v2428 = vrot.slane %v2427, 2
          %v2429 = vadd.f32 %v2427, %v2428
          %v2430 = vrot.slane %v2429, 1
          %v2431 = vadd.f32 %v2429, %v2430
          %v2432 = vsel %vm2424, %v2397, 0.0
          %v2433 = vrot.slane %v2432, 4
          %v2434 = vadd.f32 %v2432, %v2433
          %v2435 = vrot.slane %v2434, 2
          %v2436 = vadd.f32 %v2434, %v2435
          %v2437 = vrot.slane %v2436, 1
          %v2438 = vadd.f32 %v2436, %v2437
          %v2439 = vsel %vm2424, %v2396, 0.0
          %v2440 = vrot.slane %v2439, 4
          %v2441 = vadd.f32 %v2439, %v2440
          %v2442 = vrot.slane %v2441, 2
          %v2443 = vadd.f32 %v2441, %v2442
          %v2444 = vrot.slane %v2443, 1
          %v2445 = vadd.f32 %v2443, %v2444
          %v2446 = vsel %vm2424, %v2398, 0.0
          %v2447 = vrot.slane %v2446, 4
          %v2448 = vadd.f32 %v2446, %v2447
          %v2449 = vrot.slane %v2448, 2
          %v2450 = vadd.f32 %v2448, %v2449
          %v2451 = vrot.slane %v2450, 1
          %v2452 = vadd.f32 %v2450, %v2451
          %v2453 = vsel %vm2424, %v2406, 0.0
          %v2454 = vrot.slane %v2453, 4
          %v2455 = vadd.f32 %v2453, %v2454
          %v2456 = vrot.slane %v2455, 2
          %v2457 = vadd.f32 %v2455, %v2456
          %v2458 = vrot.slane %v2457, 1
          %v2459 = vadd.f32 %v2457, %v2458
          %v2460 = vsel %vm2424, %v2414, 0.0
          %v2461 = vrot.slane %v2460, 4
          %v2462 = vadd.f32 %v2460, %v2461
          %v2463 = vrot.slane %v2462, 2
          %v2464 = vadd.f32 %v2462, %v2463
          %v2465 = vrot.slane %v2464, 1
          %v2466 = vadd.f32 %v2464, %v2465
          %v2467 = vsel %vm2424, %v2413, 0.0
          %v2468 = vrot.slane %v2467, 4
          %v2469 = vadd.f32 %v2467, %v2468
          %v2470 = vrot.slane %v2469, 2
          %v2471 = vadd.f32 %v2469, %v2470
          %v2472 = vrot.slane %v2471, 1
          %v2473 = vadd.f32 %v2471, %v2472
          %v2474 = vsel %vm2424, %v2415, 0.0
          %v2475 = vrot.slane %v2474, 4
          %v2476 = vadd.f32 %v2474, %v2475
          %v2477 = vrot.slane %v2476, 2
          %v2478 = vadd.f32 %v2476, %v2477
          %v2479 = vrot.slane %v2478, 1
          %v2480 = vadd.f32 %v2478, %v2479
          %v2481 = vrcp.pop 2.0
          %v2482 = vmul.f32 %v2431, %v2481
          %v2483 = vmul.f32 %v2438, %v2481
          %v2484 = vmul.f32 %v2445, %v2481
          %v2485 = vmul.f32 %v2452, %v2481
          %v2486 = vmul.f32 %v2459, %v2481
          %v2487 = vmul.f32 %v2466, %v2481
          %v2488 = vmul.f32 %v2473, %v2481
          %v2489 = vmul.f32 %v2480, %v2481
          %v2498 = vcombine.low %v2482, %v2483
          %v2499 = vcombine.low %v2484, %v2485
          %v2501 = vunpack.c.l.s4 1983009808
          %v2502 = vunpack.c.0.s8 %v2501
          %v2503 = vlaneseq
          %v2504 = vshrl.u32 %v2503, 7
          %v2505 = vsub.s32 %v2502, %v2504
          %v2506 = vrot.slane %v2498, %v2505
          %v2508 = vunpack.c.l.s4 1983009808
          %v2509 = vunpack.c.0.s8 %v2508
          %v2510 = vlaneseq
          %v2511 = vshrl.u32 %v2510, 7
          %v2512 = vsub.s32 %v2509, %v2511
          %v2513 = vrot.slane %v2499, %v2512
          %v2514 = vcombine.low %v2506, %v2513
          %v2515 = vcombine.low %v2486, %v2487
          %v2516 = vcombine.low %v2488, %v2489
          %v2518 = vunpack.c.l.s4 1983009808
          %v2519 = vunpack.c.0.s8 %v2518
          %v2520 = vlaneseq
          %v2521 = vshrl.u32 %v2520, 7
          %v2522 = vsub.s32 %v2519, %v2521
          %v2523 = vrot.slane %v2515, %v2522
          %v2525 = vunpack.c.l.s4 1983009808
          %v2526 = vunpack.c.0.s8 %v2525
          %v2527 = vlaneseq
          %v2528 = vshrl.u32 %v2527, 7
          %v2529 = vsub.s32 %v2526, %v2528
          %v2530 = vrot.slane %v2516, %v2529
          %v2531 = vcombine.low %v2523, %v2530
          %v2534 = vsub.f32 %v2378, %v2514
          %v2535 = vsub.f32 %v2379, %v2531
          %v2536 = vmul.f32 %v2534, %v2534
          %v2537 = vmul.f32 %v2535, %v2535
          %v2540 = vcombine.high %v2536, %v2536
          %v2542 = vunpack.c.l.s4 1983009808
          %v2543 = vunpack.c.0.s8 %v2542
          %v2544 = vlaneseq
          %v2545 = vshrl.u32 %v2544, 7
          %v2546 = vsub.s32 %v2543, %v2545
          %v2547 = vrot.slane %v2536, %v2546
          %v2549 = vunpack.c.l.s4 1983009808
          %v2550 = vunpack.c.0.s8 %v2549
          %v2551 = vlaneseq
          %v2552 = vshrl.u32 %v2551, 7
          %v2553 = vsub.s32 %v2550, %v2552
          %v2554 = vrot.slane %v2540, %v2553
          %v2555 = vcombine.high %v2547, %v2547
          %v2556 = vcombine.high %v2554, %v2554
          %v2557 = vcombine.high %v2537, %v2537
          %v2559 = vunpack.c.l.s4 1983009808
          %v2560 = vunpack.c.0.s8 %v2559
          %v2561 = vlaneseq
          %v2562 = vshrl.u32 %v2561, 7
          %v2563 = vsub.s32 %v2560, %v2562
          %v2564 = vrot.slane %v2537, %v2563
          %v2566 = vunpack.c.l.s4 1983009808
          %v2567 = vunpack.c.0.s8 %v2566
          %v2568 = vlaneseq
          %v2569 = vshrl.u32 %v2568, 7
          %v2570 = vsub.s32 %v2567, %v2569
          %v2571 = vrot.slane %v2557, %v2570
          %v2572 = vcombine.high %v2564, %v2564
          %v2573 = vcombine.high %v2571, %v2571
          %v2582 = vsel %vm2424, %v2547, 0.0
          %v2583 = vrot.slane %v2582, 4
          %v2584 = vadd.f32 %v2582, %v2583
          %v2585 = vrot.slane %v2584, 2
          %v2586 = vadd.f32 %v2584, %v2585
          %v2587 = vrot.slane %v2586, 1
          %v2588 = vadd.f32 %v2586, %v2587
          %v2589 = vsel %vm2424, %v2555, 0.0
          %v2590 = vrot.slane %v2589, 4
          %v2591 = vadd.f32 %v2589, %v2590
          %v2592 = vrot.slane %v2591, 2
          %v2593 = vadd.f32 %v2591, %v2592
          %v2594 = vrot.slane %v2593, 1
          %v2595 = vadd.f32 %v2593, %v2594
          %v2596 = vsel %vm2424, %v2554, 0.0
          %v2597 = vrot.slane %v2596, 4
          %v2598 = vadd.f32 %v2596, %v2597
          %v2599 = vrot.slane %v2598, 2
          %v2600 = vadd.f32 %v2598, %v2599
          %v2601 = vrot.slane %v2600, 1
          %v2602 = vadd.f32 %v2600, %v2601
          %v2603 = vsel %vm2424, %v2556, 0.0
          %v2604 = vrot.slane %v2603, 4
          %v2605 = vadd.f32 %v2603, %v2604
          %v2606 = vrot.slane %v2605, 2
          %v2607 = vadd.f32 %v2605, %v2606
          %v2608 = vrot.slane %v2607, 1
          %v2609 = vadd.f32 %v2607, %v2608
          %v2610 = vsel %vm2424, %v2564, 0.0
          %v2611 = vrot.slane %v2610, 4
          %v2612 = vadd.f32 %v2610, %v2611
          %v2613 = vrot.slane %v2612, 2
          %v2614 = vadd.f32 %v2612, %v2613
          %v2615 = vrot.slane %v2614, 1
          %v2616 = vadd.f32 %v2614, %v2615
          %v2617 = vsel %vm2424, %v2572, 0.0
          %v2618 = vrot.slane %v2617, 4
          %v2619 = vadd.f32 %v2617, %v2618
          %v2620 = vrot.slane %v2619, 2
          %v2621 = vadd.f32 %v2619, %v2620
          %v2622 = vrot.slane %v2621, 1
          %v2623 = vadd.f32 %v2621, %v2622
          %v2624 = vsel %vm2424, %v2571, 0.0
          %v2625 = vrot.slane %v2624, 4
          %v2626 = vadd.f32 %v2624, %v2625
          %v2627 = vrot.slane %v2626, 2
          %v2628 = vadd.f32 %v2626, %v2627
          %v2629 = vrot.slane %v2628, 1
          %v2630 = vadd.f32 %v2628, %v2629
          %v2631 = vsel %vm2424, %v2573, 0.0
          %v2632 = vrot.slane %v2631, 4
          %v2633 = vadd.f32 %v2631, %v2632
          %v2634 = vrot.slane %v2633, 2
          %v2635 = vadd.f32 %v2633, %v2634
          %v2636 = vrot.slane %v2635, 1
          %v2637 = vadd.f32 %v2635, %v2636
          %v2638 = vmul.f32 %v2588, %v2481
          %v2639 = vmul.f32 %v2595, %v2481
          %v2640 = vmul.f32 %v2602, %v2481
          %v2641 = vmul.f32 %v2609, %v2481
          %v2642 = vmul.f32 %v2616, %v2481
          %v2643 = vmul.f32 %v2623, %v2481
          %v2644 = vmul.f32 %v2630, %v2481
          %v2645 = vmul.f32 %v2637, %v2481
          %v2646 = vadd.f32 %v2638, 1e-05
          %v2647 = vadd.f32 %v2639, 1e-05
          %v2648 = vadd.f32 %v2640, 1e-05
          %v2649 = vadd.f32 %v2641, 1e-05
          %v2650 = vadd.f32 %v2642, 1e-05
          %v2651 = vadd.f32 %v2643, 1e-05
          %v2652 = vadd.f32 %v2644, 1e-05
          %v2653 = vadd.f32 %v2645, 1e-05
          %v2654 = vrsqrt.pop %v2646
          %v2655 = vrsqrt.pop %v2647
          %v2656 = vrsqrt.pop %v2648
          %v2657 = vrsqrt.pop %v2649
          %v2658 = vrsqrt.pop %v2650
          %v2659 = vrsqrt.pop %v2651
          %v2660 = vrsqrt.pop %v2652
          %v2661 = vrsqrt.pop %v2653
          %v2670 = vcombine.low %v2654, %v2655
          %v2671 = vcombine.low %v2656, %v2657
          %v2673 = vunpack.c.l.s4 1983009808
          %v2674 = vunpack.c.0.s8 %v2673
          %v2675 = vlaneseq
          %v2676 = vshrl.u32 %v2675, 7
          %v2677 = vsub.s32 %v2674, %v2676
          %v2678 = vrot.slane %v2670, %v2677
          %v2680 = vunpack.c.l.s4 1983009808
          %v2681 = vunpack.c.0.s8 %v2680
          %v2682 = vlaneseq
          %v2683 = vshrl.u32 %v2682, 7
          %v2684 = vsub.s32 %v2681, %v2683
          %v2685 = vrot.slane %v2671, %v2684
          %v2686 = vcombine.low %v2678, %v2685
          %v2687 = vcombine.low %v2658, %v2659
          %v2688 = vcombine.low %v2660, %v2661
          %v2690 = vunpack.c.l.s4 1983009808
          %v2691 = vunpack.c.0.s8 %v2690
          %v2692 = vlaneseq
          %v2693 = vshrl.u32 %v2692, 7
          %v2694 = vsub.s32 %v2691, %v2693
          %v2695 = vrot.slane %v2687, %v2694
          %v2697 = vunpack.c.l.s4 1983009808
          %v2698 = vunpack.c.0.s8 %v2697
          %v2699 = vlaneseq
          %v2700 = vshrl.u32 %v2699, 7
          %v2701 = vsub.s32 %v2698, %v2700
          %v2702 = vrot.slane %v2688, %v2701
          %v2703 = vcombine.low %v2695, %v2702
          %v2706 = vmul.f32 %v2534, %v2686
          %v2707 = vmul.f32 %v2535, %v2703
          %v2708 = vld [vmem:[#allocation6] sm:$0xff]
          %v2710 = vlaneseq
          %v2711 = vshrl.u32 %v2710, 7
          %v2712 = vsub.s32 0, %v2711
          %v2713 = vrot.slane %v2708, %v2712
          %v2714 = vlaneseq
          %v2715 = vshrl.u32 %v2714, 7
          %v2716 = vsub.s32 1, %v2715
          %v2717 = vrot.slane %v2708, %v2716
          %v2718 = vlaneseq
          %v2719 = vshrl.u32 %v2718, 7
          %v2720 = vsub.s32 2, %v2719
          %v2721 = vrot.slane %v2708, %v2720
          %v2722 = vlaneseq
          %v2723 = vshrl.u32 %v2722, 7
          %v2724 = vsub.s32 3, %v2723
          %v2725 = vrot.slane %v2708, %v2724
          %v2726 = vlaneseq
          %v2727 = vshrl.u32 %v2726, 7
          %v2728 = vsub.s32 4, %v2727
          %v2729 = vrot.slane %v2708, %v2728
          %v2730 = vlaneseq
          %v2731 = vshrl.u32 %v2730, 7
          %v2732 = vsub.s32 5, %v2731
          %v2733 = vrot.slane %v2708, %v2732
          %v2734 = vlaneseq
          %v2735 = vshrl.u32 %v2734, 7
          %v2736 = vsub.s32 6, %v2735
          %v2737 = vrot.slane %v2708, %v2736
          %v2738 = vlaneseq
          %v2739 = vshrl.u32 %v2738, 7
          %v2740 = vsub.s32 7, %v2739
          %v2741 = vrot.slane %v2708, %v2740
          %v2742 = vcombine.low %v2713, %v2717
          %v2743 = vcombine.low %v2721, %v2725
          %v2745 = vunpack.c.l.s4 1983009808
          %v2746 = vunpack.c.0.s8 %v2745
          %v2747 = vlaneseq
          %v2748 = vshrl.u32 %v2747, 7
          %v2749 = vsub.s32 %v2746, %v2748
          %v2750 = vrot.slane %v2742, %v2749
          %v2752 = vunpack.c.l.s4 1983009808
          %v2753 = vunpack.c.0.s8 %v2752
          %v2754 = vlaneseq
          %v2755 = vshrl.u32 %v2754, 7
          %v2756 = vsub.s32 %v2753, %v2755
          %v2757 = vrot.slane %v2743, %v2756
          %v2758 = vcombine.low %v2750, %v2757
          %v2759 = vcombine.low %v2729, %v2733
          %v2760 = vcombine.low %v2737, %v2741
          %v2762 = vunpack.c.l.s4 1983009808
          %v2763 = vunpack.c.0.s8 %v2762
          %v2764 = vlaneseq
          %v2765 = vshrl.u32 %v2764, 7
          %v2766 = vsub.s32 %v2763, %v2765
          %v2767 = vrot.slane %v2759, %v2766
          %v2769 = vunpack.c.l.s4 1983009808
          %v2770 = vunpack.c.0.s8 %v2769
          %v2771 = vlaneseq
          %v2772 = vshrl.u32 %v2771, 7
          %v2773 = vsub.s32 %v2770, %v2772
          %v2774 = vrot.slane %v2760, %v2773
          %v2775 = vcombine.low %v2767, %v2774
          %v2778 = vmul.f32 %v2706, %v2758
          %v2779 = vmul.f32 %v2707, %v2775
          %v2780 = vld [vmem:[#allocation8] sm:$0xff]
          %v2782 = vlaneseq
          %v2783 = vshrl.u32 %v2782, 7
          %v2784 = vsub.s32 0, %v2783
          %v2785 = vrot.slane %v2780, %v2784
          %v2786 = vlaneseq
          %v2787 = vshrl.u32 %v2786, 7
          %v2788 = vsub.s32 1, %v2787
          %v2789 = vrot.slane %v2780, %v2788
          %v2790 = vlaneseq
          %v2791 = vshrl.u32 %v2790, 7
          %v2792 = vsub.s32 2, %v2791
          %v2793 = vrot.slane %v2780, %v2792
          %v2794 = vlaneseq
          %v2795 = vshrl.u32 %v2794, 7
          %v2796 = vsub.s32 3, %v2795
          %v2797 = vrot.slane %v2780, %v2796
          %v2798 = vlaneseq
          %v2799 = vshrl.u32 %v2798, 7
          %v2800 = vsub.s32 4, %v2799
          %v2801 = vrot.slane %v2780, %v2800
          %v2802 = vlaneseq
          %v2803 = vshrl.u32 %v2802, 7
          %v2804 = vsub.s32 5, %v2803
          %v2805 = vrot.slane %v2780, %v2804
          %v2806 = vlaneseq
          %v2807 = vshrl.u32 %v2806, 7
          %v2808 = vsub.s32 6, %v2807
          %v2809 = vrot.slane %v2780, %v2808
          %v2810 = vlaneseq
          %v2811 = vshrl.u32 %v2810, 7
          %v2812 = vsub.s32 7, %v2811
          %v2813 = vrot.slane %v2780, %v2812
          %v2814 = vcombine.low %v2785, %v2789
          %v2815 = vcombine.low %v2793, %v2797
          %v2817 = vunpack.c.l.s4 1983009808
          %v2818 = vunpack.c.0.s8 %v2817
          %v2819 = vlaneseq
          %v2820 = vshrl.u32 %v2819, 7
          %v2821 = vsub.s32 %v2818, %v2820
          %v2822 = vrot.slane %v2814, %v2821
          %v2824 = vunpack.c.l.s4 1983009808
          %v2825 = vunpack.c.0.s8 %v2824
          %v2826 = vlaneseq
          %v2827 = vshrl.u32 %v2826, 7
          %v2828 = vsub.s32 %v2825, %v2827
          %v2829 = vrot.slane %v2815, %v2828
          %v2830 = vcombine.low %v2822, %v2829
          %v2831 = vcombine.low %v2801, %v2805
          %v2832 = vcombine.low %v2809, %v2813
          %v2834 = vunpack.c.l.s4 1983009808
          %v2835 = vunpack.c.0.s8 %v2834
          %v2836 = vlaneseq
          %v2837 = vshrl.u32 %v2836, 7
          %v2838 = vsub.s32 %v2835, %v2837
          %v2839 = vrot.slane %v2831, %v2838
          %v2841 = vunpack.c.l.s4 1983009808
          %v2842 = vunpack.c.0.s8 %v2841
          %v2843 = vlaneseq
          %v2844 = vshrl.u32 %v2843, 7
          %v2845 = vsub.s32 %v2842, %v2844
          %v2846 = vrot.slane %v2832, %v2845
          %v2847 = vcombine.low %v2839, %v2846
          %v2850 = vadd.f32 %v2778, %v2830
          %v2851 = vadd.f32 %v2779, %v2847
          %v2852 = vmax.f32 %v2850, 0.0
          %v2853 = vmax.f32 %v2851, 0.0
          %v2856 = vcombine.high %v2852, %v2852
          %v2858 = vunpack.c.l.s4 1983009808
          %v2859 = vunpack.c.0.s8 %v2858
          %v2860 = vlaneseq
          %v2861 = vshrl.u32 %v2860, 7
          %v2862 = vsub.s32 %v2859, %v2861
          %v2863 = vrot.slane %v2852, %v2862
          %v2865 = vunpack.c.l.s4 1983009808
          %v2866 = vunpack.c.0.s8 %v2865
          %v2867 = vlaneseq
          %v2868 = vshrl.u32 %v2867, 7
          %v2869 = vsub.s32 %v2866, %v2868
          %v2870 = vrot.slane %v2856, %v2869
          %v2871 = vcombine.high %v2863, %v2863
          %v2872 = vcombine.high %v2870, %v2870
          %v2873 = vcombine.high %v2853, %v2853
          %v2875 = vunpack.c.l.s4 1983009808
          %v2876 = vunpack.c.0.s8 %v2875
          %v2877 = vlaneseq
          %v2878 = vshrl.u32 %v2877, 7
          %v2879 = vsub.s32 %v2876, %v2878
          %v2880 = vrot.slane %v2853, %v2879
          %v2882 = vunpack.c.l.s4 1983009808
          %v2883 = vunpack.c.0.s8 %v2882
          %v2884 = vlaneseq
          %v2885 = vshrl.u32 %v2884, 7
          %v2886 = vsub.s32 %v2883, %v2885
          %v2887 = vrot.slane %v2873, %v2886
          %v2888 = vcombine.high %v2880, %v2880
          %v2889 = vcombine.high %v2887, %v2887
          %v2898 = vpack.c.bf16 %v2863, %v2863
          %v2899 = vpack.c.bf16 %v2871, %v2871
          %v2900 = vpack.c.bf16 %v2870, %v2870
          %v2901 = vpack.c.bf16 %v2872, %v2872
          %v2902 = vpack.c.bf16 %v2880, %v2880
          %v2903 = vpack.c.bf16 %v2888, %v2888
          %v2904 = vpack.c.bf16 %v2887, %v2887
          %v2905 = vpack.c.bf16 %v2889, %v2889
          %v2906 = vld [vmem:[#allocation9] sm:$0xff]
          %v2907 = vld [vmem:[#allocation9 + $0x8] sm:$0xf]
          %v2908 = vld [vmem:[#allocation9 + $0xc] sm:$0xff]
          %v2909 = vld [vmem:[#allocation9 + $0x14] sm:$0xf]
          %v2910 = vld [vmem:[#allocation9 + $0x18] sm:$0xff]
          %v2911 = vld [vmem:[#allocation9 + $0x20] sm:$0xf]
          %v2912 = vld [vmem:[#allocation9 + $0x24] sm:$0xff]
          %v2913 = vld [vmem:[#allocation9 + $0x2c] sm:$0xf]
          %v2914 = vld [vmem:[#allocation9 + $0x30] sm:$0xff]
          %v2915 = vld [vmem:[#allocation9 + $0x38] sm:$0xf]
          %v2916 = vld [vmem:[#allocation9 + $0x3c] sm:$0xff]
          %v2917 = vld [vmem:[#allocation9 + $0x44] sm:$0xf]
          %v2918 = vld [vmem:[#allocation9 + $0x48] sm:$0xff]
          %v2919 = vld [vmem:[#allocation9 + $0x50] sm:$0xf]
          %v2920 = vld [vmem:[#allocation9 + $0x54] sm:$0xff]
          %v2921 = vld [vmem:[#allocation9 + $0x5c] sm:$0xf]
          %v2922 = vld [vmem:[#allocation9 + $0x60] sm:$0xff]
          %v2923 = vld [vmem:[#allocation9 + $0x68] sm:$0xf]
          %v2924 = vld [vmem:[#allocation9 + $0x6c] sm:$0xff]
          %v2925 = vld [vmem:[#allocation9 + $0x74] sm:$0xf]
          %v2926 = vld [vmem:[#allocation9 + $0x78] sm:$0xff]
          %v2927 = vld [vmem:[#allocation9 + $0x80] sm:$0xf]
          %v2928 = vld [vmem:[#allocation9 + $0x84] sm:$0xff]
          %v2929 = vld [vmem:[#allocation9 + $0x8c] sm:$0xf]
          %v2930 = vld [vmem:[#allocation9 + $0x90] sm:$0xff]
          %v2931 = vld [vmem:[#allocation9 + $0x98] sm:$0xf]
          %v2932 = vld [vmem:[#allocation9 + $0x9c] sm:$0xff]
          %v2933 = vld [vmem:[#allocation9 + $0xa4] sm:$0xf]
          %v2934 = vld [vmem:[#allocation9 + $0xa8] sm:$0xff]
          %v2935 = vld [vmem:[#allocation9 + $0xb0] sm:$0xf]
          %v2936 = vld [vmem:[#allocation9 + $0xb4] sm:$0xff]
          %v2937 = vld [vmem:[#allocation9 + $0xbc] sm:$0xf]
          %v2938 = vld [vmem:[#allocation9 + $0xc0] sm:$0xff]
          %v2939 = vld [vmem:[#allocation9 + $0xc8] sm:$0xf]
          %v2940 = vld [vmem:[#allocation9 + $0xcc] sm:$0xff]
          %v2941 = vld [vmem:[#allocation9 + $0xd4] sm:$0xf]
          %v2942 = vld [vmem:[#allocation9 + $0xd8] sm:$0xff]
          %v2943 = vld [vmem:[#allocation9 + $0xe0] sm:$0xf]
          %v2944 = vld [vmem:[#allocation9 + $0xe4] sm:$0xff]
          %v2945 = vld [vmem:[#allocation9 + $0xec] sm:$0xf]
          %v2946 = vld [vmem:[#allocation9 + $0xf0] sm:$0xff]
          %v2947 = vld [vmem:[#allocation9 + $0xf8] sm:$0xf]
          %v2948 = vld [vmem:[#allocation9 + $0xfc] sm:$0xff]
          %v2949 = vld [vmem:[#allocation9 + $0x104] sm:$0xf]
          %v2950 = vld [vmem:[#allocation9 + $0x108] sm:$0xff]
          %v2951 = vld [vmem:[#allocation9 + $0x110] sm:$0xf]
          %v2952 = vld [vmem:[#allocation9 + $0x114] sm:$0xff]
          %v2953 = vld [vmem:[#allocation9 + $0x11c] sm:$0xf]
          %v2954 = vld [vmem:[#allocation9 + $0x120] sm:$0xff]
          %v2955 = vld [vmem:[#allocation9 + $0x128] sm:$0xf]
          %v2956 = vld [vmem:[#allocation9 + $0x12c] sm:$0xff]
          %v2957 = vld [vmem:[#allocation9 + $0x134] sm:$0xf]
          %v2958 = vld [vmem:[#allocation9 + $0x138] sm:$0xff]
          %v2959 = vld [vmem:[#allocation9 + $0x140] sm:$0xf]
          %v2960 = vld [vmem:[#allocation9 + $0x144] sm:$0xff]
          %v2961 = vld [vmem:[#allocation9 + $0x14c] sm:$0xf]
          %v2962 = vld [vmem:[#allocation9 + $0x150] sm:$0xff]
          %v2963 = vld [vmem:[#allocation9 + $0x158] sm:$0xf]
          %v2964 = vld [vmem:[#allocation9 + $0x15c] sm:$0xff]
          %v2965 = vld [vmem:[#allocation9 + $0x164] sm:$0xf]
          %v2966 = vld [vmem:[#allocation9 + $0x168] sm:$0xff]
          %v2967 = vld [vmem:[#allocation9 + $0x170] sm:$0xf]
          %v2968 = vld [vmem:[#allocation9 + $0x174] sm:$0xff]
          %v2969 = vld [vmem:[#allocation9 + $0x17c] sm:$0xf]
          %v2970 = vld [vmem:[#allocation9 + $0x180] sm:$0xff]
          %v2971 = vld [vmem:[#allocation9 + $0x188] sm:$0xf]
          %v2972 = vld [vmem:[#allocation9 + $0x18c] sm:$0xff]
          %v2973 = vld [vmem:[#allocation9 + $0x194] sm:$0xf]
          %v2974 = vld [vmem:[#allocation9 + $0x198] sm:$0xff]
          %v2975 = vld [vmem:[#allocation9 + $0x1a0] sm:$0xf]
          %v2976 = vld [vmem:[#allocation9 + $0x1a4] sm:$0xff]
          %v2977 = vld [vmem:[#allocation9 + $0x1ac] sm:$0xf]
          %v2978 = vld [vmem:[#allocation9 + $0x1b0] sm:$0xff]
          %v2979 = vld [vmem:[#allocation9 + $0x1b8] sm:$0xf]
          %v2980 = vld [vmem:[#allocation9 + $0x1bc] sm:$0xff]
          %v2981 = vld [vmem:[#allocation9 + $0x1c4] sm:$0xf]
          %v2982 = vld [vmem:[#allocation9 + $0x1c8] sm:$0xff]
          %v2983 = vld [vmem:[#allocation9 + $0x1d0] sm:$0xf]
          %v2984 = vld [vmem:[#allocation9 + $0x1d4] sm:$0xff]
          %v2985 = vld [vmem:[#allocation9 + $0x1dc] sm:$0xf]
          %v2986 = vld [vmem:[#allocation9 + $0x1e0] sm:$0xff]
          %v2987 = vld [vmem:[#allocation9 + $0x1e8] sm:$0xf]
          %v2988 = vld [vmem:[#allocation9 + $0x1ec] sm:$0xff]
          %v2989 = vld [vmem:[#allocation9 + $0x1f4] sm:$0xf]
          %v2990 = vld [vmem:[#allocation9 + $0x1f8] sm:$0xff]
          %v2991 = vld [vmem:[#allocation9 + $0x200] sm:$0xf]
          %v2992 = vld [vmem:[#allocation9 + $0x204] sm:$0xff]
          %v2993 = vld [vmem:[#allocation9 + $0x20c] sm:$0xf]
          %v2994 = vld [vmem:[#allocation9 + $0x210] sm:$0xff]
          %v2995 = vld [vmem:[#allocation9 + $0x218] sm:$0xf]
          %v2996 = vld [vmem:[#allocation9 + $0x21c] sm:$0xff]
          %v2997 = vld [vmem:[#allocation9 + $0x224] sm:$0xf]
          %v2998 = vld [vmem:[#allocation9 + $0x228] sm:$0xff]
          %v2999 = vld [vmem:[#allocation9 + $0x230] sm:$0xf]
          %v3000 = vld [vmem:[#allocation9 + $0x234] sm:$0xff]
          %v3001 = vld [vmem:[#allocation9 + $0x23c] sm:$0xf]
          %v3002 = vld [vmem:[#allocation9 + $0x240] sm:$0xff]
          %v3003 = vld [vmem:[#allocation9 + $0x248] sm:$0xf]
          %v3004 = vld [vmem:[#allocation9 + $0x24c] sm:$0xff]
          %v3005 = vld [vmem:[#allocation9 + $0x254] sm:$0xf]
          %v3006 = vld [vmem:[#allocation9 + $0x258] sm:$0xff]
          %v3007 = vld [vmem:[#allocation9 + $0x260] sm:$0xf]
          %v3008 = vld [vmem:[#allocation9 + $0x264] sm:$0xff]
          %v3009 = vld [vmem:[#allocation9 + $0x26c] sm:$0xf]
          %v3010 = vld [vmem:[#allocation9 + $0x270] sm:$0xff]
          %v3011 = vld [vmem:[#allocation9 + $0x278] sm:$0xf]
          %v3012 = vld [vmem:[#allocation9 + $0x27c] sm:$0xff]
          %v3013 = vld [vmem:[#allocation9 + $0x284] sm:$0xf]
          %v3014 = vld [vmem:[#allocation9 + $0x288] sm:$0xff]
          %v3015 = vld [vmem:[#allocation9 + $0x290] sm:$0xf]
          %v3016 = vld [vmem:[#allocation9 + $0x294] sm:$0xff]
          %v3017 = vld [vmem:[#allocation9 + $0x29c] sm:$0xf]
          %v3018 = vld [vmem:[#allocation9 + $0x2a0] sm:$0xff]
          %v3019 = vld [vmem:[#allocation9 + $0x2a8] sm:$0xf]
          %v3020 = vld [vmem:[#allocation9 + $0x2ac] sm:$0xff]
          %v3021 = vld [vmem:[#allocation9 + $0x2b4] sm:$0xf]
          %v3022 = vld [vmem:[#allocation9 + $0x2b8] sm:$0xff]
          %v3023 = vld [vmem:[#allocation9 + $0x2c0] sm:$0xf]
          %v3024 = vld [vmem:[#allocation9 + $0x2c4] sm:$0xff]
          %v3025 = vld [vmem:[#allocation9 + $0x2cc] sm:$0xf]
          %v3026 = vld [vmem:[#allocation9 + $0x2d0] sm:$0xff]
          %v3027 = vld [vmem:[#allocation9 + $0x2d8] sm:$0xf]
          %v3028 = vld [vmem:[#allocation9 + $0x2dc] sm:$0xff]
          %v3029 = vld [vmem:[#allocation9 + $0x2e4] sm:$0xf]
          %v3030 = vld [vmem:[#allocation9 + $0x2e8] sm:$0xff]
          %v3031 = vld [vmem:[#allocation9 + $0x2f0] sm:$0xf]
          %v3032 = vld [vmem:[#allocation9 + $0x2f4] sm:$0xff]
          %v3033 = vld [vmem:[#allocation9 + $0x2fc] sm:$0xf]
          %v3034 = vld [vmem:[#allocation9 + $0x300] sm:$0xff]
          %v3035 = vld [vmem:[#allocation9 + $0x308] sm:$0xf]
          %v3036 = vld [vmem:[#allocation9 + $0x30c] sm:$0xff]
          %v3037 = vld [vmem:[#allocation9 + $0x314] sm:$0xf]
          %v3038 = vld [vmem:[#allocation9 + $0x318] sm:$0xff]
          %v3039 = vld [vmem:[#allocation9 + $0x320] sm:$0xf]
          %v3040 = vld [vmem:[#allocation9 + $0x324] sm:$0xff]
          %v3041 = vld [vmem:[#allocation9 + $0x32c] sm:$0xf]
          %v3042 = vld [vmem:[#allocation9 + $0x330] sm:$0xff]
          %v3043 = vld [vmem:[#allocation9 + $0x338] sm:$0xf]
          %v3044 = vld [vmem:[#allocation9 + $0x33c] sm:$0xff]
          %v3045 = vld [vmem:[#allocation9 + $0x344] sm:$0xf]
          %v3046 = vld [vmem:[#allocation9 + $0x348] sm:$0xff]
          %v3047 = vld [vmem:[#allocation9 + $0x350] sm:$0xf]
          %v3048 = vld [vmem:[#allocation9 + $0x354] sm:$0xff]
          %v3049 = vld [vmem:[#allocation9 + $0x35c] sm:$0xf]
          %v3050 = vld [vmem:[#allocation9 + $0x360] sm:$0xff]
          %v3051 = vld [vmem:[#allocation9 + $0x368] sm:$0xf]
          %v3052 = vld [vmem:[#allocation9 + $0x36c] sm:$0xff]
          %v3053 = vld [vmem:[#allocation9 + $0x374] sm:$0xf]
          %v3054 = vld [vmem:[#allocation9 + $0x378] sm:$0xff]
          %v3055 = vld [vmem:[#allocation9 + $0x380] sm:$0xf]
          %v3056 = vld [vmem:[#allocation9 + $0x384] sm:$0xff]
          %v3057 = vld [vmem:[#allocation9 + $0x38c] sm:$0xf]
          %v3058 = vld [vmem:[#allocation9 + $0x390] sm:$0xff]
          %v3059 = vld [vmem:[#allocation9 + $0x398] sm:$0xf]
          %v3060 = vld [vmem:[#allocation9 + $0x39c] sm:$0xff]
          %v3061 = vld [vmem:[#allocation9 + $0x3a4] sm:$0xf]
          %v3062 = vld [vmem:[#allocation9 + $0x3a8] sm:$0xff]
          %v3063 = vld [vmem:[#allocation9 + $0x3b0] sm:$0xf]
          %v3064 = vld [vmem:[#allocation9 + $0x3b4] sm:$0xff]
          %v3065 = vld [vmem:[#allocation9 + $0x3bc] sm:$0xf]
          %v3066 = vld [vmem:[#allocation9 + $0x3c0] sm:$0xff]
          %v3067 = vld [vmem:[#allocation9 + $0x3c8] sm:$0xf]
          %v3068 = vld [vmem:[#allocation9 + $0x3cc] sm:$0xff]
          %v3069 = vld [vmem:[#allocation9 + $0x3d4] sm:$0xf]
          %v3070 = vld [vmem:[#allocation9 + $0x3d8] sm:$0xff]
          %v3071 = vld [vmem:[#allocation9 + $0x3e0] sm:$0xf]
          %v3072 = vld [vmem:[#allocation9 + $0x3e4] sm:$0xff]
          %v3073 = vld [vmem:[#allocation9 + $0x3ec] sm:$0xf]
          %v3074 = vld [vmem:[#allocation9 + $0x3f0] sm:$0xff]
          %v3075 = vld [vmem:[#allocation9 + $0x3f8] sm:$0xf]
          %v3076 = vld [vmem:[#allocation9 + $0x3fc] sm:$0xff]
          %v3077 = vld [vmem:[#allocation9 + $0x404] sm:$0xf]
          %v3078 = vld [vmem:[#allocation9 + $0x408] sm:$0xff]
          %v3079 = vld [vmem:[#allocation9 + $0x410] sm:$0xf]
          %v3080 = vld [vmem:[#allocation9 + $0x414] sm:$0xff]
          %v3081 = vld [vmem:[#allocation9 + $0x41c] sm:$0xf]
          %v3082 = vld [vmem:[#allocation9 + $0x420] sm:$0xff]
          %v3083 = vld [vmem:[#allocation9 + $0x428] sm:$0xf]
          %v3084 = vld [vmem:[#allocation9 + $0x42c] sm:$0xff]
          %v3085 = vld [vmem:[#allocation9 + $0x434] sm:$0xf]
          %v3086 = vld [vmem:[#allocation9 + $0x438] sm:$0xff]
          %v3087 = vld [vmem:[#allocation9 + $0x440] sm:$0xf]
          %v3088 = vld [vmem:[#allocation9 + $0x444] sm:$0xff]
          %v3089 = vld [vmem:[#allocation9 + $0x44c] sm:$0xf]
          %v3090 = vld [vmem:[#allocation9 + $0x450] sm:$0xff]
          %v3091 = vld [vmem:[#allocation9 + $0x458] sm:$0xf]
          %v3092 = vld [vmem:[#allocation9 + $0x45c] sm:$0xff]
          %v3093 = vld [vmem:[#allocation9 + $0x464] sm:$0xf]
          %v3094 = vld [vmem:[#allocation9 + $0x468] sm:$0xff]
          %v3095 = vld [vmem:[#allocation9 + $0x470] sm:$0xf]
          %v3096 = vld [vmem:[#allocation9 + $0x474] sm:$0xff]
          %v3097 = vld [vmem:[#allocation9 + $0x47c] sm:$0xf]
          %v3098 = vld [vmem:[#allocation9 + $0x480] sm:$0xff]
          %v3099 = vld [vmem:[#allocation9 + $0x488] sm:$0xf]
          %v3100 = vld [vmem:[#allocation9 + $0x48c] sm:$0xff]
          %v3101 = vld [vmem:[#allocation9 + $0x494] sm:$0xf]
          %v3102 = vld [vmem:[#allocation9 + $0x498] sm:$0xff]
          %v3103 = vld [vmem:[#allocation9 + $0x4a0] sm:$0xf]
          %v3104 = vld [vmem:[#allocation9 + $0x4a4] sm:$0xff]
          %v3105 = vld [vmem:[#allocation9 + $0x4ac] sm:$0xf]
          %v3106 = vld [vmem:[#allocation9 + $0x4b0] sm:$0xff]
          %v3107 = vld [vmem:[#allocation9 + $0x4b8] sm:$0xf]
          %v3108 = vld [vmem:[#allocation9 + $0x4bc] sm:$0xff]
          %v3109 = vld [vmem:[#allocation9 + $0x4c4] sm:$0xf]
          %v3110 = vld [vmem:[#allocation9 + $0x4c8] sm:$0xff]
          %v3111 = vld [vmem:[#allocation9 + $0x4d0] sm:$0xf]
          %v3112 = vld [vmem:[#allocation9 + $0x4d4] sm:$0xff]
          %v3113 = vld [vmem:[#allocation9 + $0x4dc] sm:$0xf]
          %v3114 = vld [vmem:[#allocation9 + $0x4e0] sm:$0xff]
          %v3115 = vld [vmem:[#allocation9 + $0x4e8] sm:$0xf]
          %v3116 = vld [vmem:[#allocation9 + $0x4ec] sm:$0xff]
          %v3117 = vld [vmem:[#allocation9 + $0x4f4] sm:$0xf]
          %v3118 = vld [vmem:[#allocation9 + $0x4f8] sm:$0xff]
          %v3119 = vld [vmem:[#allocation9 + $0x500] sm:$0xf]
          %v3120 = vld [vmem:[#allocation9 + $0x504] sm:$0xff]
          %v3121 = vld [vmem:[#allocation9 + $0x50c] sm:$0xf]
          %v3122 = vld [vmem:[#allocation9 + $0x510] sm:$0xff]
          %v3123 = vld [vmem:[#allocation9 + $0x518] sm:$0xf]
          %v3124 = vld [vmem:[#allocation9 + $0x51c] sm:$0xff]
          %v3125 = vld [vmem:[#allocation9 + $0x524] sm:$0xf]
          %v3126 = vld [vmem:[#allocation9 + $0x528] sm:$0xff]
          %v3127 = vld [vmem:[#allocation9 + $0x530] sm:$0xf]
          %v3128 = vld [vmem:[#allocation9 + $0x534] sm:$0xff]
          %v3129 = vld [vmem:[#allocation9 + $0x53c] sm:$0xf]
          %v3130 = vld [vmem:[#allocation9 + $0x540] sm:$0xff]
          %v3131 = vld [vmem:[#allocation9 + $0x548] sm:$0xf]
          %v3132 = vld [vmem:[#allocation9 + $0x54c] sm:$0xff]
          %v3133 = vld [vmem:[#allocation9 + $0x554] sm:$0xf]
          %v3134 = vld [vmem:[#allocation9 + $0x558] sm:$0xff]
          %v3135 = vld [vmem:[#allocation9 + $0x560] sm:$0xf]
          %v3136 = vld [vmem:[#allocation9 + $0x564] sm:$0xff]
          %v3137 = vld [vmem:[#allocation9 + $0x56c] sm:$0xf]
          %v3138 = vld [vmem:[#allocation9 + $0x570] sm:$0xff]
          %v3139 = vld [vmem:[#allocation9 + $0x578] sm:$0xf]
          %v3140 = vld [vmem:[#allocation9 + $0x57c] sm:$0xff]
          %v3141 = vld [vmem:[#allocation9 + $0x584] sm:$0xf]
          %v3142 = vld [vmem:[#allocation9 + $0x588] sm:$0xff]
          %v3143 = vld [vmem:[#allocation9 + $0x590] sm:$0xf]
          %v3144 = vld [vmem:[#allocation9 + $0x594] sm:$0xff]
          %v3145 = vld [vmem:[#allocation9 + $0x59c] sm:$0xf]
          %v3146 = vld [vmem:[#allocation9 + $0x5a0] sm:$0xff]
          %v3147 = vld [vmem:[#allocation9 + $0x5a8] sm:$0xf]
          %v3148 = vld [vmem:[#allocation9 + $0x5ac] sm:$0xff]
          %v3149 = vld [vmem:[#allocation9 + $0x5b4] sm:$0xf]
          %v3150 = vld [vmem:[#allocation9 + $0x5b8] sm:$0xff]
          %v3151 = vld [vmem:[#allocation9 + $0x5c0] sm:$0xf]
          %v3152 = vld [vmem:[#allocation9 + $0x5c4] sm:$0xff]
          %v3153 = vld [vmem:[#allocation9 + $0x5cc] sm:$0xf]
          %v3154 = vld [vmem:[#allocation9 + $0x5d0] sm:$0xff]
          %v3155 = vld [vmem:[#allocation9 + $0x5d8] sm:$0xf]
          %v3156 = vld [vmem:[#allocation9 + $0x5dc] sm:$0xff]
          %v3157 = vld [vmem:[#allocation9 + $0x5e4] sm:$0xf]
          %v3158 = vld [vmem:[#allocation9 + $0x5e8] sm:$0xff]
          %v3159 = vld [vmem:[#allocation9 + $0x5f0] sm:$0xf]
          %v3160 = vld [vmem:[#allocation9 + $0x5f4] sm:$0xff]
          %v3161 = vld [vmem:[#allocation9 + $0x5fc] sm:$0xf]
          %v3162 = vld [vmem:[%s5] sm:$0x7]
          %v3164 = vlaneseq
          %v3165 = vshrl.u32 %v3164, 7
          %v3166 = vsub.s32 0, %v3165
          %v3167 = vrot.slane %v3162, %v3166
          %v3168 = vlaneseq
          %v3169 = vshrl.u32 %v3168, 7
          %v3170 = vsub.s32 1, %v3169
          %v3171 = vrot.slane %v3162, %v3170
          %v3172 = vlaneseq
          %v3173 = vshrl.u32 %v3172, 7
          %v3174 = vsub.s32 2, %v3173
          %v3175 = vrot.slane %v3162, %v3174
          %v3435 = vunpack.c.l.b16 %v2906
          %v3436 = vunpack.c.h.b16 %v2906
          %v3437 = vunpack.c.l.b16 %v2907
          %v3438 = vunpack.c.l.b16 %v2908
          %v3439 = vunpack.c.h.b16 %v2908
          %v3440 = vunpack.c.l.b16 %v2909
          %v3441 = vunpack.c.l.b16 %v2910
          %v3442 = vunpack.c.h.b16 %v2910
          %v3443 = vunpack.c.l.b16 %v2911
          %v3444 = vunpack.c.l.b16 %v2912
          %v3445 = vunpack.c.h.b16 %v2912
          %v3446 = vunpack.c.l.b16 %v2913
          %v3447 = vunpack.c.l.b16 %v2914
          %v3448 = vunpack.c.h.b16 %v2914
          %v3449 = vunpack.c.l.b16 %v2915
          %v3450 = vunpack.c.l.b16 %v2916
          %v3451 = vunpack.c.h.b16 %v2916
          %v3452 = vunpack.c.l.b16 %v2917
          %v3453 = vunpack.c.l.b16 %v2918
          %v3454 = vunpack.c.h.b16 %v2918
          %v3455 = vunpack.c.l.b16 %v2919
          %v3456 = vunpack.c.l.b16 %v2920
          %v3457 = vunpack.c.h.b16 %v2920
          %v3458 = vunpack.c.l.b16 %v2921
          %v3459 = vunpack.c.l.b16 %v2922
          %v3460 = vunpack.c.h.b16 %v2922
          %v3461 = vunpack.c.l.b16 %v2923
          %v3462 = vunpack.c.l.b16 %v2924
          %v3463 = vunpack.c.h.b16 %v2924
          %v3464 = vunpack.c.l.b16 %v2925
          %v3465 = vunpack.c.l.b16 %v2926
          %v3466 = vunpack.c.h.b16 %v2926
          %v3467 = vunpack.c.l.b16 %v2927
          %v3468 = vunpack.c.l.b16 %v2928
          %v3469 = vunpack.c.h.b16 %v2928
          %v3470 = vunpack.c.l.b16 %v2929
          %v3471 = vunpack.c.l.b16 %v2930
          %v3472 = vunpack.c.h.b16 %v2930
          %v3473 = vunpack.c.l.b16 %v2931
          %v3474 = vunpack.c.l.b16 %v2932
          %v3475 = vunpack.c.h.b16 %v2932
          %v3476 = vunpack.c.l.b16 %v2933
          %v3477 = vunpack.c.l.b16 %v2934
          %v3478 = vunpack.c.h.b16 %v2934
          %v3479 = vunpack.c.l.b16 %v2935
          %v3480 = vunpack.c.l.b16 %v2936
          %v3481 = vunpack.c.h.b16 %v2936
          %v3482 = vunpack.c.l.b16 %v2937
          %v3483 = vunpack.c.l.b16 %v2938
          %v3484 = vunpack.c.h.b16 %v2938
          %v3485 = vunpack.c.l.b16 %v2939
          %v3486 = vunpack.c.l.b16 %v2940
          %v3487 = vunpack.c.h.b16 %v2940
          %v3488 = vunpack.c.l.b16 %v2941
          %v3489 = vunpack.c.l.b16 %v2942
          %v3490 = vunpack.c.h.b16 %v2942
          %v3491 = vunpack.c.l.b16 %v2943
          %v3492 = vunpack.c.l.b16 %v2944
          %v3493 = vunpack.c.h.b16 %v2944
          %v3494 = vunpack.c.l.b16 %v2945
          %v3495 = vunpack.c.l.b16 %v2946
          %v3496 = vunpack.c.h.b16 %v2946
          %v3497 = vunpack.c.l.b16 %v2947
          %v3498 = vunpack.c.l.b16 %v2948
          %v3499 = vunpack.c.h.b16 %v2948
          %v3500 = vunpack.c.l.b16 %v2949
          %v3501 = vunpack.c.l.b16 %v2950
          %v3502 = vunpack.c.h.b16 %v2950
          %v3503 = vunpack.c.l.b16 %v2951
          %v3504 = vunpack.c.l.b16 %v2952
          %v3505 = vunpack.c.h.b16 %v2952
          %v3506 = vunpack.c.l.b16 %v2953
          %v3507 = vunpack.c.l.b16 %v2954
          %v3508 = vunpack.c.h.b16 %v2954
          %v3509 = vunpack.c.l.b16 %v2955
          %v3510 = vunpack.c.l.b16 %v2956
          %v3511 = vunpack.c.h.b16 %v2956
          %v3512 = vunpack.c.l.b16 %v2957
          %v3513 = vunpack.c.l.b16 %v2958
          %v3514 = vunpack.c.h.b16 %v2958
          %v3515 = vunpack.c.l.b16 %v2959
          %v3516 = vunpack.c.l.b16 %v2960
          %v3517 = vunpack.c.h.b16 %v2960
          %v3518 = vunpack.c.l.b16 %v2961
          %v3519 = vunpack.c.l.b16 %v2962
          %v3520 = vunpack.c.h.b16 %v2962
          %v3521 = vunpack.c.l.b16 %v2963
          %v3522 = vunpack.c.l.b16 %v2964
          %v3523 = vunpack.c.h.b16 %v2964
          %v3524 = vunpack.c.l.b16 %v2965
          %v3525 = vunpack.c.l.b16 %v2966
          %v3526 = vunpack.c.h.b16 %v2966
          %v3527 = vunpack.c.l.b16 %v2967
          %v3528 = vunpack.c.l.b16 %v2968
          %v3529 = vunpack.c.h.b16 %v2968
          %v3530 = vunpack.c.l.b16 %v2969
          %v3531 = vunpack.c.l.b16 %v2970
          %v3532 = vunpack.c.h.b16 %v2970
          %v3533 = vunpack.c.l.b16 %v2971
          %v3534 = vunpack.c.l.b16 %v2972
          %v3535 = vunpack.c.h.b16 %v2972
          %v3536 = vunpack.c.l.b16 %v2973
          %v3537 = vunpack.c.l.b16 %v2974
          %v3538 = vunpack.c.h.b16 %v2974
          %v3539 = vunpack.c.l.b16 %v2975
          %v3540 = vunpack.c.l.b16 %v2976
          %v3541 = vunpack.c.h.b16 %v2976
          %v3542 = vunpack.c.l.b16 %v2977
          %v3543 = vunpack.c.l.b16 %v2978
          %v3544 = vunpack.c.h.b16 %v2978
          %v3545 = vunpack.c.l.b16 %v2979
          %v3546 = vunpack.c.l.b16 %v2980
          %v3547 = vunpack.c.h.b16 %v2980
          %v3548 = vunpack.c.l.b16 %v2981
          %v3549 = vunpack.c.l.b16 %v2982
          %v3550 = vunpack.c.h.b16 %v2982
          %v3551 = vunpack.c.l.b16 %v2983
          %v3552 = vunpack.c.l.b16 %v2984
          %v3553 = vunpack.c.h.b16 %v2984
          %v3554 = vunpack.c.l.b16 %v2985
          %v3555 = vunpack.c.l.b16 %v2986
          %v3556 = vunpack.c.h.b16 %v2986
          %v3557 = vunpack.c.l.b16 %v2987
          %v3558 = vunpack.c.l.b16 %v2988
          %v3559 = vunpack.c.h.b16 %v2988
          %v3560 = vunpack.c.l.b16 %v2989
          %v3561 = vunpack.c.l.b16 %v2990
          %v3562 = vunpack.c.h.b16 %v2990
          %v3563 = vunpack.c.l.b16 %v2991
          %v3564 = vunpack.c.l.b16 %v2992
          %v3565 = vunpack.c.h.b16 %v2992
          %v3566 = vunpack.c.l.b16 %v2993
          %v3567 = vunpack.c.l.b16 %v2994
          %v3568 = vunpack.c.h.b16 %v2994
          %v3569 = vunpack.c.l.b16 %v2995
          %v3570 = vunpack.c.l.b16 %v2996
          %v3571 = vunpack.c.h.b16 %v2996
          %v3572 = vunpack.c.l.b16 %v2997
          %v3573 = vunpack.c.l.b16 %v2998
          %v3574 = vunpack.c.h.b16 %v2998
          %v3575 = vunpack.c.l.b16 %v2999
          %v3576 = vunpack.c.l.b16 %v3000
          %v3577 = vunpack.c.h.b16 %v3000
          %v3578 = vunpack.c.l.b16 %v3001
          %v3579 = vunpack.c.l.b16 %v3002
          %v3580 = vunpack.c.h.b16 %v3002
          %v3581 = vunpack.c.l.b16 %v3003
          %v3582 = vunpack.c.l.b16 %v3004
          %v3583 = vunpack.c.h.b16 %v3004
          %v3584 = vunpack.c.l.b16 %v3005
          %v3585 = vunpack.c.l.b16 %v3006
          %v3586 = vunpack.c.h.b16 %v3006
          %v3587 = vunpack.c.l.b16 %v3007
          %v3588 = vunpack.c.l.b16 %v3008
          %v3589 = vunpack.c.h.b16 %v3008
          %v3590 = vunpack.c.l.b16 %v3009
          %v3591 = vunpack.c.l.b16 %v3010
          %v3592 = vunpack.c.h.b16 %v3010
          %v3593 = vunpack.c.l.b16 %v3011
          %v3594 = vunpack.c.l.b16 %v3012
          %v3595 = vunpack.c.h.b16 %v3012
          %v3596 = vunpack.c.l.b16 %v3013
          %v3597 = vunpack.c.l.b16 %v3014
          %v3598 = vunpack.c.h.b16 %v3014
          %v3599 = vunpack.c.l.b16 %v3015
          %v3600 = vunpack.c.l.b16 %v3016
          %v3601 = vunpack.c.h.b16 %v3016
          %v3602 = vunpack.c.l.b16 %v3017
          %v3603 = vunpack.c.l.b16 %v3018
          %v3604 = vunpack.c.h.b16 %v3018
          %v3605 = vunpack.c.l.b16 %v3019
          %v3606 = vunpack.c.l.b16 %v3020
          %v3607 = vunpack.c.h.b16 %v3020
          %v3608 = vunpack.c.l.b16 %v3021
          %v3609 = vunpack.c.l.b16 %v3022
          %v3610 = vunpack.c.h.b16 %v3022
          %v3611 = vunpack.c.l.b16 %v3023
          %v3612 = vunpack.c.l.b16 %v3024
          %v3613 = vunpack.c.h.b16 %v3024
          %v3614 = vunpack.c.l.b16 %v3025
          %v3615 = vunpack.c.l.b16 %v3026
          %v3616 = vunpack.c.h.b16 %v3026
          %v3617 = vunpack.c.l.b16 %v3027
          %v3618 = vunpack.c.l.b16 %v3028
          %v3619 = vunpack.c.h.b16 %v3028
          %v3620 = vunpack.c.l.b16 %v3029
          %v3621 = vunpack.c.l.b16 %v3030
          %v3622 = vunpack.c.h.b16 %v3030
          %v3623 = vunpack.c.l.b16 %v3031
          %v3624 = vunpack.c.l.b16 %v3032
          %v3625 = vunpack.c.h.b16 %v3032
          %v3626 = vunpack.c.l.b16 %v3033
          %v3627 = vunpack.c.l.b16 %v3034
          %v3628 = vunpack.c.h.b16 %v3034
          %v3629 = vunpack.c.l.b16 %v3035
          %v3630 = vunpack.c.l.b16 %v3036
          %v3631 = vunpack.c.h.b16 %v3036
          %v3632 = vunpack.c.l.b16 %v3037
          %v3633 = vunpack.c.l.b16 %v3038
          %v3634 = vunpack.c.h.b16 %v3038
          %v3635 = vunpack.c.l.b16 %v3039
          %v3636 = vunpack.c.l.b16 %v3040
          %v3637 = vunpack.c.h.b16 %v3040
          %v3638 = vunpack.c.l.b16 %v3041
          %v3639 = vunpack.c.l.b16 %v3042
          %v3640 = vunpack.c.h.b16 %v3042
          %v3641 = vunpack.c.l.b16 %v3043
          %v3642 = vunpack.c.l.b16 %v3044
          %v3643 = vunpack.c.h.b16 %v3044
          %v3644 = vunpack.c.l.b16 %v3045
          %v3645 = vunpack.c.l.b16 %v3046
          %v3646 = vunpack.c.h.b16 %v3046
          %v3647 = vunpack.c.l.b16 %v3047
          %v3648 = vunpack.c.l.b16 %v3048
          %v3649 = vunpack.c.h.b16 %v3048
          %v3650 = vunpack.c.l.b16 %v3049
          %v3651 = vunpack.c.l.b16 %v3050
          %v3652 = vunpack.c.h.b16 %v3050
          %v3653 = vunpack.c.l.b16 %v3051
          %v3654 = vunpack.c.l.b16 %v3052
          %v3655 = vunpack.c.h.b16 %v3052
          %v3656 = vunpack.c.l.b16 %v3053
          %v3657 = vunpack.c.l.b16 %v3054
          %v3658 = vunpack.c.h.b16 %v3054
          %v3659 = vunpack.c.l.b16 %v3055
          %v3660 = vunpack.c.l.b16 %v3056
          %v3661 = vunpack.c.h.b16 %v3056
          %v3662 = vunpack.c.l.b16 %v3057
          %v3663 = vunpack.c.l.b16 %v3058
          %v3664 = vunpack.c.h.b16 %v3058
          %v3665 = vunpack.c.l.b16 %v3059
          %v3666 = vunpack.c.l.b16 %v3060
          %v3667 = vunpack.c.h.b16 %v3060
          %v3668 = vunpack.c.l.b16 %v3061
          %v3669 = vunpack.c.l.b16 %v3062
          %v3670 = vunpack.c.h.b16 %v3062
          %v3671 = vunpack.c.l.b16 %v3063
          %v3672 = vunpack.c.l.b16 %v3064
          %v3673 = vunpack.c.h.b16 %v3064
          %v3674 = vunpack.c.l.b16 %v3065
          %v3675 = vunpack.c.l.b16 %v3066
          %v3676 = vunpack.c.h.b16 %v3066
          %v3677 = vunpack.c.l.b16 %v3067
          %v3678 = vunpack.c.l.b16 %v3068
          %v3679 = vunpack.c.h.b16 %v3068
          %v3680 = vunpack.c.l.b16 %v3069
          %v3681 = vunpack.c.l.b16 %v3070
          %v3682 = vunpack.c.h.b16 %v3070
          %v3683 = vunpack.c.l.b16 %v3071
          %v3684 = vunpack.c.l.b16 %v3072
          %v3685 = vunpack.c.h.b16 %v3072
          %v3686 = vunpack.c.l.b16 %v3073
          %v3687 = vunpack.c.l.b16 %v3074
          %v3688 = vunpack.c.h.b16 %v3074
          %v3689 = vunpack.c.l.b16 %v3075
          %v3690 = vunpack.c.l.b16 %v3076
          %v3691 = vunpack.c.h.b16 %v3076
          %v3692 = vunpack.c.l.b16 %v3077
          %v3693 = vunpack.c.l.b16 %v3078
          %v3694 = vunpack.c.h.b16 %v3078
          %v3695 = vunpack.c.l.b16 %v3079
          %v3696 = vunpack.c.l.b16 %v3080
          %v3697 = vunpack.c.h.b16 %v3080
          %v3698 = vunpack.c.l.b16 %v3081
          %v3699 = vunpack.c.l.b16 %v3082
          %v3700 = vunpack.c.h.b16 %v3082
          %v3701 = vunpack.c.l.b16 %v3083
          %v3702 = vunpack.c.l.b16 %v3084
          %v3703 = vunpack.c.h.b16 %v3084
          %v3704 = vunpack.c.l.b16 %v3085
          %v3705 = vunpack.c.l.b16 %v3086
          %v3706 = vunpack.c.h.b16 %v3086
          %v3707 = vunpack.c.l.b16 %v3087
          %v3708 = vunpack.c.l.b16 %v3088
          %v3709 = vunpack.c.h.b16 %v3088
          %v3710 = vunpack.c.l.b16 %v3089
          %v3711 = vunpack.c.l.b16 %v3090
          %v3712 = vunpack.c.h.b16 %v3090
          %v3713 = vunpack.c.l.b16 %v3091
          %v3714 = vunpack.c.l.b16 %v3092
          %v3715 = vunpack.c.h.b16 %v3092
          %v3716 = vunpack.c.l.b16 %v3093
          %v3717 = vunpack.c.l.b16 %v3094
          %v3718 = vunpack.c.h.b16 %v3094
          %v3719 = vunpack.c.l.b16 %v3095
          %v3720 = vunpack.c.l.b16 %v3096
          %v3721 = vunpack.c.h.b16 %v3096
          %v3722 = vunpack.c.l.b16 %v3097
          %v3723 = vunpack.c.l.b16 %v3098
          %v3724 = vunpack.c.h.b16 %v3098
          %v3725 = vunpack.c.l.b16 %v3099
          %v3726 = vunpack.c.l.b16 %v3100
          %v3727 = vunpack.c.h.b16 %v3100
          %v3728 = vunpack.c.l.b16 %v3101
          %v3729 = vunpack.c.l.b16 %v3102
          %v3730 = vunpack.c.h.b16 %v3102
          %v3731 = vunpack.c.l.b16 %v3103
          %v3732 = vunpack.c.l.b16 %v3104
          %v3733 = vunpack.c.h.b16 %v3104
          %v3734 = vunpack.c.l.b16 %v3105
          %v3735 = vunpack.c.l.b16 %v3106
          %v3736 = vunpack.c.h.b16 %v3106
          %v3737 = vunpack.c.l.b16 %v3107
          %v3738 = vunpack.c.l.b16 %v3108
          %v3739 = vunpack.c.h.b16 %v3108
          %v3740 = vunpack.c.l.b16 %v3109
          %v3741 = vunpack.c.l.b16 %v3110
          %v3742 = vunpack.c.h.b16 %v3110
          %v3743 = vunpack.c.l.b16 %v3111
          %v3744 = vunpack.c.l.b16 %v3112
          %v3745 = vunpack.c.h.b16 %v3112
          %v3746 = vunpack.c.l.b16 %v3113
          %v3747 = vunpack.c.l.b16 %v3114
          %v3748 = vunpack.c.h.b16 %v3114
          %v3749 = vunpack.c.l.b16 %v3115
          %v3750 = vunpack.c.l.b16 %v3116
          %v3751 = vunpack.c.h.b16 %v3116
          %v3752 = vunpack.c.l.b16 %v3117
          %v3753 = vunpack.c.l.b16 %v3118
          %v3754 = vunpack.c.h.b16 %v3118
          %v3755 = vunpack.c.l.b16 %v3119
          %v3756 = vunpack.c.l.b16 %v3120
          %v3757 = vunpack.c.h.b16 %v3120
          %v3758 = vunpack.c.l.b16 %v3121
          %v3759 = vunpack.c.l.b16 %v3122
          %v3760 = vunpack.c.h.b16 %v3122
          %v3761 = vunpack.c.l.b16 %v3123
          %v3762 = vunpack.c.l.b16 %v3124
          %v3763 = vunpack.c.h.b16 %v3124
          %v3764 = vunpack.c.l.b16 %v3125
          %v3765 = vunpack.c.l.b16 %v3126
          %v3766 = vunpack.c.h.b16 %v3126
          %v3767 = vunpack.c.l.b16 %v3127
          %v3768 = vunpack.c.l.b16 %v3128
          %v3769 = vunpack.c.h.b16 %v3128
          %v3770 = vunpack.c.l.b16 %v3129
          %v3771 = vunpack.c.l.b16 %v3130
          %v3772 = vunpack.c.h.b16 %v3130
          %v3773 = vunpack.c.l.b16 %v3131
          %v3774 = vunpack.c.l.b16 %v3132
          %v3775 = vunpack.c.h.b16 %v3132
          %v3776 = vunpack.c.l.b16 %v3133
          %v3777 = vunpack.c.l.b16 %v3134
          %v3778 = vunpack.c.h.b16 %v3134
          %v3779 = vunpack.c.l.b16 %v3135
          %v3780 = vunpack.c.l.b16 %v3136
          %v3781 = vunpack.c.h.b16 %v3136
          %v3782 = vunpack.c.l.b16 %v3137
          %v3783 = vunpack.c.l.b16 %v3138
          %v3784 = vunpack.c.h.b16 %v3138
          %v3785 = vunpack.c.l.b16 %v3139
          %v3786 = vunpack.c.l.b16 %v3140
          %v3787 = vunpack.c.h.b16 %v3140
          %v3788 = vunpack.c.l.b16 %v3141
          %v3789 = vunpack.c.l.b16 %v3142
          %v3790 = vunpack.c.h.b16 %v3142
          %v3791 = vunpack.c.l.b16 %v3143
          %v3792 = vunpack.c.l.b16 %v3144
          %v3793 = vunpack.c.h.b16 %v3144
          %v3794 = vunpack.c.l.b16 %v3145
          %v3795 = vunpack.c.l.b16 %v3146
          %v3796 = vunpack.c.h.b16 %v3146
          %v3797 = vunpack.c.l.b16 %v3147
          %v3798 = vunpack.c.l.b16 %v3148
          %v3799 = vunpack.c.h.b16 %v3148
          %v3800 = vunpack.c.l.b16 %v3149
          %v3801 = vunpack.c.l.b16 %v3150
          %v3802 = vunpack.c.h.b16 %v3150
          %v3803 = vunpack.c.l.b16 %v3151
          %v3804 = vunpack.c.l.b16 %v3152
          %v3805 = vunpack.c.h.b16 %v3152
          %v3806 = vunpack.c.l.b16 %v3153
          %v3807 = vunpack.c.l.b16 %v3154
          %v3808 = vunpack.c.h.b16 %v3154
          %v3809 = vunpack.c.l.b16 %v3155
          %v3810 = vunpack.c.l.b16 %v3156
          %v3811 = vunpack.c.h.b16 %v3156
          %v3812 = vunpack.c.l.b16 %v3157
          %v3813 = vunpack.c.l.b16 %v3158
          %v3814 = vunpack.c.h.b16 %v3158
          %v3815 = vunpack.c.l.b16 %v3159
          %v3816 = vunpack.c.l.b16 %v3160
          %v3817 = vunpack.c.h.b16 %v3160
          %v3818 = vunpack.c.l.b16 %v3161
          %v3819 = vpack.c.b16 %v3438, %v3435
          %v3820 = vpack.c.b16 %v3439, %v3436
          %v3821 = vpack.c.b16 %v3440, %v3437
          %v3822 = vpack.c.b16 %v3444, %v3441
          %v3823 = vpack.c.b16 %v3445, %v3442
          %v3824 = vpack.c.b16 %v3446, %v3443
          %v3825 = vpack.c.b16 %v3450, %v3447
          %v3826 = vpack.c.b16 %v3451, %v3448
          %v3827 = vpack.c.b16 %v3452, %v3449
          %v3828 = vpack.c.b16 %v3456, %v3453
          %v3829 = vpack.c.b16 %v3457, %v3454
          %v3830 = vpack.c.b16 %v3458, %v3455
          %v3831 = vpack.c.b16 %v3462, %v3459
          %v3832 = vpack.c.b16 %v3463, %v3460
          %v3833 = vpack.c.b16 %v3464, %v3461
          %v3834 = vpack.c.b16 %v3468, %v3465
          %v3835 = vpack.c.b16 %v3469, %v3466
          %v3836 = vpack.c.b16 %v3470, %v3467
          %v3837 = vpack.c.b16 %v3474, %v3471
          %v3838 = vpack.c.b16 %v3475, %v3472
          %v3839 = vpack.c.b16 %v3476, %v3473
          %v3840 = vpack.c.b16 %v3480, %v3477
          %v3841 = vpack.c.b16 %v3481, %v3478
          %v3842 = vpack.c.b16 %v3482, %v3479
          %v3843 = vpack.c.b16 %v3486, %v3483
          %v3844 = vpack.c.b16 %v3487, %v3484
          %v3845 = vpack.c.b16 %v3488, %v3485
          %v3846 = vpack.c.b16 %v3492, %v3489
          %v3847 = vpack.c.b16 %v3493, %v3490
          %v3848 = vpack.c.b16 %v3494, %v3491
          %v3849 = vpack.c.b16 %v3498, %v3495
          %v3850 = vpack.c.b16 %v3499, %v3496
          %v3851 = vpack.c.b16 %v3500, %v3497
          %v3852 = vpack.c.b16 %v3504, %v3501
          %v3853 = vpack.c.b16 %v3505, %v3502
          %v3854 = vpack.c.b16 %v3506, %v3503
          %v3855 = vpack.c.b16 %v3510, %v3507
          %v3856 = vpack.c.b16 %v3511, %v3508
          %v3857 = vpack.c.b16 %v3512, %v3509
          %v3858 = vpack.c.b16 %v3516, %v3513
          %v3859 = vpack.c.b16 %v3517, %v3514
          %v3860 = vpack.c.b16 %v3518, %v3515
          %v3861 = vpack.c.b16 %v3522, %v3519
          %v3862 = vpack.c.b16 %v3523, %v3520
          %v3863 = vpack.c.b16 %v3524, %v3521
          %v3864 = vpack.c.b16 %v3528, %v3525
          %v3865 = vpack.c.b16 %v3529, %v3526
          %v3866 = vpack.c.b16 %v3530, %v3527
          %v3867 = vpack.c.b16 %v3534, %v3531
          %v3868 = vpack.c.b16 %v3535, %v3532
          %v3869 = vpack.c.b16 %v3536, %v3533
          %v3870 = vpack.c.b16 %v3540, %v3537
          %v3871 = vpack.c.b16 %v3541, %v3538
          %v3872 = vpack.c.b16 %v3542, %v3539
          %v3873 = vpack.c.b16 %v3546, %v3543
          %v3874 = vpack.c.b16 %v3547, %v3544
          %v3875 = vpack.c.b16 %v3548, %v3545
          %v3876 = vpack.c.b16 %v3552, %v3549
          %v3877 = vpack.c.b16 %v3553, %v3550
          %v3878 = vpack.c.b16 %v3554, %v3551
          %v3879 = vpack.c.b16 %v3558, %v3555
          %v3880 = vpack.c.b16 %v3559, %v3556
          %v3881 = vpack.c.b16 %v3560, %v3557
          %v3882 = vpack.c.b16 %v3564, %v3561
          %v3883 = vpack.c.b16 %v3565, %v3562
          %v3884 = vpack.c.b16 %v3566, %v3563
          %v3885 = vpack.c.b16 %v3570, %v3567
          %v3886 = vpack.c.b16 %v3571, %v3568
          %v3887 = vpack.c.b16 %v3572, %v3569
          %v3888 = vpack.c.b16 %v3576, %v3573
          %v3889 = vpack.c.b16 %v3577, %v3574
          %v3890 = vpack.c.b16 %v3578, %v3575
          %v3891 = vpack.c.b16 %v3582, %v3579
          %v3892 = vpack.c.b16 %v3583, %v3580
          %v3893 = vpack.c.b16 %v3584, %v3581
          %v3894 = vpack.c.b16 %v3588, %v3585
          %v3895 = vpack.c.b16 %v3589, %v3586
          %v3896 = vpack.c.b16 %v3590, %v3587
          %v3897 = vpack.c.b16 %v3594, %v3591
          %v3898 = vpack.c.b16 %v3595, %v3592
          %v3899 = vpack.c.b16 %v3596, %v3593
          %v3900 = vpack.c.b16 %v3600, %v3597
          %v3901 = vpack.c.b16 %v3601, %v3598
          %v3902 = vpack.c.b16 %v3602, %v3599
          %v3903 = vpack.c.b16 %v3606, %v3603
          %v3904 = vpack.c.b16 %v3607, %v3604
          %v3905 = vpack.c.b16 %v3608, %v3605
          %v3906 = vpack.c.b16 %v3612, %v3609
          %v3907 = vpack.c.b16 %v3613, %v3610
          %v3908 = vpack.c.b16 %v3614, %v3611
          %v3909 = vpack.c.b16 %v3618, %v3615
          %v3910 = vpack.c.b16 %v3619, %v3616
          %v3911 = vpack.c.b16 %v3620, %v3617
          %v3912 = vpack.c.b16 %v3624, %v3621
          %v3913 = vpack.c.b16 %v3625, %v3622
          %v3914 = vpack.c.b16 %v3626, %v3623
          %v3915 = vpack.c.b16 %v3630, %v3627
          %v3916 = vpack.c.b16 %v3631, %v3628
          %v3917 = vpack.c.b16 %v3632, %v3629
          %v3918 = vpack.c.b16 %v3636, %v3633
          %v3919 = vpack.c.b16 %v3637, %v3634
          %v3920 = vpack.c.b16 %v3638, %v3635
          %v3921 = vpack.c.b16 %v3642, %v3639
          %v3922 = vpack.c.b16 %v3643, %v3640
          %v3923 = vpack.c.b16 %v3644, %v3641
          %v3924 = vpack.c.b16 %v3648, %v3645
          %v3925 = vpack.c.b16 %v3649, %v3646
          %v3926 = vpack.c.b16 %v3650, %v3647
          %v3927 = vpack.c.b16 %v3654, %v3651
          %v3928 = vpack.c.b16 %v3655, %v3652
          %v3929 = vpack.c.b16 %v3656, %v3653
          %v3930 = vpack.c.b16 %v3660, %v3657
          %v3931 = vpack.c.b16 %v3661, %v3658
          %v3932 = vpack.c.b16 %v3662, %v3659
          %v3933 = vpack.c.b16 %v3666, %v3663
          %v3934 = vpack.c.b16 %v3667, %v3664
          %v3935 = vpack.c.b16 %v3668, %v3665
          %v3936 = vpack.c.b16 %v3672, %v3669
          %v3937 = vpack.c.b16 %v3673, %v3670
          %v3938 = vpack.c.b16 %v3674, %v3671
          %v3939 = vpack.c.b16 %v3678, %v3675
          %v3940 = vpack.c.b16 %v3679, %v3676
          %v3941 = vpack.c.b16 %v3680, %v3677
          %v3942 = vpack.c.b16 %v3684, %v3681
          %v3943 = vpack.c.b16 %v3685, %v3682
          %v3944 = vpack.c.b16 %v3686, %v3683
          %v3945 = vpack.c.b16 %v3690, %v3687
          %v3946 = vpack.c.b16 %v3691, %v3688
          %v3947 = vpack.c.b16 %v3692, %v3689
          %v3948 = vpack.c.b16 %v3696, %v3693
          %v3949 = vpack.c.b16 %v3697, %v3694
          %v3950 = vpack.c.b16 %v3698, %v3695
          %v3951 = vpack.c.b16 %v3702, %v3699
          %v3952 = vpack.c.b16 %v3703, %v3700
          %v3953 = vpack.c.b16 %v3704, %v3701
          %v3954 = vpack.c.b16 %v3708, %v3705
          %v3955 = vpack.c.b16 %v3709, %v3706
          %v3956 = vpack.c.b16 %v3710, %v3707
          %v3957 = vpack.c.b16 %v3714, %v3711
          %v3958 = vpack.c.b16 %v3715, %v3712
          %v3959 = vpack.c.b16 %v3716, %v3713
          %v3960 = vpack.c.b16 %v3720, %v3717
          %v3961 = vpack.c.b16 %v3721, %v3718
          %v3962 = vpack.c.b16 %v3722, %v3719
          %v3963 = vpack.c.b16 %v3726, %v3723
          %v3964 = vpack.c.b16 %v3727, %v3724
          %v3965 = vpack.c.b16 %v3728, %v3725
          %v3966 = vpack.c.b16 %v3732, %v3729
          %v3967 = vpack.c.b16 %v3733, %v3730
          %v3968 = vpack.c.b16 %v3734, %v3731
          %v3969 = vpack.c.b16 %v3738, %v3735
          %v3970 = vpack.c.b16 %v3739, %v3736
          %v3971 = vpack.c.b16 %v3740, %v3737
          %v3972 = vpack.c.b16 %v3744, %v3741
          %v3973 = vpack.c.b16 %v3745, %v3742
          %v3974 = vpack.c.b16 %v3746, %v3743
          %v3975 = vpack.c.b16 %v3750, %v3747
          %v3976 = vpack.c.b16 %v3751, %v3748
          %v3977 = vpack.c.b16 %v3752, %v3749
          %v3978 = vpack.c.b16 %v3756, %v3753
          %v3979 = vpack.c.b16 %v3757, %v3754
          %v3980 = vpack.c.b16 %v3758, %v3755
          %v3981 = vpack.c.b16 %v3762, %v3759
          %v3982 = vpack.c.b16 %v3763, %v3760
          %v3983 = vpack.c.b16 %v3764, %v3761
          %v3984 = vpack.c.b16 %v3768, %v3765
          %v3985 = vpack.c.b16 %v3769, %v3766
          %v3986 = vpack.c.b16 %v3770, %v3767
          %v3987 = vpack.c.b16 %v3774, %v3771
          %v3988 = vpack.c.b16 %v3775, %v3772
          %v3989 = vpack.c.b16 %v3776, %v3773
          %v3990 = vpack.c.b16 %v3780, %v3777
          %v3991 = vpack.c.b16 %v3781, %v3778
          %v3992 = vpack.c.b16 %v3782, %v3779
          %v3993 = vpack.c.b16 %v3786, %v3783
          %v3994 = vpack.c.b16 %v3787, %v3784
          %v3995 = vpack.c.b16 %v3788, %v3785
          %v3996 = vpack.c.b16 %v3792, %v3789
          %v3997 = vpack.c.b16 %v3793, %v3790
          %v3998 = vpack.c.b16 %v3794, %v3791
          %v3999 = vpack.c.b16 %v3798, %v3795
          %v4000 = vpack.c.b16 %v3799, %v3796
          %v4001 = vpack.c.b16 %v3800, %v3797
          %v4002 = vpack.c.b16 %v3804, %v3801
          %v4003 = vpack.c.b16 %v3805, %v3802
          %v4004 = vpack.c.b16 %v3806, %v3803
          %v4005 = vpack.c.b16 %v3810, %v3807
          %v4006 = vpack.c.b16 %v3811, %v3808
          %v4007 = vpack.c.b16 %v3812, %v3809
          %v4008 = vpack.c.b16 %v3816, %v3813
          %v4009 = vpack.c.b16 %v3817, %v3814
          %v4010 = vpack.c.b16 %v3818, %v3815
          %4203 = vmatprep.subr.bf16.mxu0 %v3820
          %4204 = vmatpush1.bf16.msra.mxu0 %v3819
          %4205 = vmatprep.subr.bf16.mxu0 %v3823
          %4206 = vmatpush1.bf16.msra.mxu0 %v3822
          %4207 = vmatprep.subr.bf16.mxu0 %v3826
          %4208 = vmatpush1.bf16.msra.mxu0 %v3825
          %4209 = vmatprep.subr.bf16.mxu0 %v3829
          %4210 = vmatpush1.bf16.msra.mxu0 %v3828
          %4211 = vmatprep.subr.bf16.mxu0 %v3832
          %4212 = vmatpush1.bf16.msra.mxu0 %v3831
          %4213 = vmatprep.subr.bf16.mxu0 %v3835
          %4214 = vmatpush1.bf16.msra.mxu0 %v3834
          %4215 = vmatprep.subr.bf16.mxu0 %v3838
          %4216 = vmatpush1.bf16.msra.mxu0 %v3837
          %4217 = vmatprep.subr.bf16.mxu0 %v3841
          %4218 = vmatpush1.bf16.msra.mxu0 %v3840
          %4219 = vmatprep.subr.bf16.mxu0 %v3844
          %4220 = vmatpush1.bf16.msra.mxu0 %v3843
          %4221 = vmatprep.subr.bf16.mxu0 %v3847
          %4222 = vmatpush1.bf16.msra.mxu0 %v3846
          %4223 = vmatprep.subr.bf16.mxu0 %v3850
          %4224 = vmatpush1.bf16.msra.mxu0 %v3849
          %4225 = vmatprep.subr.bf16.mxu0 %v3853
          %4226 = vmatpush1.bf16.msra.mxu0 %v3852
          %4227 = vmatprep.subr.bf16.mxu0 %v3856
          %4228 = vmatpush1.bf16.msra.mxu0 %v3855
          %4229 = vmatprep.subr.bf16.mxu0 %v3859
          %4230 = vmatpush1.bf16.msra.mxu0 %v3858
          %4231 = vmatprep.subr.bf16.mxu0 %v3862
          %4232 = vmatpush1.bf16.msra.mxu0 %v3861
          %4233 = vmatprep.subr.bf16.mxu0 %v3865
          %4234 = vmatpush1.bf16.msra.mxu0 %v3864
          %4235 = vmatprep.mubr.bf16.mxu0 %v2899
          %4236 = vmatmul.mubr.bf16.gmra.mrb[0].mxu0 %v2898
          %v4237 = vpop.f32.mrb[0].mxu0
          %v4238 = vadd.f32 %v3167, %v4237
          %v4239 = vpop.f32.mrb[0].mxu0
          %v4240 = vadd.f32 %v3171, %v4239
          %v4241 = vpop.f32.mrb[0].mxu0
          %v4242 = vpop.f32.mrb[0].mxu0
          %4243 = vdwg.mxu0
          %4244 = vmatprep.subr.bf16.mxu0 %v3868
          %4245 = vmatpush1.bf16.msra.mxu0 %v3867
          %4246 = vmatprep.subr.bf16.mxu0 %v3871
          %4247 = vmatpush1.bf16.msra.mxu0 %v3870
          %4248 = vmatprep.subr.bf16.mxu0 %v3874
          %4249 = vmatpush1.bf16.msra.mxu0 %v3873
          %4250 = vmatprep.subr.bf16.mxu0 %v3877
          %4251 = vmatpush1.bf16.msra.mxu0 %v3876
          %4252 = vmatprep.subr.bf16.mxu0 %v3880
          %4253 = vmatpush1.bf16.msra.mxu0 %v3879
          %4254 = vmatprep.subr.bf16.mxu0 %v3883
          %4255 = vmatpush1.bf16.msra.mxu0 %v3882
          %4256 = vmatprep.subr.bf16.mxu0 %v3886
          %4257 = vmatpush1.bf16.msra.mxu0 %v3885
          %4258 = vmatprep.subr.bf16.mxu0 %v3889
          %4259 = vmatpush1.bf16.msra.mxu0 %v3888
          %4260 = vmatprep.subr.bf16.mxu0 %v3892
          %4261 = vmatpush1.bf16.msra.mxu0 %v3891
          %4262 = vmatprep.subr.bf16.mxu0 %v3895
          %4263 = vmatpush1.bf16.msra.mxu0 %v3894
          %4264 = vmatprep.subr.bf16.mxu0 %v3898
          %4265 = vmatpush1.bf16.msra.mxu0 %v3897
          %4266 = vmatprep.subr.bf16.mxu0 %v3901
          %4267 = vmatpush1.bf16.msra.mxu0 %v3900
          %4268 = vmatprep.subr.bf16.mxu0 %v3904
          %4269 = vmatpush1.bf16.msra.mxu0 %v3903
          %4270 = vmatprep.subr.bf16.mxu0 %v3907
          %4271 = vmatpush1.bf16.msra.mxu0 %v3906
          %4272 = vmatprep.subr.bf16.mxu0 %v3910
          %4273 = vmatpush1.bf16.msra.mxu0 %v3909
          %4274 = vmatprep.subr.bf16.mxu0 %v3913
          %4275 = vmatpush1.bf16.msra.mxu0 %v3912
          %4276 = vmatprep.mubr.bf16.mxu0 %v2901
          %4277 = vmatmul.mubr.bf16.gmra.mrb[0].mxu0 %v2900
          %v4278 = vpop.f32.mrb[0].mxu0
          %v4279 = vadd.f32 %v4238, %v4278
          %v4280 = vpop.f32.mrb[0].mxu0
          %v4281 = vadd.f32 %v4240, %v4280
          %v4282 = vpop.f32.mrb[0].mxu0
          %v4283 = vpop.f32.mrb[0].mxu0
          %4284 = vdwg.mxu0
          %4285 = vmatprep.subr.bf16.mxu0 %v3916
          %4286 = vmatpush1.bf16.msra.mxu0 %v3915
          %4287 = vmatprep.subr.bf16.mxu0 %v3919
          %4288 = vmatpush1.bf16.msra.mxu0 %v3918
          %4289 = vmatprep.subr.bf16.mxu0 %v3922
          %4290 = vmatpush1.bf16.msra.mxu0 %v3921
          %4291 = vmatprep.subr.bf16.mxu0 %v3925
          %4292 = vmatpush1.bf16.msra.mxu0 %v3924
          %4293 = vmatprep.subr.bf16.mxu0 %v3928
          %4294 = vmatpush1.bf16.msra.mxu0 %v3927
          %4295 = vmatprep.subr.bf16.mxu0 %v3931
          %4296 = vmatpush1.bf16.msra.mxu0 %v3930
          %4297 = vmatprep.subr.bf16.mxu0 %v3934
          %4298 = vmatpush1.bf16.msra.mxu0 %v3933
          %4299 = vmatprep.subr.bf16.mxu0 %v3937
          %4300 = vmatpush1.bf16.msra.mxu0 %v3936
          %4301 = vmatprep.subr.bf16.mxu0 %v3940
          %4302 = vmatpush1.bf16.msra.mxu0 %v3939
          %4303 = vmatprep.subr.bf16.mxu0 %v3943
          %4304 = vmatpush1.bf16.msra.mxu0 %v3942
          %4305 = vmatprep.subr.bf16.mxu0 %v3946
          %4306 = vmatpush1.bf16.msra.mxu0 %v3945
          %4307 = vmatprep.subr.bf16.mxu0 %v3949
          %4308 = vmatpush1.bf16.msra.mxu0 %v3948
          %4309 = vmatprep.subr.bf16.mxu0 %v3952
          %4310 = vmatpush1.bf16.msra.mxu0 %v3951
          %4311 = vmatprep.subr.bf16.mxu0 %v3955
          %4312 = vmatpush1.bf16.msra.mxu0 %v3954
          %4313 = vmatprep.subr.bf16.mxu0 %v3958
          %4314 = vmatpush1.bf16.msra.mxu0 %v3957
          %4315 = vmatprep.subr.bf16.mxu0 %v3961
          %4316 = vmatpush1.bf16.msra.mxu0 %v3960
          %4317 = vmatprep.mubr.bf16.mxu0 %v2903
          %4318 = vmatmul.mubr.bf16.gmra.mrb[0].mxu0 %v2902
          %v4319 = vpop.f32.mrb[0].mxu0
          %v4320 = vadd.f32 %v4279, %v4319
          %v4321 = vpop.f32.mrb[0].mxu0
          %v4322 = vadd.f32 %v4281, %v4321
          %v4323 = vpop.f32.mrb[0].mxu0
          %v4324 = vpop.f32.mrb[0].mxu0
          %4325 = vdwg.mxu0
          %4326 = vmatprep.subr.bf16.mxu0 %v3964
          %4327 = vmatpush1.bf16.msra.mxu0 %v3963
          %4328 = vmatprep.subr.bf16.mxu0 %v3967
          %4329 = vmatpush1.bf16.msra.mxu0 %v3966
          %4330 = vmatprep.subr.bf16.mxu0 %v3970
          %4331 = vmatpush1.bf16.msra.mxu0 %v3969
          %4332 = vmatprep.subr.bf16.mxu0 %v3973
          %4333 = vmatpush1.bf16.msra.mxu0 %v3972
          %4334 = vmatprep.subr.bf16.mxu0 %v3976
          %4335 = vmatpush1.bf16.msra.mxu0 %v3975
          %4336 = vmatprep.subr.bf16.mxu0 %v3979
          %4337 = vmatpush1.bf16.msra.mxu0 %v3978
          %4338 = vmatprep.subr.bf16.mxu0 %v3982
          %4339 = vmatpush1.bf16.msra.mxu0 %v3981
          %4340 = vmatprep.subr.bf16.mxu0 %v3985
          %4341 = vmatpush1.bf16.msra.mxu0 %v3984
          %4342 = vmatprep.subr.bf16.mxu0 %v3988
          %4343 = vmatpush1.bf16.msra.mxu0 %v3987
          %4344 = vmatprep.subr.bf16.mxu0 %v3991
          %4345 = vmatpush1.bf16.msra.mxu0 %v3990
          %4346 = vmatprep.subr.bf16.mxu0 %v3994
          %4347 = vmatpush1.bf16.msra.mxu0 %v3993
          %4348 = vmatprep.subr.bf16.mxu0 %v3997
          %4349 = vmatpush1.bf16.msra.mxu0 %v3996
          %4350 = vmatprep.subr.bf16.mxu0 %v4000
          %4351 = vmatpush1.bf16.msra.mxu0 %v3999
          %4352 = vmatprep.subr.bf16.mxu0 %v4003
          %4353 = vmatpush1.bf16.msra.mxu0 %v4002
          %4354 = vmatprep.subr.bf16.mxu0 %v4006
          %4355 = vmatpush1.bf16.msra.mxu0 %v4005
          %4356 = vmatprep.subr.bf16.mxu0 %v4009
          %4357 = vmatpush1.bf16.msra.mxu0 %v4008
          %4358 = vmatprep.mubr.bf16.mxu0 %v2905
          %4359 = vmatmul.mubr.bf16.gmra.mrb[0].mxu0 %v2904
          %v4360 = vpop.f32.mrb[0].mxu0
          %v4361 = vadd.f32 %v4320, %v4360
          %v4362 = vpop.f32.mrb[0].mxu0
          %v4363 = vadd.f32 %v4322, %v4362
          %v4364 = vpop.f32.mrb[0].mxu0
          %v4365 = vpop.f32.mrb[0].mxu0
          %4366 = vdwg.mxu0
          %4367 = vmatprep.subr.bf16.mxu0 0
          %4368 = vmatpush1.bf16.msra.mxu0 %v3821
          %4369 = vmatprep.subr.bf16.mxu0 0
          %4370 = vmatpush1.bf16.msra.mxu0 %v3824
          %4371 = vmatprep.subr.bf16.mxu0 0
          %4372 = vmatpush1.bf16.msra.mxu0 %v3827
          %4373 = vmatprep.subr.bf16.mxu0 0
          %4374 = vmatpush1.bf16.msra.mxu0 %v3830
          %4375 = vmatprep.subr.bf16.mxu0 0
          %4376 = vmatpush1.bf16.msra.mxu0 %v3833
          %4377 = vmatprep.subr.bf16.mxu0 0
          %4378 = vmatpush1.bf16.msra.mxu0 %v3836
          %4379 = vmatprep.subr.bf16.mxu0 0
          %4380 = vmatpush1.bf16.msra.mxu0 %v3839
          %4381 = vmatprep.subr.bf16.mxu0 0
          %4382 = vmatpush1.bf16.msra.mxu0 %v3842
          %4383 = vmatprep.subr.bf16.mxu0 0
          %4384 = vmatpush1.bf16.msra.mxu0 %v3845
          %4385 = vmatprep.subr.bf16.mxu0 0
          %4386 = vmatpush1.bf16.msra.mxu0 %v3848
          %4387 = vmatprep.subr.bf16.mxu0 0
          %4388 = vmatpush1.bf16.msra.mxu0 %v3851
          %4389 = vmatprep.subr.bf16.mxu0 0
          %4390 = vmatpush1.bf16.msra.mxu0 %v3854
          %4391 = vmatprep.subr.bf16.mxu0 0
          %4392 = vmatpush1.bf16.msra.mxu0 %v3857
          %4393 = vmatprep.subr.bf16.mxu0 0
          %4394 = vmatpush1.bf16.msra.mxu0 %v3860
          %4395 = vmatprep.subr.bf16.mxu0 0
          %4396 = vmatpush1.bf16.msra.mxu0 %v3863
          %4397 = vmatprep.subr.bf16.mxu0 0
          %4398 = vmatpush1.bf16.msra.mxu0 %v3866
          %4399 = vmatprep.mubr.bf16.mxu0 %v2899
          %4400 = vmatmul.mubr.bf16.gmra.mrb[0].mxu0 %v2898
          %v4401 = vpop.f32.mrb[0].mxu0
          %v4402 = vadd.f32 %v3175, %v4401
          %v4403 = vpop.f32.mrb[0].mxu0
          %v4404 = vpop.f32.mrb[0].mxu0
          %v4405 = vpop.f32.mrb[0].mxu0
          %4406 = vdwg.mxu0
          %4407 = vmatprep.subr.bf16.mxu0 0
          %4408 = vmatpush1.bf16.msra.mxu0 %v3869
          %4409 = vmatprep.subr.bf16.mxu0 0
          %4410 = vmatpush1.bf16.msra.mxu0 %v3872
          %4411 = vmatprep.subr.bf16.mxu0 0
          %4412 = vmatpush1.bf16.msra.mxu0 %v3875
          %4413 = vmatprep.subr.bf16.mxu0 0
          %4414 = vmatpush1.bf16.msra.mxu0 %v3878
          %4415 = vmatprep.subr.bf16.mxu0 0
          %4416 = vmatpush1.bf16.msra.mxu0 %v3881
          %4417 = vmatprep.subr.bf16.mxu0 0
          %4418 = vmatpush1.bf16.msra.mxu0 %v3884
          %4419 = vmatprep.subr.bf16.mxu0 0
          %4420 = vmatpush1.bf16.msra.mxu0 %v3887
          %4421 = vmatprep.subr.bf16.mxu0 0
          %4422 = vmatpush1.bf16.msra.mxu0 %v3890
          %4423 = vmatprep.subr.bf16.mxu0 0
          %4424 = vmatpush1.bf16.msra.mxu0 %v3893
          %4425 = vmatprep.subr.bf16.mxu0 0
          %4426 = vmatpush1.bf16.msra.mxu0 %v3896
          %4427 = vmatprep.subr.bf16.mxu0 0
          %4428 = vmatpush1.bf16.msra.mxu0 %v3899
          %4429 = vmatprep.subr.bf16.mxu0 0
          %4430 = vmatpush1.bf16.msra.mxu0 %v3902
          %4431 = vmatprep.subr.bf16.mxu0 0
          %4432 = vmatpush1.bf16.msra.mxu0 %v3905
          %4433 = vmatprep.subr.bf16.mxu0 0
          %4434 = vmatpush1.bf16.msra.mxu0 %v3908
          %4435 = vmatprep.subr.bf16.mxu0 0
          %4436 = vmatpush1.bf16.msra.mxu0 %v3911
          %4437 = vmatprep.subr.bf16.mxu0 0
          %4438 = vmatpush1.bf16.msra.mxu0 %v3914
          %4439 = vmatprep.mubr.bf16.mxu0 %v2901
          %4440 = vmatmul.mubr.bf16.gmra.mrb[0].mxu0 %v2900
          %v4441 = vpop.f32.mrb[0].mxu0
          %v4442 = vadd.f32 %v4402, %v4441
          %v4443 = vpop.f32.mrb[0].mxu0
          %v4444 = vpop.f32.mrb[0].mxu0
          %v4445 = vpop.f32.mrb[0].mxu0
          %4446 = vdwg.mxu0
          %4447 = vmatprep.subr.bf16.mxu0 0
          %4448 = vmatpush1.bf16.msra.mxu0 %v3917
          %4449 = vmatprep.subr.bf16.mxu0 0
          %4450 = vmatpush1.bf16.msra.mxu0 %v3920
          %4451 = vmatprep.subr.bf16.mxu0 0
          %4452 = vmatpush1.bf16.msra.mxu0 %v3923
          %4453 = vmatprep.subr.bf16.mxu0 0
          %4454 = vmatpush1.bf16.msra.mxu0 %v3926
          %4455 = vmatprep.subr.bf16.mxu0 0
          %4456 = vmatpush1.bf16.msra.mxu0 %v3929
          %4457 = vmatprep.subr.bf16.mxu0 0
          %4458 = vmatpush1.bf16.msra.mxu0 %v3932
          %4459 = vmatprep.subr.bf16.mxu0 0
          %4460 = vmatpush1.bf16.msra.mxu0 %v3935
          %4461 = vmatprep.subr.bf16.mxu0 0
          %4462 = vmatpush1.bf16.msra.mxu0 %v3938
          %4463 = vmatprep.subr.bf16.mxu0 0
          %4464 = vmatpush1.bf16.msra.mxu0 %v3941
          %4465 = vmatprep.subr.bf16.mxu0 0
          %4466 = vmatpush1.bf16.msra.mxu0 %v3944
          %4467 = vmatprep.subr.bf16.mxu0 0
          %4468 = vmatpush1.bf16.msra.mxu0 %v3947
          %4469 = vmatprep.subr.bf16.mxu0 0
          %4470 = vmatpush1.bf16.msra.mxu0 %v3950
          %4471 = vmatprep.subr.bf16.mxu0 0
          %4472 = vmatpush1.bf16.msra.mxu0 %v3953
          %4473 = vmatprep.subr.bf16.mxu0 0
          %4474 = vmatpush1.bf16.msra.mxu0 %v3956
          %4475 = vmatprep.subr.bf16.mxu0 0
          %4476 = vmatpush1.bf16.msra.mxu0 %v3959
          %4477 = vmatprep.subr.bf16.mxu0 0
          %4478 = vmatpush1.bf16.msra.mxu0 %v3962
          %4479 = vmatprep.mubr.bf16.mxu0 %v2903
          %4480 = vmatmul.mubr.bf16.gmra.mrb[0].mxu0 %v2902
          %v4481 = vpop.f32.mrb[0].mxu0
          %v4482 = vadd.f32 %v4442, %v4481
          %v4483 = vpop.f32.mrb[0].mxu0
          %v4484 = vpop.f32.mrb[0].mxu0
          %v4485 = vpop.f32.mrb[0].mxu0
          %4486 = vdwg.mxu0
          %4487 = vmatprep.subr.bf16.mxu0 0
          %4488 = vmatpush1.bf16.msra.mxu0 %v3965
          %4489 = vmatprep.subr.bf16.mxu0 0
          %4490 = vmatpush1.bf16.msra.mxu0 %v3968
          %4491 = vmatprep.subr.bf16.mxu0 0
          %4492 = vmatpush1.bf16.msra.mxu0 %v3971
          %4493 = vmatprep.subr.bf16.mxu0 0
          %4494 = vmatpush1.bf16.msra.mxu0 %v3974
          %4495 = vmatprep.subr.bf16.mxu0 0
          %4496 = vmatpush1.bf16.msra.mxu0 %v3977
          %4497 = vmatprep.subr.bf16.mxu0 0
          %4498 = vmatpush1.bf16.msra.mxu0 %v3980
          %4499 = vmatprep.subr.bf16.mxu0 0
          %4500 = vmatpush1.bf16.msra.mxu0 %v3983
          %4501 = vmatprep.subr.bf16.mxu0 0
          %4502 = vmatpush1.bf16.msra.mxu0 %v3986
          %4503 = vmatprep.subr.bf16.mxu0 0
          %4504 = vmatpush1.bf16.msra.mxu0 %v3989
          %4505 = vmatprep.subr.bf16.mxu0 0
          %4506 = vmatpush1.bf16.msra.mxu0 %v3992
          %4507 = vmatprep.subr.bf16.mxu0 0
          %4508 = vmatpush1.bf16.msra.mxu0 %v3995
          %4509 = vmatprep.subr.bf16.mxu0 0
          %4510 = vmatpush1.bf16.msra.mxu0 %v3998
          %4511 = vmatprep.subr.bf16.mxu0 0
          %4512 = vmatpush1.bf16.msra.mxu0 %v4001
          %4513 = vmatprep.subr.bf16.mxu0 0
          %4514 = vmatpush1.bf16.msra.mxu0 %v4004
          %4515 = vmatprep.subr.bf16.mxu0 0
          %4516 = vmatpush1.bf16.msra.mxu0 %v4007
          %4517 = vmatprep.subr.bf16.mxu0 0
          %4518 = vmatpush1.bf16.msra.mxu0 %v4010
          %4519 = vmatprep.mubr.bf16.mxu0 %v2905
          %4520 = vmatmul.mubr.bf16.gmra.mrb[0].mxu0 %v2904
          %v4521 = vpop.f32.mrb[0].mxu0
          %v4522 = vadd.f32 %v4482, %v4521
          %v4523 = vpop.f32.mrb[0].mxu0
          %v4524 = vpop.f32.mrb[0].mxu0
          %v4525 = vpop.f32.mrb[0].mxu0
          %4526 = vdwg.mxu0
          %v4527 = vmul.f32 %v4522, 1.442695
          %v4528 = vpow.pop %v4527
          %v4529 = vadd.f32 %v4528, 9.0
          %v4530 = vmul.f32 %v4363, 0.5
          %v4531 = vmul.f32 %v4530, 1.442695
          %v4532 = vpow.pop %v4531
          %v4533 = vld [vmem:[%s7] sm:$0x3]
          %v4534 = vmul.f32 %v4529, %v2481
          %v4535 = vsub.f32 %v4534, 0.33333334
          %v4536 = vmul.f32 %v4529, 9.0
          %v4537 = vmul.f32 %v4536, %v2481
          %v4538 = vsub.f32 %v4537, 3.0
          %v4539 = vrsqrt.pop %v4538
          %v4540 = vmul.f32 %v4538, %v4539
          %vm4541 = vcmp.eq.f32.partialorder %v4538, inf
          %v4542 = vsel %vm4541, %v4538, %v4540
          %vm4543 = vcmp.eq.f32.partialorder %v4538, 0.0
          %v4544 = vand.u32 %v4538, 2147483648
          %v4545 = vsel %vm4543, %v4544, %v4542
          %v4546 = vrcp.pop %v4545
          %v4547 = vmul.f32 %v4533, %v4546
          %v4548 = vadd.f32 %v4547, 1.0
          %v4549 = vmul.f32 %v4548, %v4548
          %v4550 = vmul.f32 %v4548, %v4549
          %v4551 = vmul.f32 %v4535, %v4550
          %v4552 = vmul.f32 %v4551, 2.0
          %v4553 = vrcp.pop %v4552
          %v4554 = vmul.f32 %v4529, %v4553
          %v4555 = vrsqrt.pop %v4554
          %v4556 = vmul.f32 %v4554, %v4555
          %vm4557 = vcmp.eq.f32.partialorder %v4554, inf
          %v4558 = vsel %vm4557, %v4554, %v4556
          %vm4559 = vcmp.eq.f32.partialorder %v4554, 0.0
          %v4560 = vand.u32 %v4554, 2147483648
          %v4561 = vsel %vm4559, %v4560, %v4558
          %v4562 = vmul.f32 %v4532, %v4561
          %v4563 = vld [vmem:[%s6] sm:$0x3]
          %v4564 = vmul.f32 %v4562, %v4563
          %v4565 = vadd.f32 %v4361, %v4564
          %4566 = vst [vmem:[#allocation11] sm:$0x3] %v4565
          %4567 = vst [vmem:[#allocation12] sm:$0x3] %v4361
          %v4568 = vlog2.pop %v4551
          %v4569 = vmul.f32 %v4568, 0.6931472
          %v4570 = vsub.f32 %v4363, %v4569
          %4571 = vst [vmem:[#allocation14] sm:$0x3] %v4570
        $region76: #{encoder_forward.11} parent=51 // pred_fallthru
          _
        // Predicated region
        $region77: #{encoder_forward.11} parent=51 // pred_check
          %p4572 = pneg %p220
        $region78: #{encoder_forward.11} parent=51 // pred_check_branch
          %4574 = sbr.rel (%p4572) target = $region80
        $region79: #{encoder_forward.11} parent=51 // pred_region
          %s4576 = ssub.s32 32, 32
          %4577 = vsyncadd [#allocation5], %s4576
          %s4579 = sshll.u32 [#allocation11], 4
          %s4580 = int_to_ptr.vmem [resolvable:$true] %s4579
          %4582 = dma.vmem_to_hbm [thread:$0]  %s4580, 32, %s8, [#allocation5]
        $region80: #{encoder_forward.11} parent=51 // pred_fallthru
          _
        // Predicated region
        $region81: #{encoder_forward.11} parent=51 // pred_check
          %p4583 = pneg %p241
        $region82: #{encoder_forward.11} parent=51 // pred_check_branch
          %4585 = sbr.rel (%p4583) target = $region84
        $region83: #{encoder_forward.11} parent=51 // pred_region
          %s4587 = ssub.s32 32, 32
          %4588 = vsyncadd [#allocation13], %s4587
          %s4590 = sshll.u32 [#allocation12], 4
          %s4591 = int_to_ptr.vmem [resolvable:$true] %s4590
          %4593 = dma.vmem_to_hbm [thread:$0]  %s4591, 32, %s9, [#allocation13]
        $region84: #{encoder_forward.11} parent=51 // pred_fallthru
          _
        // Predicated region
        $region85: #{encoder_forward.11} parent=51 // pred_check
          %p4594 = pneg %p262
        $region86: #{encoder_forward.11} parent=51 // pred_check_branch
          %4596 = sbr.rel (%p4594) target = $region88
        $region87: #{encoder_forward.11} parent=51 // pred_region
          %s4598 = ssub.s32 32, 32
          %4599 = vsyncadd [#allocation13], %s4598
          %s4601 = sshll.u32 [#allocation14], 4
          %s4602 = int_to_ptr.vmem [resolvable:$true] %s4601
          %4604 = dma.vmem_to_hbm [thread:$0]  %s4602, 32, %s10, [#allocation13]
        $region88: #{encoder_forward.11} parent=51 // pred_fallthru
          _
        // Predicated region
        $region89: #{encoder_forward.11} parent=51 // pred_check
          %p4605 = pneg %p220
        $region90: #{encoder_forward.11} parent=51 // pred_check_branch
          %4607 = sbr.rel (%p4605) target = $region92
        $region91: #{encoder_forward.11} parent=51 // pred_region
          %4608 = dma.done [#allocation5], 32
        $region92: #{encoder_forward.11} parent=51 // pred_fallthru
          _
        // Predicated region
        $region93: #{encoder_forward.11} parent=51 // pred_check
          %p4609 = pneg %p241
        $region94: #{encoder_forward.11} parent=51 // pred_check_branch
          %4611 = sbr.rel (%p4609) target = $region96
        $region95: #{encoder_forward.11} parent=51 // pred_region
          %4612 = dma.done [#allocation13], 32
        $region96: #{encoder_forward.11} parent=51 // pred_fallthru
          _
        // Predicated region
        $region97: #{encoder_forward.11} parent=51 // pred_check
          %p4613 = pneg %p262
        $region98: #{encoder_forward.11} parent=51 // pred_check_branch
          %4615 = sbr.rel (%p4613) target = $region100
        $region99: #{encoder_forward.11} parent=51 // pred_region
          %4616 = dma.done [#allocation13], 32
        $region100: #{encoder_forward.11} parent=51 // pred_fallthru
          _
      $region52: #{encoder_forward.11} parent=5 // pred_fallthru
        _
      %p4617 = scmp.le.s32.totalorder 2, %s24
      // Predicated region
      $region101: #{encoder_forward.11} parent=5 // pred_check
        %p4618 = pneg %p4617
      $region102: #{encoder_forward.11} parent=5 // pred_check_branch
        %4620 = sbr.rel (%p4618) target = $region104
      $region103: #{encoder_forward.11} parent=5 // pred_region
        %s4621 = ssub.s32 %s24, 2
      $region104: #{encoder_forward.11} parent=5 // pred_fallthru
        _
    $region6: #{encoder_forward.11} parent=1 // loop_footer
      %s28 = sadd.s32 1, %s24
    $region7: #{encoder_forward.11} parent=1 // loop_footer_branch
      %23 = sbr.rel target = $region3
    $region8: #{encoder_forward.11} parent=1 // loop_exit
      _
    %4622 = vsyncpa [#allocation4], 1
    %s4623 = scalar_lea.sflag [#allocation4], 1
    %4624 = vsyncpa %s4623, 1
    %4625 = vsyncpa [#allocation7], 1
    %4626 = vsyncpa [#allocation10], 1
    %4627 = vsyncpa [#allocation5], 1
    %s4628 = scalar_lea.sflag [#allocation5], 1
    %4629 = vsyncpa %s4628, 1
    %4630 = vsyncpa [#allocation13], 1

</llo_original>
